<compile_context>
chip_gen: v6e
topology: v6e:2x2x1
jax: 0.10.0
libtpu: 0.0.40
codegen_flags: <defaults>
</compile_context>

<pallas_src>
import functools
import math

import jax
import jax.numpy as jnp
from jax.experimental import pallas as pl
from jax.experimental.pallas import tpu as pltpu

# ---------------- model config (small, consistent with the module) ----------
HID_DIM = 32
N_LAYERS = 2
N_HEADS = 4
PF_DIM = 64
HEAD_DIM = HID_DIM // N_HEADS
BATCH = 2
SEQ = 8
LN_EPS = 1e-5


def _layer_norm(v, gamma, beta):
    mean = jnp.mean(v, axis=-1, keepdims=True)
    var = jnp.mean((v - mean) ** 2, axis=-1, keepdims=True)
    return (v - mean) * jax.lax.rsqrt(var + LN_EPS) * gamma + beta


# ---------------------------------------------------------------------------
# Fused encoder kernel: all layers, all batches in one grid step.
#   mask_ref : (B*S, B*S) f32  keep-mask (block-diagonal over batch x padding)
#   x_ref    : (B*S, H)   f32  activations
#   wqkv_ref : (L, H, 3H)      fused Q|K|V weights (scale folded into Q part)
#   wo_ref   : (L, H, H)
#   w1_ref   : (L, H, PF)
#   w2_ref   : (L, PF, H)
#   vec_ref  : (L, 8, 128)     packed small vectors (biases / LN params)
# ---------------------------------------------------------------------------
def encoder_kernel(mask_ref, x_ref, wqkv_ref, wo_ref, w1_ref, w2_ref, vec_ref,
                   out_ref):
    H, NH, HD, PF = HID_DIM, N_HEADS, HEAD_DIM, PF_DIM
    neg_inf = jnp.float32(-1e10)

    keep = mask_ref[...] > 0.0          # (BS, BS), hoisted out of the layer loop
    x = x_ref[...]                       # (BS, H)

    for l in range(N_LAYERS):            # static unroll over layers
        wqkv = wqkv_ref[l]               # (H, 3H)
        wo = wo_ref[l]                   # (H, H)
        w1 = w1_ref[l]                   # (H, PF)
        w2 = w2_ref[l]                   # (PF, H)
        bqkv = vec_ref[l, 0:1, : 3 * H]  # (1, 3H)
        bo = vec_ref[l, 1:2, :H]
        ln1g = vec_ref[l, 2:3, :H]
        ln1b = vec_ref[l, 3:4, :H]
        b1 = vec_ref[l, 4:5, :PF]
        b2 = vec_ref[l, 5:6, :H]
        ln2g = vec_ref[l, 6:7, :H]
        ln2b = vec_ref[l, 7:8, :H]

        # ---- multi-head self attention (fused QKV projection) --------------
        qkv = jnp.dot(x, wqkv, preferred_element_type=jnp.float32) + bqkv  # (BS, 3H)

        # head-major tensors via static lane slices (no sublane transpose)
        qh = jnp.stack([qkv[:, h * HD:(h + 1) * HD] for h in range(NH)], axis=0)
        kh = jnp.stack([qkv[:, H + h * HD:H + (h + 1) * HD] for h in range(NH)], axis=0)
        vh = jnp.stack([qkv[:, 2 * H + h * HD:2 * H + (h + 1) * HD] for h in range(NH)], axis=0)

        # (NH, BS, BS); 1/sqrt(HD) already folded into Q weights/bias
        energy = jnp.einsum('hqd,hkd->hqk', qh, kh,
                            preferred_element_type=jnp.float32)
        energy = jnp.where(keep[None, :, :], energy, neg_inf)
        energy = energy - jnp.max(energy, axis=-1, keepdims=True)
        p = jnp.exp(energy)
        p = p * pl.reciprocal(jnp.sum(p, axis=-1, keepdims=True), approx=True)
        ctx = jnp.einsum('hqk,hkd->hqd', p, vh,
                         preferred_element_type=jnp.float32)     # (NH, BS, HD)

        # output projection accumulated per head (avoids lane-concat shuffles)
        attn = jnp.dot(ctx[0], wo[0:HD, :], preferred_element_type=jnp.float32)
        for h in range(1, NH):
            attn = attn + jnp.dot(ctx[h], wo[h * HD:(h + 1) * HD, :],
                                  preferred_element_type=jnp.float32)
        attn = attn + bo

        # residual + layernorm (dropout = identity)
        src = _layer_norm(x + attn, ln1g, ln1b)

        # ---- position-wise feed forward -------------------------------------
        hdn = jnp.dot(src, w1, preferred_element_type=jnp.float32) + b1
        hdn = jnp.maximum(hdn, 0.0)
        ff = jnp.dot(hdn, w2, preferred_element_type=jnp.float32) + b2

        x = _layer_norm(src + ff, ln2g, ln2b)

    out_ref[...] = x
    # TODO(synk): output store stays (B*S, 32)-shaped (32/128 lanes); a lane-dense
    # (4, 128) reslab would need an in-kernel relayout that costs more than the 2 KB store.


# ---------------------------------------------------------------------------
# Wrapper: one pallas_call for the whole encoder.
# ---------------------------------------------------------------------------
@jax.jit
def encoder_forward(src, src_mask, wqkv, wo, w1, w2, vecs):
    B, S, H = src.shape
    BS = B * S
    x = src.reshape(BS, H)

    # block-diagonal keep-mask: query row (b, i) may attend key (b', j) only if
    # b == b' and src_mask[b', 0, j] != 0  (same masked_fill semantics).
    row_b = jnp.arange(BS, dtype=jnp.int32) // S
    same_batch = row_b[:, None] == row_b[None, :]
    key_keep = src_mask.reshape(BS) > 0.0
    attn_keep = jnp.logical_and(same_batch, key_keep[None, :]).astype(jnp.float32)

    out = pl.pallas_call(
        encoder_kernel,
        out_shape=jax.ShapeDtypeStruct((BS, H), jnp.float32),
        grid=(1,),
        in_specs=[
            pl.BlockSpec((BS, BS), lambda i: (0, 0)),                    # mask
            pl.BlockSpec((BS, H), lambda i: (0, 0)),                     # x
            pl.BlockSpec((N_LAYERS, H, 3 * H), lambda i: (0, 0, 0)),     # wqkv
            pl.BlockSpec((N_LAYERS, H, H), lambda i: (0, 0, 0)),         # wo
            pl.BlockSpec((N_LAYERS, H, PF_DIM), lambda i: (0, 0, 0)),    # w1
            pl.BlockSpec((N_LAYERS, PF_DIM, H), lambda i: (0, 0, 0)),    # w2
            pl.BlockSpec((N_LAYERS, 8, 128), lambda i: (0, 0, 0)),       # packed vecs
        ],
        out_specs=pl.BlockSpec((BS, H), lambda i: (0, 0)),
        compiler_params=pltpu.CompilerParams(
            dimension_semantics=("arbitrary",)),
    )(attn_keep, x, wqkv, wo, w1, w2, vecs)
    return out.reshape(B, S, H)


# ---------------------------------------------------------------------------
# Parameter init (mirrors the PyTorch module layout) + packing for the kernel.
# ---------------------------------------------------------------------------
def init_layer_params(key):
    ks = jax.random.split(key, 6)

    def lin(k, d_in, d_out):
        w = jax.random.normal(k, (d_in, d_out), jnp.float32) * 0.02
        b = jnp.zeros((1, d_out), jnp.float32)
        return w, b

    wq, bq = lin(ks[0], HID_DIM, HID_DIM)
    wk, bk = lin(ks[1], HID_DIM, HID_DIM)
    wv, bv = lin(ks[2], HID_DIM, HID_DIM)
    wo, bo = lin(ks[3], HID_DIM, HID_DIM)
    ln1_g = jnp.ones((1, HID_DIM), jnp.float32)
    ln1_b = jnp.zeros((1, HID_DIM), jnp.float32)
    w1, b1 = lin(ks[4], HID_DIM, PF_DIM)
    w2, b2 = lin(ks[5], PF_DIM, HID_DIM)
    ln2_g = jnp.ones((1, HID_DIM), jnp.float32)
    ln2_b = jnp.zeros((1, HID_DIM), jnp.float32)
    return (wq, bq, wk, bk, wv, bv, wo, bo,
            ln1_g, ln1_b, w1, b1, w2, b2, ln2_g, ln2_b)


def pack_encoder_params(layer_params):
    """Stack per-layer params, fuse QKV, fold 1/sqrt(HD) into Q, pack vectors."""
    scale = 1.0 / math.sqrt(HEAD_DIM)
    wqkv_l, wo_l, w1_l, w2_l, vec_l = [], [], [], [], []
    for (wq, bq, wk, bk, wv, bv, wo, bo,
         ln1g, ln1b, w1, b1, w2, b2, ln2g, ln2b) in layer_params:
        wqkv = jnp.concatenate([wq * scale, wk, wv], axis=1)   # (H, 3H)
        bqkv = jnp.concatenate([bq * scale, bk, bv], axis=1)   # (1, 3H)
        vec = jnp.zeros((8, 128), jnp.float32)
        vec = vec.at[0, :3 * HID_DIM].set(bqkv[0])
        vec = vec.at[1, :HID_DIM].set(bo[0])
        vec = vec.at[2, :HID_DIM].set(ln1g[0])
        vec = vec.at[3, :HID_DIM].set(ln1b[0])
        vec = vec.at[4, :PF_DIM].set(b1[0])
        vec = vec.at[5, :HID_DIM].set(b2[0])
        vec = vec.at[6, :HID_DIM].set(ln2g[0])
        vec = vec.at[7, :HID_DIM].set(ln2b[0])
        wqkv_l.append(wqkv)
        wo_l.append(wo)
        w1_l.append(w1)
        w2_l.append(w2)
        vec_l.append(vec)
    return (jnp.stack(wqkv_l), jnp.stack(wo_l), jnp.stack(w1_l),
            jnp.stack(w2_l), jnp.stack(vec_l))


# ---------------------------------------------------------------------------
# Pure-JAX reference (PyTorch semantics) for a correctness cross-check.
# ---------------------------------------------------------------------------
def encoder_reference(src, src_mask, layer_params):
    B, S, H = src.shape
    x = src
    for (wq, bq, wk, bk, wv, bv, wo, bo,
         ln1g, ln1b, w1, b1, w2, b2, ln2g, ln2b) in layer_params:
        q = x @ wq + bq
        k = x @ wk + bk
        v = x @ wv + bv

        def split(t):
            return t.reshape(B, S, N_HEADS, HEAD_DIM).transpose(0, 2, 1, 3)

        qh, kh, vh = split(q), split(k), split(v)
        energy = jnp.einsum('bhqd,bhkd->bhqk', qh, kh) / math.sqrt(HEAD_DIM)
        energy = jnp.where(src_mask[:, None, :, :] > 0.0, energy, -1e10)
        attn_w = jax.nn.softmax(energy, axis=-1)
        ctx = jnp.einsum('bhqk,bhkd->bhqd', attn_w, vh)
        ctx = ctx.transpose(0, 2, 1, 3).reshape(B, S, H)
        a = ctx @ wo + bo
        src1 = _layer_norm(x + a, ln1g, ln1b)
        ff = jnp.maximum(src1 @ w1 + b1, 0.0) @ w2 + b2
        x = _layer_norm(src1 + ff, ln2g, ln2b)
    return x


if __name__ == "__main__":
    root = jax.random.PRNGKey(0)
    k_x, k_layers = jax.random.split(root)

    # deterministic example input: [B, S, H] activations, [B, 1, S] mask
    src = jax.random.normal(k_x, (BATCH, SEQ, HID_DIM), jnp.float32)
    src_mask = jnp.ones((BATCH, 1, SEQ), jnp.float32)
    src_mask = src_mask.at[1, 0, SEQ - 2:].set(0.0)  # pad out last 2 tokens of batch 1

    layer_keys = jax.random.split(k_layers, N_LAYERS)
    layer_params = [init_layer_params(k) for k in layer_keys]
    packed = pack_encoder_params(layer_params)

    out = encoder_forward(src, src_mask, *packed)
    jax.block_until_ready(out)
    assert out.shape == (BATCH, SEQ, HID_DIM)
    assert bool(jnp.all(jnp.isfinite(out)))

    ref = encoder_reference(src, src_mask, layer_params)
    max_err = float(jnp.max(jnp.abs(out - ref)))
    assert max_err < 5e-2, f"kernel/reference mismatch: max abs err {max_err}"
    print("KERNEL_OK")
</pallas_src>

<mosaic_0001>
module attributes {stable_mosaic.version = 11 : i64} {
  func.func @encoder_kernel(%arg0: i32, %arg1: memref<16x16xf32, #tpu.memory_space<vmem>>, %arg2: memref<16x32xf32, #tpu.memory_space<vmem>>, %arg3: memref<2x32x96xf32, #tpu.memory_space<vmem>>, %arg4: memref<2x32x32xf32, #tpu.memory_space<vmem>>, %arg5: memref<2x32x64xf32, #tpu.memory_space<vmem>>, %arg6: memref<2x64x32xf32, #tpu.memory_space<vmem>>, %arg7: memref<2x8x128xf32, #tpu.memory_space<vmem>>, %arg8: memref<16x32xf32, #tpu.memory_space<vmem>>) attributes {dimension_semantics = [#tpu.dimension_semantics<arbitrary>], iteration_bounds = array<i64: 1>, scalar_prefetch = 0 : i64, scratch_operands = 0 : i64, tpu.core_type = #tpu.core_type<tc>, window_params = [{pipeline_mode = #tpu.pipeline_mode<synchronous>, transform_indices = @transform_0, window_bounds = array<i64: 16, 16>}, {pipeline_mode = #tpu.pipeline_mode<synchronous>, transform_indices = @transform_1, window_bounds = array<i64: 16, 32>}, {pipeline_mode = #tpu.pipeline_mode<synchronous>, transform_indices = @transform_2, window_bounds = array<i64: 2, 32, 96>}, {pipeline_mode = #tpu.pipeline_mode<synchronous>, transform_indices = @transform_3, window_bounds = array<i64: 2, 32, 32>}, {pipeline_mode = #tpu.pipeline_mode<synchronous>, transform_indices = @transform_4, window_bounds = array<i64: 2, 32, 64>}, {pipeline_mode = #tpu.pipeline_mode<synchronous>, transform_indices = @transform_5, window_bounds = array<i64: 2, 64, 32>}, {pipeline_mode = #tpu.pipeline_mode<synchronous>, transform_indices = @transform_6, window_bounds = array<i64: 2, 8, 128>}, {pipeline_mode = #tpu.pipeline_mode<synchronous>, transform_indices = @transform_7, window_bounds = array<i64: 16, 32>}]} {
    %c0 = arith.constant 0 : index
    %c0_0 = arith.constant 0 : index
    %0 = vector.load %arg1[%c0, %c0_0] : memref<16x16xf32, #tpu.memory_space<vmem>>, vector<16x16xf32>
    %cst = arith.constant 0.000000e+00 : f32
    %1 = vector.broadcast %cst : f32 to vector<16x16xf32>
    %2 = arith.cmpf ogt, %0, %1 : vector<16x16xf32>
    %c0_1 = arith.constant 0 : index
    %c0_2 = arith.constant 0 : index
    %3 = vector.load %arg2[%c0_1, %c0_2] : memref<16x32xf32, #tpu.memory_space<vmem>>, vector<16x32xf32>
    %c0_3 = arith.constant 0 : index
    %c0_4 = arith.constant 0 : index
    %c0_5 = arith.constant 0 : index
    %4 = vector.load %arg3[%c0_3, %c0_4, %c0_5] : memref<2x32x96xf32, #tpu.memory_space<vmem>>, vector<1x32x96xf32>
    %5 = vector.shape_cast %4 : vector<1x32x96xf32> to vector<32x96xf32>
    %c0_6 = arith.constant 0 : index
    %c0_7 = arith.constant 0 : index
    %c0_8 = arith.constant 0 : index
    %6 = vector.load %arg4[%c0_6, %c0_7, %c0_8] : memref<2x32x32xf32, #tpu.memory_space<vmem>>, vector<1x32x32xf32>
    %7 = vector.shape_cast %6 : vector<1x32x32xf32> to vector<32x32xf32>
    %c0_9 = arith.constant 0 : index
    %c0_10 = arith.constant 0 : index
    %c0_11 = arith.constant 0 : index
    %8 = vector.load %arg5[%c0_9, %c0_10, %c0_11] : memref<2x32x64xf32, #tpu.memory_space<vmem>>, vector<1x32x64xf32>
    %9 = vector.shape_cast %8 : vector<1x32x64xf32> to vector<32x64xf32>
    %c0_12 = arith.constant 0 : index
    %c0_13 = arith.constant 0 : index
    %c0_14 = arith.constant 0 : index
    %10 = vector.load %arg6[%c0_12, %c0_13, %c0_14] : memref<2x64x32xf32, #tpu.memory_space<vmem>>, vector<1x64x32xf32>
    %11 = vector.shape_cast %10 : vector<1x64x32xf32> to vector<64x32xf32>
    %c0_15 = arith.constant 0 : index
    %c0_16 = arith.constant 0 : index
    %c0_17 = arith.constant 0 : index
    %12 = vector.load %arg7[%c0_15, %c0_16, %c0_17] : memref<2x8x128xf32, #tpu.memory_space<vmem>>, vector<1x1x96xf32>
    %13 = vector.shape_cast %12 : vector<1x1x96xf32> to vector<1x96xf32>
    %c0_18 = arith.constant 0 : index
    %c1 = arith.constant 1 : index
    %c0_19 = arith.constant 0 : index
    %14 = vector.load %arg7[%c0_18, %c1, %c0_19] : memref<2x8x128xf32, #tpu.memory_space<vmem>>, vector<1x1x32xf32>
    %15 = vector.shape_cast %14 : vector<1x1x32xf32> to vector<1x32xf32>
    %c0_20 = arith.constant 0 : index
    %c2 = arith.constant 2 : index
    %c0_21 = arith.constant 0 : index
    %16 = vector.load %arg7[%c0_20, %c2, %c0_21] : memref<2x8x128xf32, #tpu.memory_space<vmem>>, vector<1x1x32xf32>
    %17 = vector.shape_cast %16 : vector<1x1x32xf32> to vector<1x32xf32>
    %c0_22 = arith.constant 0 : index
    %c3 = arith.constant 3 : index
    %c0_23 = arith.constant 0 : index
    %18 = vector.load %arg7[%c0_22, %c3, %c0_23] : memref<2x8x128xf32, #tpu.memory_space<vmem>>, vector<1x1x32xf32>
    %19 = vector.shape_cast %18 : vector<1x1x32xf32> to vector<1x32xf32>
    %c0_24 = arith.constant 0 : index
    %c4 = arith.constant 4 : index
    %c0_25 = arith.constant 0 : index
    %20 = vector.load %arg7[%c0_24, %c4, %c0_25] : memref<2x8x128xf32, #tpu.memory_space<vmem>>, vector<1x1x64xf32>
    %21 = vector.shape_cast %20 : vector<1x1x64xf32> to vector<1x64xf32>
    %c0_26 = arith.constant 0 : index
    %c5 = arith.constant 5 : index
    %c0_27 = arith.constant 0 : index
    %22 = vector.load %arg7[%c0_26, %c5, %c0_27] : memref<2x8x128xf32, #tpu.memory_space<vmem>>, vector<1x1x32xf32>
    %23 = vector.shape_cast %22 : vector<1x1x32xf32> to vector<1x32xf32>
    %c0_28 = arith.constant 0 : index
    %c6 = arith.constant 6 : index
    %c0_29 = arith.constant 0 : index
    %24 = vector.load %arg7[%c0_28, %c6, %c0_29] : memref<2x8x128xf32, #tpu.memory_space<vmem>>, vector<1x1x32xf32>
    %25 = vector.shape_cast %24 : vector<1x1x32xf32> to vector<1x32xf32>
    %c0_30 = arith.constant 0 : index
    %c7 = arith.constant 7 : index
    %c0_31 = arith.constant 0 : index
    %26 = vector.load %arg7[%c0_30, %c7, %c0_31] : memref<2x8x128xf32, #tpu.memory_space<vmem>>, vector<1x1x32xf32>
    %27 = vector.shape_cast %26 : vector<1x1x32xf32> to vector<1x32xf32>
    %cst_32 = arith.constant dense<0.000000e+00> : vector<16x96xf32>
    %28 = tpu.matmul %3, %5, %cst_32 {dimension_numbers = #tpu.dot_dimension_numbers<[1], [0], [0], [1], [0, 0, 1, 1], [], []>} : vector<16x32xf32>, vector<32x96xf32>, vector<16x96xf32> -> vector<16x96xf32>
    %29 = vector.broadcast %13 : vector<1x96xf32> to vector<16x96xf32>
    %30 = arith.addf %28, %29 : vector<16x96xf32>
    %31 = vector.extract_strided_slice %30 {offsets = [0, 0], sizes = [16, 8], strides = [1, 1]} : vector<16x96xf32> to vector<16x8xf32>
    %32 = vector.extract_strided_slice %30 {offsets = [0, 8], sizes = [16, 8], strides = [1, 1]} : vector<16x96xf32> to vector<16x8xf32>
    %33 = vector.extract_strided_slice %30 {offsets = [0, 16], sizes = [16, 8], strides = [1, 1]} : vector<16x96xf32> to vector<16x8xf32>
    %34 = vector.extract_strided_slice %30 {offsets = [0, 24], sizes = [16, 8], strides = [1, 1]} : vector<16x96xf32> to vector<16x8xf32>
    %35 = vector.shape_cast %31 : vector<16x8xf32> to vector<1x16x8xf32>
    %36 = vector.shape_cast %32 : vector<16x8xf32> to vector<1x16x8xf32>
    %37 = vector.shape_cast %33 : vector<16x8xf32> to vector<1x16x8xf32>
    %38 = vector.shape_cast %34 : vector<16x8xf32> to vector<1x16x8xf32>
    %39 = tpu.concatenate %35, %36, %37, %38 in 0 : vector<1x16x8xf32>, vector<1x16x8xf32>, vector<1x16x8xf32>, vector<1x16x8xf32> -> vector<4x16x8xf32>
    %40 = vector.extract_strided_slice %30 {offsets = [0, 32], sizes = [16, 8], strides = [1, 1]} : vector<16x96xf32> to vector<16x8xf32>
    %41 = vector.extract_strided_slice %30 {offsets = [0, 40], sizes = [16, 8], strides = [1, 1]} : vector<16x96xf32> to vector<16x8xf32>
    %42 = vector.extract_strided_slice %30 {offsets = [0, 48], sizes = [16, 8], strides = [1, 1]} : vector<16x96xf32> to vector<16x8xf32>
    %43 = vector.extract_strided_slice %30 {offsets = [0, 56], sizes = [16, 8], strides = [1, 1]} : vector<16x96xf32> to vector<16x8xf32>
    %44 = vector.shape_cast %40 : vector<16x8xf32> to vector<1x16x8xf32>
    %45 = vector.shape_cast %41 : vector<16x8xf32> to vector<1x16x8xf32>
    %46 = vector.shape_cast %42 : vector<16x8xf32> to vector<1x16x8xf32>
    %47 = vector.shape_cast %43 : vector<16x8xf32> to vector<1x16x8xf32>
    %48 = tpu.concatenate %44, %45, %46, %47 in 0 : vector<1x16x8xf32>, vector<1x16x8xf32>, vector<1x16x8xf32>, vector<1x16x8xf32> -> vector<4x16x8xf32>
    %49 = vector.extract_strided_slice %30 {offsets = [0, 64], sizes = [16, 8], strides = [1, 1]} : vector<16x96xf32> to vector<16x8xf32>
    %50 = vector.extract_strided_slice %30 {offsets = [0, 72], sizes = [16, 8], strides = [1, 1]} : vector<16x96xf32> to vector<16x8xf32>
    %51 = vector.extract_strided_slice %30 {offsets = [0, 80], sizes = [16, 8], strides = [1, 1]} : vector<16x96xf32> to vector<16x8xf32>
    %52 = vector.extract_strided_slice %30 {offsets = [0, 88], sizes = [16, 8], strides = [1, 1]} : vector<16x96xf32> to vector<16x8xf32>
    %53 = vector.shape_cast %49 : vector<16x8xf32> to vector<1x16x8xf32>
    %54 = vector.shape_cast %50 : vector<16x8xf32> to vector<1x16x8xf32>
    %55 = vector.shape_cast %51 : vector<16x8xf32> to vector<1x16x8xf32>
    %56 = vector.shape_cast %52 : vector<16x8xf32> to vector<1x16x8xf32>
    %57 = tpu.concatenate %53, %54, %55, %56 in 0 : vector<1x16x8xf32>, vector<1x16x8xf32>, vector<1x16x8xf32>, vector<1x16x8xf32> -> vector<4x16x8xf32>
    "tpu.trace_start"() <{level = 10 : i32, message = "hqd,hkd->hqk"}> : () -> ()
    %cst_33 = arith.constant dense<0.000000e+00> : vector<4x16x16xf32>
    %58 = tpu.matmul %39, %48, %cst_33 {dimension_numbers = #tpu.dot_dimension_numbers<[2], [2], [1], [1], [0, 0, 0, 1, 1, 1], [0], [0]>} : vector<4x16x8xf32>, vector<4x16x8xf32>, vector<4x16x16xf32> -> vector<4x16x16xf32>
    "tpu.trace_stop"() : () -> ()
    %59 = vector.shape_cast %2 : vector<16x16xi1> to vector<1x16x16xi1>
    %cst_34 = arith.constant -1.000000e+10 : f32
    %60 = vector.shape_cast %59 : vector<1x16x16xi1> to vector<1x16x16xi1>
    %61 = vector.broadcast %60 : vector<1x16x16xi1> to vector<4x16x16xi1>
    %62 = vector.broadcast %cst_34 : f32 to vector<4x16x16xf32>
    %63 = arith.select %61, %58, %62 : vector<4x16x16xi1>, vector<4x16x16xf32>
    %cst_35 = arith.constant dense<0xFF800000> : vector<4x16xf32>
    %64 = vector.multi_reduction <maximumf>, %63, %cst_35 [2] : vector<4x16x16xf32> to vector<4x16xf32>
    %65 = vector.shape_cast %64 : vector<4x16xf32> to vector<4x16x1xf32>
    %66 = vector.broadcast %65 : vector<4x16x1xf32> to vector<4x16x16xf32>
    %67 = arith.subf %63, %66 : vector<4x16x16xf32>
    %68 = math.exp %67 : vector<4x16x16xf32>
    %cst_36 = arith.constant dense<0.000000e+00> : vector<4x16xf32>
    %69 = vector.multi_reduction <add>, %68, %cst_36 [2] : vector<4x16x16xf32> to vector<4x16xf32>
    %70 = vector.shape_cast %69 : vector<4x16xf32> to vector<4x16x1xf32>
    %71 = tpu.reciprocal %70 {approx = true} : vector<4x16x1xf32> -> vector<4x16x1xf32>
    %72 = vector.broadcast %71 : vector<4x16x1xf32> to vector<4x16x16xf32>
    %73 = arith.mulf %68, %72 : vector<4x16x16xf32>
    "tpu.trace_start"() <{level = 10 : i32, message = "hqk,hkd->hqd"}> : () -> ()
    %cst_37 = arith.constant dense<0.000000e+00> : vector<4x16x8xf32>
    %74 = tpu.matmul %73, %57, %cst_37 {dimension_numbers = #tpu.dot_dimension_numbers<[2], [1], [1], [2], [0, 0, 0, 1, 1, 2], [0], [0]>} : vector<4x16x16xf32>, vector<4x16x8xf32>, vector<4x16x8xf32> -> vector<4x16x8xf32>
    "tpu.trace_stop"() : () -> ()
    %75 = vector.extract_strided_slice %74 {offsets = [0, 0, 0], sizes = [1, 16, 8], strides = [1, 1, 1]} : vector<4x16x8xf32> to vector<1x16x8xf32>
    %76 = vector.shape_cast %75 : vector<1x16x8xf32> to vector<16x8xf32>
    %77 = vector.extract_strided_slice %7 {offsets = [0, 0], sizes = [8, 32], strides = [1, 1]} : vector<32x32xf32> to vector<8x32xf32>
    %cst_38 = arith.constant dense<0.000000e+00> : vector<16x32xf32>
    %78 = tpu.matmul %76, %77, %cst_38 {dimension_numbers = #tpu.dot_dimension_numbers<[1], [0], [0], [1], [0, 0, 1, 1], [], []>} : vector<16x8xf32>, vector<8x32xf32>, vector<16x32xf32> -> vector<16x32xf32>
    %79 = vector.extract_strided_slice %74 {offsets = [1, 0, 0], sizes = [1, 16, 8], strides = [1, 1, 1]} : vector<4x16x8xf32> to vector<1x16x8xf32>
    %80 = vector.shape_cast %79 : vector<1x16x8xf32> to vector<16x8xf32>
    %81 = vector.extract_strided_slice %7 {offsets = [8, 0], sizes = [8, 32], strides = [1, 1]} : vector<32x32xf32> to vector<8x32xf32>
    %cst_39 = arith.constant dense<0.000000e+00> : vector<16x32xf32>
    %82 = tpu.matmul %80, %81, %cst_39 {dimension_numbers = #tpu.dot_dimension_numbers<[1], [0], [0], [1], [0, 0, 1, 1], [], []>} : vector<16x8xf32>, vector<8x32xf32>, vector<16x32xf32> -> vector<16x32xf32>
    %83 = arith.addf %78, %82 : vector<16x32xf32>
    %84 = vector.extract_strided_slice %74 {offsets = [2, 0, 0], sizes = [1, 16, 8], strides = [1, 1, 1]} : vector<4x16x8xf32> to vector<1x16x8xf32>
    %85 = vector.shape_cast %84 : vector<1x16x8xf32> to vector<16x8xf32>
    %86 = vector.extract_strided_slice %7 {offsets = [16, 0], sizes = [8, 32], strides = [1, 1]} : vector<32x32xf32> to vector<8x32xf32>
    %cst_40 = arith.constant dense<0.000000e+00> : vector<16x32xf32>
    %87 = tpu.matmul %85, %86, %cst_40 {dimension_numbers = #tpu.dot_dimension_numbers<[1], [0], [0], [1], [0, 0, 1, 1], [], []>} : vector<16x8xf32>, vector<8x32xf32>, vector<16x32xf32> -> vector<16x32xf32>
    %88 = arith.addf %83, %87 : vector<16x32xf32>
    %89 = vector.extract_strided_slice %74 {offsets = [3, 0, 0], sizes = [1, 16, 8], strides = [1, 1, 1]} : vector<4x16x8xf32> to vector<1x16x8xf32>
    %90 = vector.shape_cast %89 : vector<1x16x8xf32> to vector<16x8xf32>
    %91 = vector.extract_strided_slice %7 {offsets = [24, 0], sizes = [8, 32], strides = [1, 1]} : vector<32x32xf32> to vector<8x32xf32>
    %cst_41 = arith.constant dense<0.000000e+00> : vector<16x32xf32>
    %92 = tpu.matmul %90, %91, %cst_41 {dimension_numbers = #tpu.dot_dimension_numbers<[1], [0], [0], [1], [0, 0, 1, 1], [], []>} : vector<16x8xf32>, vector<8x32xf32>, vector<16x32xf32> -> vector<16x32xf32>
    %93 = arith.addf %88, %92 : vector<16x32xf32>
    %94 = vector.broadcast %15 : vector<1x32xf32> to vector<16x32xf32>
    %95 = arith.addf %93, %94 : vector<16x32xf32>
    %96 = arith.addf %3, %95 : vector<16x32xf32>
    %cst_42 = arith.constant dense<0.000000e+00> : vector<16xf32>
    %97 = vector.multi_reduction <add>, %96, %cst_42 [1] : vector<16x32xf32> to vector<16xf32>
    %98 = vector.shape_cast %97 : vector<16xf32> to vector<16x1xf32>
    %cst_43 = arith.constant 3.200000e+01 : f32
    %99 = vector.broadcast %cst_43 : f32 to vector<16x1xf32>
    %100 = arith.divf %98, %99 : vector<16x1xf32>
    %101 = vector.broadcast %100 : vector<16x1xf32> to vector<16x32xf32>
    %102 = arith.subf %96, %101 : vector<16x32xf32>
    %103 = arith.mulf %102, %102 : vector<16x32xf32>
    %cst_44 = arith.constant dense<0.000000e+00> : vector<16xf32>
    %104 = vector.multi_reduction <add>, %103, %cst_44 [1] : vector<16x32xf32> to vector<16xf32>
    %105 = vector.shape_cast %104 : vector<16xf32> to vector<16x1xf32>
    %cst_45 = arith.constant 3.200000e+01 : f32
    %106 = vector.broadcast %cst_45 : f32 to vector<16x1xf32>
    %107 = arith.divf %105, %106 : vector<16x1xf32>
    %108 = vector.broadcast %100 : vector<16x1xf32> to vector<16x32xf32>
    %109 = arith.subf %96, %108 : vector<16x32xf32>
    %cst_46 = arith.constant 9.99999974E-6 : f32
    %110 = vector.broadcast %cst_46 : f32 to vector<16x1xf32>
    %111 = arith.addf %107, %110 : vector<16x1xf32>
    %112 = math.rsqrt %111 : vector<16x1xf32>
    %113 = vector.broadcast %112 : vector<16x1xf32> to vector<16x32xf32>
    %114 = arith.mulf %109, %113 : vector<16x32xf32>
    %115 = vector.broadcast %17 : vector<1x32xf32> to vector<16x32xf32>
    %116 = arith.mulf %114, %115 : vector<16x32xf32>
    %117 = vector.broadcast %19 : vector<1x32xf32> to vector<16x32xf32>
    %118 = arith.addf %116, %117 : vector<16x32xf32>
    %cst_47 = arith.constant dense<0.000000e+00> : vector<16x64xf32>
    %119 = tpu.matmul %118, %9, %cst_47 {dimension_numbers = #tpu.dot_dimension_numbers<[1], [0], [0], [1], [0, 0, 1, 1], [], []>} : vector<16x32xf32>, vector<32x64xf32>, vector<16x64xf32> -> vector<16x64xf32>
    %120 = vector.broadcast %21 : vector<1x64xf32> to vector<16x64xf32>
    %121 = arith.addf %119, %120 : vector<16x64xf32>
    %cst_48 = arith.constant 0.000000e+00 : f32
    %122 = vector.broadcast %cst_48 : f32 to vector<16x64xf32>
    %123 = arith.maximumf %121, %122 : vector<16x64xf32>
    %cst_49 = arith.constant dense<0.000000e+00> : vector<16x32xf32>
    %124 = tpu.matmul %123, %11, %cst_49 {dimension_numbers = #tpu.dot_dimension_numbers<[1], [0], [0], [1], [0, 0, 1, 1], [], []>} : vector<16x64xf32>, vector<64x32xf32>, vector<16x32xf32> -> vector<16x32xf32>
    %125 = vector.broadcast %23 : vector<1x32xf32> to vector<16x32xf32>
    %126 = arith.addf %124, %125 : vector<16x32xf32>
    %127 = arith.addf %118, %126 : vector<16x32xf32>
    %cst_50 = arith.constant dense<0.000000e+00> : vector<16xf32>
    %128 = vector.multi_reduction <add>, %127, %cst_50 [1] : vector<16x32xf32> to vector<16xf32>
    %129 = vector.shape_cast %128 : vector<16xf32> to vector<16x1xf32>
    %cst_51 = arith.constant 3.200000e+01 : f32
    %130 = vector.broadcast %cst_51 : f32 to vector<16x1xf32>
    %131 = arith.divf %129, %130 : vector<16x1xf32>
    %132 = vector.broadcast %131 : vector<16x1xf32> to vector<16x32xf32>
    %133 = arith.subf %127, %132 : vector<16x32xf32>
    %134 = arith.mulf %133, %133 : vector<16x32xf32>
    %cst_52 = arith.constant dense<0.000000e+00> : vector<16xf32>
    %135 = vector.multi_reduction <add>, %134, %cst_52 [1] : vector<16x32xf32> to vector<16xf32>
    %136 = vector.shape_cast %135 : vector<16xf32> to vector<16x1xf32>
    %cst_53 = arith.constant 3.200000e+01 : f32
    %137 = vector.broadcast %cst_53 : f32 to vector<16x1xf32>
    %138 = arith.divf %136, %137 : vector<16x1xf32>
    %139 = vector.broadcast %131 : vector<16x1xf32> to vector<16x32xf32>
    %140 = arith.subf %127, %139 : vector<16x32xf32>
    %cst_54 = arith.constant 9.99999974E-6 : f32
    %141 = vector.broadcast %cst_54 : f32 to vector<16x1xf32>
    %142 = arith.addf %138, %141 : vector<16x1xf32>
    %143 = math.rsqrt %142 : vector<16x1xf32>
    %144 = vector.broadcast %143 : vector<16x1xf32> to vector<16x32xf32>
    %145 = arith.mulf %140, %144 : vector<16x32xf32>
    %146 = vector.broadcast %25 : vector<1x32xf32> to vector<16x32xf32>
    %147 = arith.mulf %145, %146 : vector<16x32xf32>
    %148 = vector.broadcast %27 : vector<1x32xf32> to vector<16x32xf32>
    %149 = arith.addf %147, %148 : vector<16x32xf32>
    %c1_55 = arith.constant 1 : index
    %c0_56 = arith.constant 0 : index
    %c0_57 = arith.constant 0 : index
    %150 = vector.load %arg3[%c1_55, %c0_56, %c0_57] : memref<2x32x96xf32, #tpu.memory_space<vmem>>, vector<1x32x96xf32>
    %151 = vector.shape_cast %150 : vector<1x32x96xf32> to vector<32x96xf32>
    %c1_58 = arith.constant 1 : index
    %c0_59 = arith.constant 0 : index
    %c0_60 = arith.constant 0 : index
    %152 = vector.load %arg4[%c1_58, %c0_59, %c0_60] : memref<2x32x32xf32, #tpu.memory_space<vmem>>, vector<1x32x32xf32>
    %153 = vector.shape_cast %152 : vector<1x32x32xf32> to vector<32x32xf32>
    %c1_61 = arith.constant 1 : index
    %c0_62 = arith.constant 0 : index
    %c0_63 = arith.constant 0 : index
    %154 = vector.load %arg5[%c1_61, %c0_62, %c0_63] : memref<2x32x64xf32, #tpu.memory_space<vmem>>, vector<1x32x64xf32>
    %155 = vector.shape_cast %154 : vector<1x32x64xf32> to vector<32x64xf32>
    %c1_64 = arith.constant 1 : index
    %c0_65 = arith.constant 0 : index
    %c0_66 = arith.constant 0 : index
    %156 = vector.load %arg6[%c1_64, %c0_65, %c0_66] : memref<2x64x32xf32, #tpu.memory_space<vmem>>, vector<1x64x32xf32>
    %157 = vector.shape_cast %156 : vector<1x64x32xf32> to vector<64x32xf32>
    %c1_67 = arith.constant 1 : index
    %c0_68 = arith.constant 0 : index
    %c0_69 = arith.constant 0 : index
    %158 = vector.load %arg7[%c1_67, %c0_68, %c0_69] : memref<2x8x128xf32, #tpu.memory_space<vmem>>, vector<1x1x96xf32>
    %159 = vector.shape_cast %158 : vector<1x1x96xf32> to vector<1x96xf32>
    %c1_70 = arith.constant 1 : index
    %c1_71 = arith.constant 1 : index
    %c0_72 = arith.constant 0 : index
    %160 = vector.load %arg7[%c1_70, %c1_71, %c0_72] : memref<2x8x128xf32, #tpu.memory_space<vmem>>, vector<1x1x32xf32>
    %161 = vector.shape_cast %160 : vector<1x1x32xf32> to vector<1x32xf32>
    %c1_73 = arith.constant 1 : index
    %c2_74 = arith.constant 2 : index
    %c0_75 = arith.constant 0 : index
    %162 = vector.load %arg7[%c1_73, %c2_74, %c0_75] : memref<2x8x128xf32, #tpu.memory_space<vmem>>, vector<1x1x32xf32>
    %163 = vector.shape_cast %162 : vector<1x1x32xf32> to vector<1x32xf32>
    %c1_76 = arith.constant 1 : index
    %c3_77 = arith.constant 3 : index
    %c0_78 = arith.constant 0 : index
    %164 = vector.load %arg7[%c1_76, %c3_77, %c0_78] : memref<2x8x128xf32, #tpu.memory_space<vmem>>, vector<1x1x32xf32>
    %165 = vector.shape_cast %164 : vector<1x1x32xf32> to vector<1x32xf32>
    %c1_79 = arith.constant 1 : index
    %c4_80 = arith.constant 4 : index
    %c0_81 = arith.constant 0 : index
    %166 = vector.load %arg7[%c1_79, %c4_80, %c0_81] : memref<2x8x128xf32, #tpu.memory_space<vmem>>, vector<1x1x64xf32>
    %167 = vector.shape_cast %166 : vector<1x1x64xf32> to vector<1x64xf32>
    %c1_82 = arith.constant 1 : index
    %c5_83 = arith.constant 5 : index
    %c0_84 = arith.constant 0 : index
    %168 = vector.load %arg7[%c1_82, %c5_83, %c0_84] : memref<2x8x128xf32, #tpu.memory_space<vmem>>, vector<1x1x32xf32>
    %169 = vector.shape_cast %168 : vector<1x1x32xf32> to vector<1x32xf32>
    %c1_85 = arith.constant 1 : index
    %c6_86 = arith.constant 6 : index
    %c0_87 = arith.constant 0 : index
    %170 = vector.load %arg7[%c1_85, %c6_86, %c0_87] : memref<2x8x128xf32, #tpu.memory_space<vmem>>, vector<1x1x32xf32>
    %171 = vector.shape_cast %170 : vector<1x1x32xf32> to vector<1x32xf32>
    %c1_88 = arith.constant 1 : index
    %c7_89 = arith.constant 7 : index
    %c0_90 = arith.constant 0 : index
    %172 = vector.load %arg7[%c1_88, %c7_89, %c0_90] : memref<2x8x128xf32, #tpu.memory_space<vmem>>, vector<1x1x32xf32>
    %173 = vector.shape_cast %172 : vector<1x1x32xf32> to vector<1x32xf32>
    %cst_91 = arith.constant dense<0.000000e+00> : vector<16x96xf32>
    %174 = tpu.matmul %149, %151, %cst_91 {dimension_numbers = #tpu.dot_dimension_numbers<[1], [0], [0], [1], [0, 0, 1, 1], [], []>} : vector<16x32xf32>, vector<32x96xf32>, vector<16x96xf32> -> vector<16x96xf32>
    %175 = vector.broadcast %159 : vector<1x96xf32> to vector<16x96xf32>
    %176 = arith.addf %174, %175 : vector<16x96xf32>
    %177 = vector.extract_strided_slice %176 {offsets = [0, 0], sizes = [16, 8], strides = [1, 1]} : vector<16x96xf32> to vector<16x8xf32>
    %178 = vector.extract_strided_slice %176 {offsets = [0, 8], sizes = [16, 8], strides = [1, 1]} : vector<16x96xf32> to vector<16x8xf32>
    %179 = vector.extract_strided_slice %176 {offsets = [0, 16], sizes = [16, 8], strides = [1, 1]} : vector<16x96xf32> to vector<16x8xf32>
    %180 = vector.extract_strided_slice %176 {offsets = [0, 24], sizes = [16, 8], strides = [1, 1]} : vector<16x96xf32> to vector<16x8xf32>
    %181 = vector.shape_cast %177 : vector<16x8xf32> to vector<1x16x8xf32>
    %182 = vector.shape_cast %178 : vector<16x8xf32> to vector<1x16x8xf32>
    %183 = vector.shape_cast %179 : vector<16x8xf32> to vector<1x16x8xf32>
    %184 = vector.shape_cast %180 : vector<16x8xf32> to vector<1x16x8xf32>
    %185 = tpu.concatenate %181, %182, %183, %184 in 0 : vector<1x16x8xf32>, vector<1x16x8xf32>, vector<1x16x8xf32>, vector<1x16x8xf32> -> vector<4x16x8xf32>
    %186 = vector.extract_strided_slice %176 {offsets = [0, 32], sizes = [16, 8], strides = [1, 1]} : vector<16x96xf32> to vector<16x8xf32>
    %187 = vector.extract_strided_slice %176 {offsets = [0, 40], sizes = [16, 8], strides = [1, 1]} : vector<16x96xf32> to vector<16x8xf32>
    %188 = vector.extract_strided_slice %176 {offsets = [0, 48], sizes = [16, 8], strides = [1, 1]} : vector<16x96xf32> to vector<16x8xf32>
    %189 = vector.extract_strided_slice %176 {offsets = [0, 56], sizes = [16, 8], strides = [1, 1]} : vector<16x96xf32> to vector<16x8xf32>
    %190 = vector.shape_cast %186 : vector<16x8xf32> to vector<1x16x8xf32>
    %191 = vector.shape_cast %187 : vector<16x8xf32> to vector<1x16x8xf32>
    %192 = vector.shape_cast %188 : vector<16x8xf32> to vector<1x16x8xf32>
    %193 = vector.shape_cast %189 : vector<16x8xf32> to vector<1x16x8xf32>
    %194 = tpu.concatenate %190, %191, %192, %193 in 0 : vector<1x16x8xf32>, vector<1x16x8xf32>, vector<1x16x8xf32>, vector<1x16x8xf32> -> vector<4x16x8xf32>
    %195 = vector.extract_strided_slice %176 {offsets = [0, 64], sizes = [16, 8], strides = [1, 1]} : vector<16x96xf32> to vector<16x8xf32>
    %196 = vector.extract_strided_slice %176 {offsets = [0, 72], sizes = [16, 8], strides = [1, 1]} : vector<16x96xf32> to vector<16x8xf32>
    %197 = vector.extract_strided_slice %176 {offsets = [0, 80], sizes = [16, 8], strides = [1, 1]} : vector<16x96xf32> to vector<16x8xf32>
    %198 = vector.extract_strided_slice %176 {offsets = [0, 88], sizes = [16, 8], strides = [1, 1]} : vector<16x96xf32> to vector<16x8xf32>
    %199 = vector.shape_cast %195 : vector<16x8xf32> to vector<1x16x8xf32>
    %200 = vector.shape_cast %196 : vector<16x8xf32> to vector<1x16x8xf32>
    %201 = vector.shape_cast %197 : vector<16x8xf32> to vector<1x16x8xf32>
    %202 = vector.shape_cast %198 : vector<16x8xf32> to vector<1x16x8xf32>
    %203 = tpu.concatenate %199, %200, %201, %202 in 0 : vector<1x16x8xf32>, vector<1x16x8xf32>, vector<1x16x8xf32>, vector<1x16x8xf32> -> vector<4x16x8xf32>
    "tpu.trace_start"() <{level = 10 : i32, message = "hqd,hkd->hqk"}> : () -> ()
    %cst_92 = arith.constant dense<0.000000e+00> : vector<4x16x16xf32>
    %204 = tpu.matmul %185, %194, %cst_92 {dimension_numbers = #tpu.dot_dimension_numbers<[2], [2], [1], [1], [0, 0, 0, 1, 1, 1], [0], [0]>} : vector<4x16x8xf32>, vector<4x16x8xf32>, vector<4x16x16xf32> -> vector<4x16x16xf32>
    "tpu.trace_stop"() : () -> ()
    %205 = vector.shape_cast %2 : vector<16x16xi1> to vector<1x16x16xi1>
    %cst_93 = arith.constant -1.000000e+10 : f32
    %206 = vector.shape_cast %205 : vector<1x16x16xi1> to vector<1x16x16xi1>
    %207 = vector.broadcast %206 : vector<1x16x16xi1> to vector<4x16x16xi1>
    %208 = vector.broadcast %cst_93 : f32 to vector<4x16x16xf32>
    %209 = arith.select %207, %204, %208 : vector<4x16x16xi1>, vector<4x16x16xf32>
    %cst_94 = arith.constant dense<0xFF800000> : vector<4x16xf32>
    %210 = vector.multi_reduction <maximumf>, %209, %cst_94 [2] : vector<4x16x16xf32> to vector<4x16xf32>
    %211 = vector.shape_cast %210 : vector<4x16xf32> to vector<4x16x1xf32>
    %212 = vector.broadcast %211 : vector<4x16x1xf32> to vector<4x16x16xf32>
    %213 = arith.subf %209, %212 : vector<4x16x16xf32>
    %214 = math.exp %213 : vector<4x16x16xf32>
    %cst_95 = arith.constant dense<0.000000e+00> : vector<4x16xf32>
    %215 = vector.multi_reduction <add>, %214, %cst_95 [2] : vector<4x16x16xf32> to vector<4x16xf32>
    %216 = vector.shape_cast %215 : vector<4x16xf32> to vector<4x16x1xf32>
    %217 = tpu.reciprocal %216 {approx = true} : vector<4x16x1xf32> -> vector<4x16x1xf32>
    %218 = vector.broadcast %217 : vector<4x16x1xf32> to vector<4x16x16xf32>
    %219 = arith.mulf %214, %218 : vector<4x16x16xf32>
    "tpu.trace_start"() <{level = 10 : i32, message = "hqk,hkd->hqd"}> : () -> ()
    %cst_96 = arith.constant dense<0.000000e+00> : vector<4x16x8xf32>
    %220 = tpu.matmul %219, %203, %cst_96 {dimension_numbers = #tpu.dot_dimension_numbers<[2], [1], [1], [2], [0, 0, 0, 1, 1, 2], [0], [0]>} : vector<4x16x16xf32>, vector<4x16x8xf32>, vector<4x16x8xf32> -> vector<4x16x8xf32>
    "tpu.trace_stop"() : () -> ()
    %221 = vector.extract_strided_slice %220 {offsets = [0, 0, 0], sizes = [1, 16, 8], strides = [1, 1, 1]} : vector<4x16x8xf32> to vector<1x16x8xf32>
    %222 = vector.shape_cast %221 : vector<1x16x8xf32> to vector<16x8xf32>
    %223 = vector.extract_strided_slice %153 {offsets = [0, 0], sizes = [8, 32], strides = [1, 1]} : vector<32x32xf32> to vector<8x32xf32>
    %cst_97 = arith.constant dense<0.000000e+00> : vector<16x32xf32>
    %224 = tpu.matmul %222, %223, %cst_97 {dimension_numbers = #tpu.dot_dimension_numbers<[1], [0], [0], [1], [0, 0, 1, 1], [], []>} : vector<16x8xf32>, vector<8x32xf32>, vector<16x32xf32> -> vector<16x32xf32>
    %225 = vector.extract_strided_slice %220 {offsets = [1, 0, 0], sizes = [1, 16, 8], strides = [1, 1, 1]} : vector<4x16x8xf32> to vector<1x16x8xf32>
    %226 = vector.shape_cast %225 : vector<1x16x8xf32> to vector<16x8xf32>
    %227 = vector.extract_strided_slice %153 {offsets = [8, 0], sizes = [8, 32], strides = [1, 1]} : vector<32x32xf32> to vector<8x32xf32>
    %cst_98 = arith.constant dense<0.000000e+00> : vector<16x32xf32>
    %228 = tpu.matmul %226, %227, %cst_98 {dimension_numbers = #tpu.dot_dimension_numbers<[1], [0], [0], [1], [0, 0, 1, 1], [], []>} : vector<16x8xf32>, vector<8x32xf32>, vector<16x32xf32> -> vector<16x32xf32>
    %229 = arith.addf %224, %228 : vector<16x32xf32>
    %230 = vector.extract_strided_slice %220 {offsets = [2, 0, 0], sizes = [1, 16, 8], strides = [1, 1, 1]} : vector<4x16x8xf32> to vector<1x16x8xf32>
    %231 = vector.shape_cast %230 : vector<1x16x8xf32> to vector<16x8xf32>
    %232 = vector.extract_strided_slice %153 {offsets = [16, 0], sizes = [8, 32], strides = [1, 1]} : vector<32x32xf32> to vector<8x32xf32>
    %cst_99 = arith.constant dense<0.000000e+00> : vector<16x32xf32>
    %233 = tpu.matmul %231, %232, %cst_99 {dimension_numbers = #tpu.dot_dimension_numbers<[1], [0], [0], [1], [0, 0, 1, 1], [], []>} : vector<16x8xf32>, vector<8x32xf32>, vector<16x32xf32> -> vector<16x32xf32>
    %234 = arith.addf %229, %233 : vector<16x32xf32>
    %235 = vector.extract_strided_slice %220 {offsets = [3, 0, 0], sizes = [1, 16, 8], strides = [1, 1, 1]} : vector<4x16x8xf32> to vector<1x16x8xf32>
    %236 = vector.shape_cast %235 : vector<1x16x8xf32> to vector<16x8xf32>
    %237 = vector.extract_strided_slice %153 {offsets = [24, 0], sizes = [8, 32], strides = [1, 1]} : vector<32x32xf32> to vector<8x32xf32>
    %cst_100 = arith.constant dense<0.000000e+00> : vector<16x32xf32>
    %238 = tpu.matmul %236, %237, %cst_100 {dimension_numbers = #tpu.dot_dimension_numbers<[1], [0], [0], [1], [0, 0, 1, 1], [], []>} : vector<16x8xf32>, vector<8x32xf32>, vector<16x32xf32> -> vector<16x32xf32>
    %239 = arith.addf %234, %238 : vector<16x32xf32>
    %240 = vector.broadcast %161 : vector<1x32xf32> to vector<16x32xf32>
    %241 = arith.addf %239, %240 : vector<16x32xf32>
    %242 = arith.addf %149, %241 : vector<16x32xf32>
    %cst_101 = arith.constant dense<0.000000e+00> : vector<16xf32>
    %243 = vector.multi_reduction <add>, %242, %cst_101 [1] : vector<16x32xf32> to vector<16xf32>
    %244 = vector.shape_cast %243 : vector<16xf32> to vector<16x1xf32>
    %cst_102 = arith.constant 3.200000e+01 : f32
    %245 = vector.broadcast %cst_102 : f32 to vector<16x1xf32>
    %246 = arith.divf %244, %245 : vector<16x1xf32>
    %247 = vector.broadcast %246 : vector<16x1xf32> to vector<16x32xf32>
    %248 = arith.subf %242, %247 : vector<16x32xf32>
    %249 = arith.mulf %248, %248 : vector<16x32xf32>
    %cst_103 = arith.constant dense<0.000000e+00> : vector<16xf32>
    %250 = vector.multi_reduction <add>, %249, %cst_103 [1] : vector<16x32xf32> to vector<16xf32>
    %251 = vector.shape_cast %250 : vector<16xf32> to vector<16x1xf32>
    %cst_104 = arith.constant 3.200000e+01 : f32
    %252 = vector.broadcast %cst_104 : f32 to vector<16x1xf32>
    %253 = arith.divf %251, %252 : vector<16x1xf32>
    %254 = vector.broadcast %246 : vector<16x1xf32> to vector<16x32xf32>
    %255 = arith.subf %242, %254 : vector<16x32xf32>
    %cst_105 = arith.constant 9.99999974E-6 : f32
    %256 = vector.broadcast %cst_105 : f32 to vector<16x1xf32>
    %257 = arith.addf %253, %256 : vector<16x1xf32>
    %258 = math.rsqrt %257 : vector<16x1xf32>
    %259 = vector.broadcast %258 : vector<16x1xf32> to vector<16x32xf32>
    %260 = arith.mulf %255, %259 : vector<16x32xf32>
    %261 = vector.broadcast %163 : vector<1x32xf32> to vector<16x32xf32>
    %262 = arith.mulf %260, %261 : vector<16x32xf32>
    %263 = vector.broadcast %165 : vector<1x32xf32> to vector<16x32xf32>
    %264 = arith.addf %262, %263 : vector<16x32xf32>
    %cst_106 = arith.constant dense<0.000000e+00> : vector<16x64xf32>
    %265 = tpu.matmul %264, %155, %cst_106 {dimension_numbers = #tpu.dot_dimension_numbers<[1], [0], [0], [1], [0, 0, 1, 1], [], []>} : vector<16x32xf32>, vector<32x64xf32>, vector<16x64xf32> -> vector<16x64xf32>
    %266 = vector.broadcast %167 : vector<1x64xf32> to vector<16x64xf32>
    %267 = arith.addf %265, %266 : vector<16x64xf32>
    %cst_107 = arith.constant 0.000000e+00 : f32
    %268 = vector.broadcast %cst_107 : f32 to vector<16x64xf32>
    %269 = arith.maximumf %267, %268 : vector<16x64xf32>
    %cst_108 = arith.constant dense<0.000000e+00> : vector<16x32xf32>
    %270 = tpu.matmul %269, %157, %cst_108 {dimension_numbers = #tpu.dot_dimension_numbers<[1], [0], [0], [1], [0, 0, 1, 1], [], []>} : vector<16x64xf32>, vector<64x32xf32>, vector<16x32xf32> -> vector<16x32xf32>
    %271 = vector.broadcast %169 : vector<1x32xf32> to vector<16x32xf32>
    %272 = arith.addf %270, %271 : vector<16x32xf32>
    %273 = arith.addf %264, %272 : vector<16x32xf32>
    %cst_109 = arith.constant dense<0.000000e+00> : vector<16xf32>
    %274 = vector.multi_reduction <add>, %273, %cst_109 [1] : vector<16x32xf32> to vector<16xf32>
    %275 = vector.shape_cast %274 : vector<16xf32> to vector<16x1xf32>
    %cst_110 = arith.constant 3.200000e+01 : f32
    %276 = vector.broadcast %cst_110 : f32 to vector<16x1xf32>
    %277 = arith.divf %275, %276 : vector<16x1xf32>
    %278 = vector.broadcast %277 : vector<16x1xf32> to vector<16x32xf32>
    %279 = arith.subf %273, %278 : vector<16x32xf32>
    %280 = arith.mulf %279, %279 : vector<16x32xf32>
    %cst_111 = arith.constant dense<0.000000e+00> : vector<16xf32>
    %281 = vector.multi_reduction <add>, %280, %cst_111 [1] : vector<16x32xf32> to vector<16xf32>
    %282 = vector.shape_cast %281 : vector<16xf32> to vector<16x1xf32>
    %cst_112 = arith.constant 3.200000e+01 : f32
    %283 = vector.broadcast %cst_112 : f32 to vector<16x1xf32>
    %284 = arith.divf %282, %283 : vector<16x1xf32>
    %285 = vector.broadcast %277 : vector<16x1xf32> to vector<16x32xf32>
    %286 = arith.subf %273, %285 : vector<16x32xf32>
    %cst_113 = arith.constant 9.99999974E-6 : f32
    %287 = vector.broadcast %cst_113 : f32 to vector<16x1xf32>
    %288 = arith.addf %284, %287 : vector<16x1xf32>
    %289 = math.rsqrt %288 : vector<16x1xf32>
    %290 = vector.broadcast %289 : vector<16x1xf32> to vector<16x32xf32>
    %291 = arith.mulf %286, %290 : vector<16x32xf32>
    %292 = vector.broadcast %171 : vector<1x32xf32> to vector<16x32xf32>
    %293 = arith.mulf %291, %292 : vector<16x32xf32>
    %294 = vector.broadcast %173 : vector<1x32xf32> to vector<16x32xf32>
    %295 = arith.addf %293, %294 : vector<16x32xf32>
    %c0_114 = arith.constant 0 : index
    %c0_115 = arith.constant 0 : index
    %296 = vector.load %arg8[%c0_114, %c0_115] : memref<16x32xf32, #tpu.memory_space<vmem>>, vector<16x32xf32>
    tpu.vector_store %arg8[%c0_114, %c0_115], %295 {strides = array<i32>} : memref<16x32xf32, #tpu.memory_space<vmem>>, vector<16x32xf32>,
    return
  }
  func.func @transform_0(%arg0: i32) -> (i32, i32) {
    %c0_i32 = arith.constant 0 : i32
    %c0_i32_0 = arith.constant 0 : i32
    %c0_i32_1 = arith.constant 0 : i32
    return %c0_i32, %c0_i32_0 : i32, i32
  }
  func.func @transform_1(%arg0: i32) -> (i32, i32) {
    %c0_i32 = arith.constant 0 : i32
    %c0_i32_0 = arith.constant 0 : i32
    %c0_i32_1 = arith.constant 0 : i32
    return %c0_i32, %c0_i32_0 : i32, i32
  }
  func.func @transform_2(%arg0: i32) -> (i32, i32, i32) {
    %c0_i32 = arith.constant 0 : i32
    %c0_i32_0 = arith.constant 0 : i32
    %c0_i32_1 = arith.constant 0 : i32
    %c0_i32_2 = arith.constant 0 : i32
    return %c0_i32, %c0_i32_0, %c0_i32_1 : i32, i32, i32
  }
  func.func @transform_3(%arg0: i32) -> (i32, i32, i32) {
    %c0_i32 = arith.constant 0 : i32
    %c0_i32_0 = arith.constant 0 : i32
    %c0_i32_1 = arith.constant 0 : i32
    %c0_i32_2 = arith.constant 0 : i32
    return %c0_i32, %c0_i32_0, %c0_i32_1 : i32, i32, i32
  }
  func.func @transform_4(%arg0: i32) -> (i32, i32, i32) {
    %c0_i32 = arith.constant 0 : i32
    %c0_i32_0 = arith.constant 0 : i32
    %c0_i32_1 = arith.constant 0 : i32
    %c0_i32_2 = arith.constant 0 : i32
    return %c0_i32, %c0_i32_0, %c0_i32_1 : i32, i32, i32
  }
  func.func @transform_5(%arg0: i32) -> (i32, i32, i32) {
    %c0_i32 = arith.constant 0 : i32
    %c0_i32_0 = arith.constant 0 : i32
    %c0_i32_1 = arith.constant 0 : i32
    %c0_i32_2 = arith.constant 0 : i32
    return %c0_i32, %c0_i32_0, %c0_i32_1 : i32, i32, i32
  }
  func.func @transform_6(%arg0: i32) -> (i32, i32, i32) {
    %c0_i32 = arith.constant 0 : i32
    %c0_i32_0 = arith.constant 0 : i32
    %c0_i32_1 = arith.constant 0 : i32
    %c0_i32_2 = arith.constant 0 : i32
    return %c0_i32, %c0_i32_0, %c0_i32_1 : i32, i32, i32
  }
  func.func @transform_7(%arg0: i32) -> (i32, i32) {
    %c0_i32 = arith.constant 0 : i32
    %c0_i32_0 = arith.constant 0 : i32
    %c0_i32_1 = arith.constant 0 : i32
    return %c0_i32, %c0_i32_0 : i32, i32
  }
}

</mosaic_0001>

<llo_original>
// kernel: encoder_forward.1
$region0: #{encoder_forward.1}
  #allocation0 [shape = 'u32[]', space=smem, size = 0x4, offset = 0x4, fixed_abs, tag = 'smem constant byte address 0x4 - core index']
  #allocation1 [shape = 'u32[144,128]{1,0:T(1,128)}', space=vmem, size = 0x12000, scoped, tag = 'internal scratch']
  %s0 = inlined_call_operand.vmem [shape: f32[16,16], index: 0, kind: input, shape index: {}]
  %s1 = inlined_call_operand.vmem [shape: f32[16,32], index: 1, kind: input, shape index: {}]
  %s2 = inlined_call_operand.vmem [shape: f32[2,32,96], index: 2, kind: input, shape index: {}]
  %s3 = inlined_call_operand.vmem [shape: f32[2,32,32], index: 3, kind: input, shape index: {}]
  %s4 = inlined_call_operand.vmem [shape: f32[2,32,64], index: 4, kind: input, shape index: {}]
  %s5 = inlined_call_operand.vmem [shape: f32[2,64,32], index: 5, kind: input, shape index: {}]
  %s6 = inlined_call_operand.vmem [shape: f32[2,8,128], index: 6, kind: input, shape index: {}]
  %s7 = inlined_call_operand.hbm [shape: f32[16,32], index: 7, kind: output, shape index: {}]
  %s8 = sld [smem:[#allocation0]]
  $region38: #{encoder_forward.1} parent=0
    _
  %s10 = ssub.s32 1, %s8
  %s11 = scalar_select 0, %s10, %s8
  $region1: #{encoder_forward.1} parent=0
    #allocation2 [shape = 'u8[8192]{0}', space=vmem, size = 0x2000, scoped, tag = 'output window, operand 0, single buffered']
    #allocation3 [shape = 's32[1]{0}', space=sflag, size = 0x4, scoped, tag = 'scoped memory for encoder_forward.1']
    %12 = vsyncpa [#allocation3], 0
    // Predicated region
    $region2: #{encoder_forward.1} parent=1 // pred_check
      _
    $region3: #{encoder_forward.1} parent=1 // pred_check_branch
      %14 = sbr.rel (0) target = $region5
    $region4: #{encoder_forward.1} parent=1 // pred_region
      _
    $region5: #{encoder_forward.1} parent=1 // pred_fallthru
      _
    // Predicated region
    $region6: #{encoder_forward.1} parent=1 // pred_check
      _
    $region7: #{encoder_forward.1} parent=1 // pred_check_branch
      %16 = sbr.rel (0) target = $region9
    $region8: #{encoder_forward.1} parent=1 // pred_region
      _
    $region9: #{encoder_forward.1} parent=1 // pred_fallthru
      _
    // Predicated region
    $region10: #{encoder_forward.1} parent=1 // pred_check
      _
    $region11: #{encoder_forward.1} parent=1 // pred_check_branch
      %18 = sbr.rel (0) target = $region13
    $region12: #{encoder_forward.1} parent=1 // pred_region
      _
    $region13: #{encoder_forward.1} parent=1 // pred_fallthru
      _
    // Predicated region
    $region14: #{encoder_forward.1} parent=1 // pred_check
      _
    $region15: #{encoder_forward.1} parent=1 // pred_check_branch
      %20 = sbr.rel (0) target = $region17
    $region16: #{encoder_forward.1} parent=1 // pred_region
      _
    $region17: #{encoder_forward.1} parent=1 // pred_fallthru
      _
    // Predicated region
    $region18: #{encoder_forward.1} parent=1 // pred_check
      _
    $region19: #{encoder_forward.1} parent=1 // pred_check_branch
      %22 = sbr.rel (0) target = $region21
    $region20: #{encoder_forward.1} parent=1 // pred_region
      _
    $region21: #{encoder_forward.1} parent=1 // pred_fallthru
      _
    // Predicated region
    $region22: #{encoder_forward.1} parent=1 // pred_check
      _
    $region23: #{encoder_forward.1} parent=1 // pred_check_branch
      %24 = sbr.rel (0) target = $region25
    $region24: #{encoder_forward.1} parent=1 // pred_region
      _
    $region25: #{encoder_forward.1} parent=1 // pred_fallthru
      _
    // Predicated region
    $region26: #{encoder_forward.1} parent=1 // pred_check
      _
    $region27: #{encoder_forward.1} parent=1 // pred_check_branch
      %26 = sbr.rel (0) target = $region29
    $region28: #{encoder_forward.1} parent=1 // pred_region
      _
    $region29: #{encoder_forward.1} parent=1 // pred_fallthru
      _
    %v27 = vld [vmem:[%s0] sm:$0xff]
    %v28 = vld [vmem:[%s0 + $0x8] sm:$0xff]
    %vm29 = vcmp.gt.f32.partialorder %v27, 0.0
    %vm30 = vcmp.gt.f32.partialorder %v28, 0.0
    %v31 = vld [vmem:[%s1] sm:$0xff]
    %v32 = vld [vmem:[%s1 + $0x8] sm:$0xff]
    %v33 = vld [vmem:[%s2] sm:$0xff]
    %v34 = vld [vmem:[%s2 + $0x8] sm:$0xff]
    %v35 = vld [vmem:[%s2 + $0x10] sm:$0xff]
    %v36 = vld [vmem:[%s2 + $0x18] sm:$0xff]
    %v37 = vld [vmem:[%s3] sm:$0xff]
    %v38 = vld [vmem:[%s3 + $0x8] sm:$0xff]
    %v39 = vld [vmem:[%s3 + $0x10] sm:$0xff]
    %v40 = vld [vmem:[%s3 + $0x18] sm:$0xff]
    %v41 = vld [vmem:[%s4] sm:$0xff]
    %v42 = vld [vmem:[%s4 + $0x8] sm:$0xff]
    %v43 = vld [vmem:[%s4 + $0x10] sm:$0xff]
    %v44 = vld [vmem:[%s4 + $0x18] sm:$0xff]
    %v45 = vld [vmem:[%s5] sm:$0xff]
    %v46 = vld [vmem:[%s5 + $0x8] sm:$0xff]
    %v47 = vld [vmem:[%s5 + $0x10] sm:$0xff]
    %v48 = vld [vmem:[%s5 + $0x18] sm:$0xff]
    %v49 = vld [vmem:[%s5 + $0x20] sm:$0xff]
    %v50 = vld [vmem:[%s5 + $0x28] sm:$0xff]
    %v51 = vld [vmem:[%s5 + $0x30] sm:$0xff]
    %v52 = vld [vmem:[%s5 + $0x38] sm:$0xff]
    %v53 = vld [vmem:[%s6] sm:$0x1]
    %v54 = vld [vmem:[%s6 + $0x1] sm:$0x1]
    %v55 = vld [vmem:[%s6 + $0x2] sm:$0x1]
    %v56 = vld [vmem:[%s6 + $0x3] sm:$0x1]
    %v57 = vld [vmem:[%s6 + $0x4] sm:$0x1]
    %v58 = vld [vmem:[%s6 + $0x5] sm:$0x1]
    %v59 = vld [vmem:[%s6 + $0x6] sm:$0x1]
    %v60 = vld [vmem:[%s6 + $0x7] sm:$0x1]
    %v61 = vlaneseq
    %v62 = vshrl.u32 %v61, 7
    %v63 = vsub.s32 0, %v62
    %v64 = vrot.slane %v53, %v63
    %vm65 = vcmask 261120
    %v67 = vsel %vm65, %v31, 0
    %v70 = vsel %vm65, %v32, 0
    %72 = vmatprep.subr.mxu0 0.0
    %73 = vmatpush1.msra.mxu0 0.0
    %74 = vmatprep.subr.mxu0 0.0
    %75 = vmatpush1.msra.mxu0 0.0
    %76 = vmatprep.subr.mxu0 0.0
    %77 = vmatpush1.msra.mxu0 0.0
    %78 = vmatprep.subr.mxu0 0.0
    %79 = vmatpush1.msra.mxu0 0.0
    %80 = vmatprep.subr.mxu0 0.0
    %81 = vmatpush1.msra.mxu0 0.0
    %82 = vmatprep.subr.mxu0 0.0
    %83 = vmatpush1.msra.mxu0 0.0
    %84 = vmatprep.subr.mxu0 0.0
    %85 = vmatpush1.msra.mxu0 0.0
    %86 = vmatprep.subr.mxu0 0.0
    %87 = vmatpush1.msra.mxu0 0.0
    %88 = vmatprep.subr.mxu0 0.0
    %89 = vmatpush1.msra.mxu0 0.0
    %90 = vmatprep.subr.mxu0 0.0
    %91 = vmatpush1.msra.mxu0 0.0
    %92 = vmatprep.subr.mxu0 0.0
    %93 = vmatpush1.msra.mxu0 0.0
    %94 = vmatprep.subr.mxu0 0.0
    %95 = vmatpush1.msra.mxu0 0.0
    %96 = vmatprep.subr.mxu0 0.0
    %97 = vmatpush1.msra.mxu0 %v36
    %98 = vmatprep.subr.mxu0 0.0
    %99 = vmatpush1.msra.mxu0 %v35
    %100 = vmatprep.subr.mxu0 0.0
    %101 = vmatpush1.msra.mxu0 %v34
    %102 = vmatprep.subr.mxu0 0.0
    %103 = vmatpush1.msra.mxu0 %v33
    %104 = vmatprep.subr.mxu0 0.0
    %105 = vmatpush2.msra.mxu0 0.0
    %106 = vmatprep.subr.mxu0 0.0
    %107 = vmatpush2.msra.mxu0 0.0
    %108 = vmatprep.subr.mxu0 0.0
    %109 = vmatpush2.msra.mxu0 0.0
    %110 = vmatprep.subr.mxu0 0.0
    %111 = vmatpush2.msra.mxu0 0.0
    %112 = vmatprep.subr.mxu0 0.0
    %113 = vmatpush2.msra.mxu0 0.0
    %114 = vmatprep.subr.mxu0 0.0
    %115 = vmatpush2.msra.mxu0 0.0
    %116 = vmatprep.subr.mxu0 0.0
    %117 = vmatpush2.msra.mxu0 0.0
    %118 = vmatprep.subr.mxu0 0.0
    %119 = vmatpush2.msra.mxu0 0.0
    %120 = vmatprep.subr.mxu0 0.0
    %121 = vmatpush2.msra.mxu0 0.0
    %122 = vmatprep.subr.mxu0 0.0
    %123 = vmatpush2.msra.mxu0 0.0
    %124 = vmatprep.subr.mxu0 0.0
    %125 = vmatpush2.msra.mxu0 0.0
    %126 = vmatprep.subr.mxu0 0.0
    %127 = vmatpush2.msra.mxu0 0.0
    %128 = vmatprep.subr.mxu0 0.0
    %129 = vmatpush2.msra.mxu0 0.0
    %130 = vmatprep.subr.mxu0 0.0
    %131 = vmatpush2.msra.mxu0 0.0
    %132 = vmatprep.subr.mxu0 0.0
    %133 = vmatpush2.msra.mxu0 0.0
    %134 = vmatprep.subr.mxu0 0.0
    %135 = vmatpush2.msra.mxu0 0.0
    %136 = vmatprep.mubr.f32.mxu0 0.0
    %137 = vmatmul.mubr.f32.gmra.mxu0 %v67
    %v138 = vpop.f32.mrf.mxu0
    %v139 = vadd.f32 %v64, %v138
    %v140 = vpop.f32.mrf.mxu0
    %141 = vmatprep.mubr.f32.mxu0 0.0
    %142 = vmatmul.mubr.f32.gmra.mxu0 %v70
    %v143 = vpop.f32.mrf.mxu0
    %v144 = vadd.f32 %v64, %v143
    %v145 = vpop.f32.mrf.mxu0
    %146 = vdwg.mxu0
    %149 = vrot.lane.b32.xlu0 %v139, 120
    %v150 = vpop.permute.xlu0 %149
    %151 = vrot.lane.b32.xlu0 %v144, 120
    %v152 = vpop.permute.xlu0 %151
    %153 = vrot.lane.b32.xlu0 %v139, 112
    %v154 = vpop.permute.xlu0 %153
    %155 = vrot.lane.b32.xlu0 %v144, 112
    %v156 = vpop.permute.xlu0 %155
    %157 = vrot.lane.b32.xlu0 %v139, 104
    %v158 = vpop.permute.xlu0 %157
    %159 = vrot.lane.b32.xlu0 %v144, 104
    %v160 = vpop.permute.xlu0 %159
    %161 = vrot.lane.b32.xlu0 %v139, 96
    %v162 = vpop.permute.xlu0 %161
    %163 = vrot.lane.b32.xlu0 %v144, 96
    %v164 = vpop.permute.xlu0 %163
    %vm165 = vcmask 64512
    %v166 = vsel %vm165, %v139, 0
    %v168 = vsel %vm165, %v144, 0
    %v170 = vsel %vm165, %v162, 0
    %v172 = vsel %vm165, %v164, 0
    %174 = vmatprep.subr.mxu0 0.0
    %175 = vmatpush1.xpose.msra.mxu0 0.0
    %176 = vmatprep.subr.mxu0 0.0
    %177 = vmatpush1.xpose.msra.mxu0 0.0
    %178 = vmatprep.subr.mxu0 0.0
    %179 = vmatpush1.xpose.msra.mxu0 0.0
    %180 = vmatprep.subr.mxu0 0.0
    %181 = vmatpush1.xpose.msra.mxu0 0.0
    %182 = vmatprep.subr.mxu0 0.0
    %183 = vmatpush1.xpose.msra.mxu0 0.0
    %184 = vmatprep.subr.mxu0 0.0
    %185 = vmatpush1.xpose.msra.mxu0 0.0
    %186 = vmatprep.subr.mxu0 0.0
    %187 = vmatpush1.xpose.msra.mxu0 0.0
    %188 = vmatprep.subr.mxu0 0.0
    %189 = vmatpush1.xpose.msra.mxu0 0.0
    %190 = vmatprep.subr.mxu0 0.0
    %191 = vmatpush1.xpose.msra.mxu0 0.0
    %192 = vmatprep.subr.mxu0 0.0
    %193 = vmatpush1.xpose.msra.mxu0 0.0
    %194 = vmatprep.subr.mxu0 0.0
    %195 = vmatpush1.xpose.msra.mxu0 0.0
    %196 = vmatprep.subr.mxu0 0.0
    %197 = vmatpush1.xpose.msra.mxu0 0.0
    %198 = vmatprep.subr.mxu0 0.0
    %199 = vmatpush1.xpose.msra.mxu0 0.0
    %200 = vmatprep.subr.mxu0 0.0
    %201 = vmatpush1.xpose.msra.mxu0 0.0
    %202 = vmatprep.subr.mxu0 0.0
    %203 = vmatpush1.xpose.msra.mxu0 %v172
    %204 = vmatprep.subr.mxu0 0.0
    %205 = vmatpush1.xpose.msra.mxu0 %v170
    %206 = vmatprep.subr.mxu0 0.0
    %207 = vmatpush2.xpose.msra.mxu0 0.0
    %208 = vmatprep.subr.mxu0 0.0
    %209 = vmatpush2.xpose.msra.mxu0 0.0
    %210 = vmatprep.subr.mxu0 0.0
    %211 = vmatpush2.xpose.msra.mxu0 0.0
    %212 = vmatprep.subr.mxu0 0.0
    %213 = vmatpush2.xpose.msra.mxu0 0.0
    %214 = vmatprep.subr.mxu0 0.0
    %215 = vmatpush2.xpose.msra.mxu0 0.0
    %216 = vmatprep.subr.mxu0 0.0
    %217 = vmatpush2.xpose.msra.mxu0 0.0
    %218 = vmatprep.subr.mxu0 0.0
    %219 = vmatpush2.xpose.msra.mxu0 0.0
    %220 = vmatprep.subr.mxu0 0.0
    %221 = vmatpush2.xpose.msra.mxu0 0.0
    %222 = vmatprep.subr.mxu0 0.0
    %223 = vmatpush2.xpose.msra.mxu0 0.0
    %224 = vmatprep.subr.mxu0 0.0
    %225 = vmatpush2.xpose.msra.mxu0 0.0
    %226 = vmatprep.subr.mxu0 0.0
    %227 = vmatpush2.xpose.msra.mxu0 0.0
    %228 = vmatprep.subr.mxu0 0.0
    %229 = vmatpush2.xpose.msra.mxu0 0.0
    %230 = vmatprep.subr.mxu0 0.0
    %231 = vmatpush2.xpose.msra.mxu0 0.0
    %232 = vmatprep.subr.mxu0 0.0
    %233 = vmatpush2.xpose.msra.mxu0 0.0
    %234 = vmatprep.subr.mxu0 0.0
    %235 = vmatpush2.xpose.msra.mxu0 0.0
    %236 = vmatprep.subr.mxu0 0.0
    %237 = vmatpush2.xpose.msra.mxu0 0.0
    %238 = vmatprep.mubr.f32.mxu0 0.0
    %239 = vmatmul.mubr.f32.gmra.mxu0 %v166
    %v240 = vpop.f32.mrf.mxu0
    %v241 = vadd.f32 0.0, %v240
    %v242 = vpop.f32.mrf.mxu0
    %243 = vmatprep.mubr.f32.mxu0 0.0
    %244 = vmatmul.mubr.f32.gmra.mxu0 %v168
    %v245 = vpop.f32.mrf.mxu0
    %v246 = vadd.f32 0.0, %v245
    %v247 = vpop.f32.mrf.mxu0
    %248 = vdwg.mxu0
    %249 = vrot.lane.b32.xlu0 %v150, 96
    %v250 = vpop.permute.xlu0 %249
    %251 = vrot.lane.b32.xlu0 %v152, 96
    %v252 = vpop.permute.xlu0 %251
    %v253 = vsel %vm165, %v150, 0
    %v255 = vsel %vm165, %v152, 0
    %v257 = vsel %vm165, %v250, 0
    %v259 = vsel %vm165, %v252, 0
    %261 = vmatprep.subr.mxu0 0.0
    %262 = vmatpush1.xpose.msra.mxu0 0.0
    %263 = vmatprep.subr.mxu0 0.0
    %264 = vmatpush1.xpose.msra.mxu0 0.0
    %265 = vmatprep.subr.mxu0 0.0
    %266 = vmatpush1.xpose.msra.mxu0 0.0
    %267 = vmatprep.subr.mxu0 0.0
    %268 = vmatpush1.xpose.msra.mxu0 0.0
    %269 = vmatprep.subr.mxu0 0.0
    %270 = vmatpush1.xpose.msra.mxu0 0.0
    %271 = vmatprep.subr.mxu0 0.0
    %272 = vmatpush1.xpose.msra.mxu0 0.0
    %273 = vmatprep.subr.mxu0 0.0
    %274 = vmatpush1.xpose.msra.mxu0 0.0
    %275 = vmatprep.subr.mxu0 0.0
    %276 = vmatpush1.xpose.msra.mxu0 0.0
    %277 = vmatprep.subr.mxu0 0.0
    %278 = vmatpush1.xpose.msra.mxu0 0.0
    %279 = vmatprep.subr.mxu0 0.0
    %280 = vmatpush1.xpose.msra.mxu0 0.0
    %281 = vmatprep.subr.mxu0 0.0
    %282 = vmatpush1.xpose.msra.mxu0 0.0
    %283 = vmatprep.subr.mxu0 0.0
    %284 = vmatpush1.xpose.msra.mxu0 0.0
    %285 = vmatprep.subr.mxu0 0.0
    %286 = vmatpush1.xpose.msra.mxu0 0.0
    %287 = vmatprep.subr.mxu0 0.0
    %288 = vmatpush1.xpose.msra.mxu0 0.0
    %289 = vmatprep.subr.mxu0 0.0
    %290 = vmatpush1.xpose.msra.mxu0 %v259
    %291 = vmatprep.subr.mxu0 0.0
    %292 = vmatpush1.xpose.msra.mxu0 %v257
    %293 = vmatprep.subr.mxu0 0.0
    %294 = vmatpush2.xpose.msra.mxu0 0.0
    %295 = vmatprep.subr.mxu0 0.0
    %296 = vmatpush2.xpose.msra.mxu0 0.0
    %297 = vmatprep.subr.mxu0 0.0
    %298 = vmatpush2.xpose.msra.mxu0 0.0
    %299 = vmatprep.subr.mxu0 0.0
    %300 = vmatpush2.xpose.msra.mxu0 0.0
    %301 = vmatprep.subr.mxu0 0.0
    %302 = vmatpush2.xpose.msra.mxu0 0.0
    %303 = vmatprep.subr.mxu0 0.0
    %304 = vmatpush2.xpose.msra.mxu0 0.0
    %305 = vmatprep.subr.mxu0 0.0
    %306 = vmatpush2.xpose.msra.mxu0 0.0
    %307 = vmatprep.subr.mxu0 0.0
    %308 = vmatpush2.xpose.msra.mxu0 0.0
    %309 = vmatprep.subr.mxu0 0.0
    %310 = vmatpush2.xpose.msra.mxu0 0.0
    %311 = vmatprep.subr.mxu0 0.0
    %312 = vmatpush2.xpose.msra.mxu0 0.0
    %313 = vmatprep.subr.mxu0 0.0
    %314 = vmatpush2.xpose.msra.mxu0 0.0
    %315 = vmatprep.subr.mxu0 0.0
    %316 = vmatpush2.xpose.msra.mxu0 0.0
    %317 = vmatprep.subr.mxu0 0.0
    %318 = vmatpush2.xpose.msra.mxu0 0.0
    %319 = vmatprep.subr.mxu0 0.0
    %320 = vmatpush2.xpose.msra.mxu0 0.0
    %321 = vmatprep.subr.mxu0 0.0
    %322 = vmatpush2.xpose.msra.mxu0 0.0
    %323 = vmatprep.subr.mxu0 0.0
    %324 = vmatpush2.xpose.msra.mxu0 0.0
    %325 = vmatprep.mubr.f32.mxu0 0.0
    %326 = vmatmul.mubr.f32.gmra.mxu0 %v253
    %v327 = vpop.f32.mrf.mxu0
    %v328 = vadd.f32 0.0, %v327
    %v329 = vpop.f32.mrf.mxu0
    %330 = vmatprep.mubr.f32.mxu0 0.0
    %331 = vmatmul.mubr.f32.gmra.mxu0 %v255
    %v332 = vpop.f32.mrf.mxu0
    %v333 = vadd.f32 0.0, %v332
    %v334 = vpop.f32.mrf.mxu0
    %335 = vdwg.mxu0
    %336 = vrot.lane.b32.xlu0 %v154, 96
    %v337 = vpop.permute.xlu0 %336
    %338 = vrot.lane.b32.xlu0 %v156, 96
    %v339 = vpop.permute.xlu0 %338
    %v340 = vsel %vm165, %v154, 0
    %v342 = vsel %vm165, %v156, 0
    %v344 = vsel %vm165, %v337, 0
    %v346 = vsel %vm165, %v339, 0
    %348 = vmatprep.subr.mxu0 0.0
    %349 = vmatpush1.xpose.msra.mxu0 0.0
    %350 = vmatprep.subr.mxu0 0.0
    %351 = vmatpush1.xpose.msra.mxu0 0.0
    %352 = vmatprep.subr.mxu0 0.0
    %353 = vmatpush1.xpose.msra.mxu0 0.0
    %354 = vmatprep.subr.mxu0 0.0
    %355 = vmatpush1.xpose.msra.mxu0 0.0
    %356 = vmatprep.subr.mxu0 0.0
    %357 = vmatpush1.xpose.msra.mxu0 0.0
    %358 = vmatprep.subr.mxu0 0.0
    %359 = vmatpush1.xpose.msra.mxu0 0.0
    %360 = vmatprep.subr.mxu0 0.0
    %361 = vmatpush1.xpose.msra.mxu0 0.0
    %362 = vmatprep.subr.mxu0 0.0
    %363 = vmatpush1.xpose.msra.mxu0 0.0
    %364 = vmatprep.subr.mxu0 0.0
    %365 = vmatpush1.xpose.msra.mxu0 0.0
    %366 = vmatprep.subr.mxu0 0.0
    %367 = vmatpush1.xpose.msra.mxu0 0.0
    %368 = vmatprep.subr.mxu0 0.0
    %369 = vmatpush1.xpose.msra.mxu0 0.0
    %370 = vmatprep.subr.mxu0 0.0
    %371 = vmatpush1.xpose.msra.mxu0 0.0
    %372 = vmatprep.subr.mxu0 0.0
    %373 = vmatpush1.xpose.msra.mxu0 0.0
    %374 = vmatprep.subr.mxu0 0.0
    %375 = vmatpush1.xpose.msra.mxu0 0.0
    %376 = vmatprep.subr.mxu0 0.0
    %377 = vmatpush1.xpose.msra.mxu0 %v346
    %378 = vmatprep.subr.mxu0 0.0
    %379 = vmatpush1.xpose.msra.mxu0 %v344
    %380 = vmatprep.subr.mxu0 0.0
    %381 = vmatpush2.xpose.msra.mxu0 0.0
    %382 = vmatprep.subr.mxu0 0.0
    %383 = vmatpush2.xpose.msra.mxu0 0.0
    %384 = vmatprep.subr.mxu0 0.0
    %385 = vmatpush2.xpose.msra.mxu0 0.0
    %386 = vmatprep.subr.mxu0 0.0
    %387 = vmatpush2.xpose.msra.mxu0 0.0
    %388 = vmatprep.subr.mxu0 0.0
    %389 = vmatpush2.xpose.msra.mxu0 0.0
    %390 = vmatprep.subr.mxu0 0.0
    %391 = vmatpush2.xpose.msra.mxu0 0.0
    %392 = vmatprep.subr.mxu0 0.0
    %393 = vmatpush2.xpose.msra.mxu0 0.0
    %394 = vmatprep.subr.mxu0 0.0
    %395 = vmatpush2.xpose.msra.mxu0 0.0
    %396 = vmatprep.subr.mxu0 0.0
    %397 = vmatpush2.xpose.msra.mxu0 0.0
    %398 = vmatprep.subr.mxu0 0.0
    %399 = vmatpush2.xpose.msra.mxu0 0.0
    %400 = vmatprep.subr.mxu0 0.0
    %401 = vmatpush2.xpose.msra.mxu0 0.0
    %402 = vmatprep.subr.mxu0 0.0
    %403 = vmatpush2.xpose.msra.mxu0 0.0
    %404 = vmatprep.subr.mxu0 0.0
    %405 = vmatpush2.xpose.msra.mxu0 0.0
    %406 = vmatprep.subr.mxu0 0.0
    %407 = vmatpush2.xpose.msra.mxu0 0.0
    %408 = vmatprep.subr.mxu0 0.0
    %409 = vmatpush2.xpose.msra.mxu0 0.0
    %410 = vmatprep.subr.mxu0 0.0
    %411 = vmatpush2.xpose.msra.mxu0 0.0
    %412 = vmatprep.mubr.f32.mxu0 0.0
    %413 = vmatmul.mubr.f32.gmra.mxu0 %v340
    %v414 = vpop.f32.mrf.mxu0
    %v415 = vadd.f32 0.0, %v414
    %v416 = vpop.f32.mrf.mxu0
    %417 = vmatprep.mubr.f32.mxu0 0.0
    %418 = vmatmul.mubr.f32.gmra.mxu0 %v342
    %v419 = vpop.f32.mrf.mxu0
    %v420 = vadd.f32 0.0, %v419
    %v421 = vpop.f32.mrf.mxu0
    %422 = vdwg.mxu0
    %423 = vrot.lane.b32.xlu0 %v158, 96
    %v424 = vpop.permute.xlu0 %423
    %425 = vrot.lane.b32.xlu0 %v160, 96
    %v426 = vpop.permute.xlu0 %425
    %v427 = vsel %vm165, %v158, 0
    %v429 = vsel %vm165, %v160, 0
    %v431 = vsel %vm165, %v424, 0
    %v433 = vsel %vm165, %v426, 0
    %435 = vmatprep.subr.mxu0 0.0
    %436 = vmatpush1.xpose.msra.mxu0 0.0
    %437 = vmatprep.subr.mxu0 0.0
    %438 = vmatpush1.xpose.msra.mxu0 0.0
    %439 = vmatprep.subr.mxu0 0.0
    %440 = vmatpush1.xpose.msra.mxu0 0.0
    %441 = vmatprep.subr.mxu0 0.0
    %442 = vmatpush1.xpose.msra.mxu0 0.0
    %443 = vmatprep.subr.mxu0 0.0
    %444 = vmatpush1.xpose.msra.mxu0 0.0
    %445 = vmatprep.subr.mxu0 0.0
    %446 = vmatpush1.xpose.msra.mxu0 0.0
    %447 = vmatprep.subr.mxu0 0.0
    %448 = vmatpush1.xpose.msra.mxu0 0.0
    %449 = vmatprep.subr.mxu0 0.0
    %450 = vmatpush1.xpose.msra.mxu0 0.0
    %451 = vmatprep.subr.mxu0 0.0
    %452 = vmatpush1.xpose.msra.mxu0 0.0
    %453 = vmatprep.subr.mxu0 0.0
    %454 = vmatpush1.xpose.msra.mxu0 0.0
    %455 = vmatprep.subr.mxu0 0.0
    %456 = vmatpush1.xpose.msra.mxu0 0.0
    %457 = vmatprep.subr.mxu0 0.0
    %458 = vmatpush1.xpose.msra.mxu0 0.0
    %459 = vmatprep.subr.mxu0 0.0
    %460 = vmatpush1.xpose.msra.mxu0 0.0
    %461 = vmatprep.subr.mxu0 0.0
    %462 = vmatpush1.xpose.msra.mxu0 0.0
    %463 = vmatprep.subr.mxu0 0.0
    %464 = vmatpush1.xpose.msra.mxu0 %v433
    %465 = vmatprep.subr.mxu0 0.0
    %466 = vmatpush1.xpose.msra.mxu0 %v431
    %467 = vmatprep.subr.mxu0 0.0
    %468 = vmatpush2.xpose.msra.mxu0 0.0
    %469 = vmatprep.subr.mxu0 0.0
    %470 = vmatpush2.xpose.msra.mxu0 0.0
    %471 = vmatprep.subr.mxu0 0.0
    %472 = vmatpush2.xpose.msra.mxu0 0.0
    %473 = vmatprep.subr.mxu0 0.0
    %474 = vmatpush2.xpose.msra.mxu0 0.0
    %475 = vmatprep.subr.mxu0 0.0
    %476 = vmatpush2.xpose.msra.mxu0 0.0
    %477 = vmatprep.subr.mxu0 0.0
    %478 = vmatpush2.xpose.msra.mxu0 0.0
    %479 = vmatprep.subr.mxu0 0.0
    %480 = vmatpush2.xpose.msra.mxu0 0.0
    %481 = vmatprep.subr.mxu0 0.0
    %482 = vmatpush2.xpose.msra.mxu0 0.0
    %483 = vmatprep.subr.mxu0 0.0
    %484 = vmatpush2.xpose.msra.mxu0 0.0
    %485 = vmatprep.subr.mxu0 0.0
    %486 = vmatpush2.xpose.msra.mxu0 0.0
    %487 = vmatprep.subr.mxu0 0.0
    %488 = vmatpush2.xpose.msra.mxu0 0.0
    %489 = vmatprep.subr.mxu0 0.0
    %490 = vmatpush2.xpose.msra.mxu0 0.0
    %491 = vmatprep.subr.mxu0 0.0
    %492 = vmatpush2.xpose.msra.mxu0 0.0
    %493 = vmatprep.subr.mxu0 0.0
    %494 = vmatpush2.xpose.msra.mxu0 0.0
    %495 = vmatprep.subr.mxu0 0.0
    %496 = vmatpush2.xpose.msra.mxu0 0.0
    %497 = vmatprep.subr.mxu0 0.0
    %498 = vmatpush2.xpose.msra.mxu0 0.0
    %499 = vmatprep.mubr.f32.mxu0 0.0
    %500 = vmatmul.mubr.f32.gmra.mxu0 %v427
    %v501 = vpop.f32.mrf.mxu0
    %v502 = vadd.f32 0.0, %v501
    %v503 = vpop.f32.mrf.mxu0
    %504 = vmatprep.mubr.f32.mxu0 0.0
    %505 = vmatmul.mubr.f32.gmra.mxu0 %v429
    %v506 = vpop.f32.mrf.mxu0
    %v507 = vadd.f32 0.0, %v506
    %v508 = vpop.f32.mrf.mxu0
    %509 = vdwg.mxu0
    %v510 = vsel %vm29, 1, 0
    %v511 = vsel %vm30, 1, 0
    %vm512 = vcmp.eq.s32.totalorder %v510, 1
    %vm513 = vcmp.eq.s32.totalorder %v511, 1
    %v514 = vsel %vm512, %v241, -1e+10
    %v515 = vsel %vm513, %v246, -1e+10
    %v516 = vsel %vm512, %v328, -1e+10
    %v517 = vsel %vm513, %v333, -1e+10
    %v518 = vsel %vm512, %v415, -1e+10
    %v519 = vsel %vm513, %v420, -1e+10
    %v520 = vsel %vm512, %v502, -1e+10
    %v521 = vsel %vm513, %v507, -1e+10
    %vm522 = vcmask 130048
    %v523 = vsel %vm522, %v514, -inf
    %524 = vmax.xlane.f32.xlu0 %v523
    %v525 = vpop.xlane.xlu0 %524
    %v526 = vsel %vm522, %v515, -inf
    %527 = vmax.xlane.f32.xlu0 %v526
    %v528 = vpop.xlane.xlu0 %527
    %v529 = vsel %vm522, %v516, -inf
    %530 = vmax.xlane.f32.xlu0 %v529
    %v531 = vpop.xlane.xlu0 %530
    %v532 = vsel %vm522, %v517, -inf
    %533 = vmax.xlane.f32.xlu0 %v532
    %v534 = vpop.xlane.xlu0 %533
    %v535 = vsel %vm522, %v518, -inf
    %536 = vmax.xlane.f32.xlu0 %v535
    %v537 = vpop.xlane.xlu0 %536
    %v538 = vsel %vm522, %v519, -inf
    %539 = vmax.xlane.f32.xlu0 %v538
    %v540 = vpop.xlane.xlu0 %539
    %v541 = vsel %vm522, %v520, -inf
    %542 = vmax.xlane.f32.xlu0 %v541
    %v543 = vpop.xlane.xlu0 %542
    %v544 = vsel %vm522, %v521, -inf
    %545 = vmax.xlane.f32.xlu0 %v544
    %v546 = vpop.xlane.xlu0 %545
    %v547 = vsub.f32 %v514, %v525
    %v548 = vsub.f32 %v515, %v528
    %v549 = vsub.f32 %v516, %v531
    %v550 = vsub.f32 %v517, %v534
    %v551 = vsub.f32 %v518, %v537
    %v552 = vsub.f32 %v519, %v540
    %v553 = vsub.f32 %v520, %v543
    %v554 = vsub.f32 %v521, %v546
    %v555 = vmul.f32 %v547, 1.442695
    %v556 = vpow.pop %v555
    %v557 = vmul.f32 %v548, 1.442695
    %v558 = vpow.pop %v557
    %v559 = vmul.f32 %v549, 1.442695
    %v560 = vpow.pop %v559
    %v561 = vmul.f32 %v550, 1.442695
    %v562 = vpow.pop %v561
    %v563 = vmul.f32 %v551, 1.442695
    %v564 = vpow.pop %v563
    %v565 = vmul.f32 %v552, 1.442695
    %v566 = vpow.pop %v565
    %v567 = vmul.f32 %v553, 1.442695
    %v568 = vpow.pop %v567
    %v569 = vmul.f32 %v554, 1.442695
    %v570 = vpow.pop %v569
    %v571 = vsel %vm522, %v556, 0.0
    %572 = vadd.xlane.f32.xlu0 %v571
    %v573 = vpop.xlane.xlu0 %572
    %v574 = vsel %vm522, %v558, 0.0
    %575 = vadd.xlane.f32.xlu0 %v574
    %v576 = vpop.xlane.xlu0 %575
    %v577 = vsel %vm522, %v560, 0.0
    %578 = vadd.xlane.f32.xlu0 %v577
    %v579 = vpop.xlane.xlu0 %578
    %v580 = vsel %vm522, %v562, 0.0
    %581 = vadd.xlane.f32.xlu0 %v580
    %v582 = vpop.xlane.xlu0 %581
    %v583 = vsel %vm522, %v564, 0.0
    %584 = vadd.xlane.f32.xlu0 %v583
    %v585 = vpop.xlane.xlu0 %584
    %v586 = vsel %vm522, %v566, 0.0
    %587 = vadd.xlane.f32.xlu0 %v586
    %v588 = vpop.xlane.xlu0 %587
    %v589 = vsel %vm522, %v568, 0.0
    %590 = vadd.xlane.f32.xlu0 %v589
    %v591 = vpop.xlane.xlu0 %590
    %v592 = vsel %vm522, %v570, 0.0
    %593 = vadd.xlane.f32.xlu0 %v592
    %v594 = vpop.xlane.xlu0 %593
    %v595 = vrcp.pop %v573
    %v596 = vrcp.pop %v576
    %v597 = vrcp.pop %v579
    %v598 = vrcp.pop %v582
    %v599 = vrcp.pop %v585
    %v600 = vrcp.pop %v588
    %v601 = vrcp.pop %v591
    %v602 = vrcp.pop %v594
    %v603 = vmul.f32 %v556, %v595
    %v604 = vmul.f32 %v558, %v596
    %v605 = vmul.f32 %v560, %v597
    %v606 = vmul.f32 %v562, %v598
    %v607 = vmul.f32 %v564, %v599
    %v608 = vmul.f32 %v566, %v600
    %v609 = vmul.f32 %v568, %v601
    %v610 = vmul.f32 %v570, %v602
    %611 = vrot.lane.b32.xlu0 %v139, 64
    %v612 = vpop.permute.xlu0 %611
    %613 = vrot.lane.b32.xlu0 %v144, 64
    %v614 = vpop.permute.xlu0 %613
    %v618 = vsel %vm522, %v603, 0
    %v621 = vsel %vm522, %v604, 0
    %623 = vmatprep.subr.mxu0 0.0
    %624 = vmatpush1.msra.mxu0 0.0
    %625 = vmatprep.subr.mxu0 0.0
    %626 = vmatpush1.msra.mxu0 0.0
    %627 = vmatprep.subr.mxu0 0.0
    %628 = vmatpush1.msra.mxu0 0.0
    %629 = vmatprep.subr.mxu0 0.0
    %630 = vmatpush1.msra.mxu0 0.0
    %631 = vmatprep.subr.mxu0 0.0
    %632 = vmatpush1.msra.mxu0 0.0
    %633 = vmatprep.subr.mxu0 0.0
    %634 = vmatpush1.msra.mxu0 0.0
    %635 = vmatprep.subr.mxu0 0.0
    %636 = vmatpush1.msra.mxu0 0.0
    %637 = vmatprep.subr.mxu0 0.0
    %638 = vmatpush1.msra.mxu0 0.0
    %639 = vmatprep.subr.mxu0 0.0
    %640 = vmatpush1.msra.mxu0 0.0
    %641 = vmatprep.subr.mxu0 0.0
    %642 = vmatpush1.msra.mxu0 0.0
    %643 = vmatprep.subr.mxu0 0.0
    %644 = vmatpush1.msra.mxu0 0.0
    %645 = vmatprep.subr.mxu0 0.0
    %646 = vmatpush1.msra.mxu0 0.0
    %647 = vmatprep.subr.mxu0 0.0
    %648 = vmatpush1.msra.mxu0 0.0
    %649 = vmatprep.subr.mxu0 0.0
    %650 = vmatpush1.msra.mxu0 0.0
    %651 = vmatprep.subr.mxu0 0.0
    %652 = vmatpush1.msra.mxu0 %v614
    %653 = vmatprep.subr.mxu0 0.0
    %654 = vmatpush1.msra.mxu0 %v612
    %655 = vmatprep.subr.mxu0 0.0
    %656 = vmatpush2.msra.mxu0 0.0
    %657 = vmatprep.subr.mxu0 0.0
    %658 = vmatpush2.msra.mxu0 0.0
    %659 = vmatprep.subr.mxu0 0.0
    %660 = vmatpush2.msra.mxu0 0.0
    %661 = vmatprep.subr.mxu0 0.0
    %662 = vmatpush2.msra.mxu0 0.0
    %663 = vmatprep.subr.mxu0 0.0
    %664 = vmatpush2.msra.mxu0 0.0
    %665 = vmatprep.subr.mxu0 0.0
    %666 = vmatpush2.msra.mxu0 0.0
    %667 = vmatprep.subr.mxu0 0.0
    %668 = vmatpush2.msra.mxu0 0.0
    %669 = vmatprep.subr.mxu0 0.0
    %670 = vmatpush2.msra.mxu0 0.0
    %671 = vmatprep.subr.mxu0 0.0
    %672 = vmatpush2.msra.mxu0 0.0
    %673 = vmatprep.subr.mxu0 0.0
    %674 = vmatpush2.msra.mxu0 0.0
    %675 = vmatprep.subr.mxu0 0.0
    %676 = vmatpush2.msra.mxu0 0.0
    %677 = vmatprep.subr.mxu0 0.0
    %678 = vmatpush2.msra.mxu0 0.0
    %679 = vmatprep.subr.mxu0 0.0
    %680 = vmatpush2.msra.mxu0 0.0
    %681 = vmatprep.subr.mxu0 0.0
    %682 = vmatpush2.msra.mxu0 0.0
    %683 = vmatprep.subr.mxu0 0.0
    %684 = vmatpush2.msra.mxu0 0.0
    %685 = vmatprep.subr.mxu0 0.0
    %686 = vmatpush2.msra.mxu0 0.0
    %687 = vmatprep.mubr.f32.mxu0 0.0
    %688 = vmatmul.mubr.f32.gmra.mxu0 %v618
    %v689 = vpop.f32.mrf.mxu0
    %v690 = vadd.f32 0.0, %v689
    %v691 = vpop.f32.mrf.mxu0
    %692 = vmatprep.mubr.f32.mxu0 0.0
    %693 = vmatmul.mubr.f32.gmra.mxu0 %v621
    %v694 = vpop.f32.mrf.mxu0
    %v695 = vadd.f32 0.0, %v694
    %v696 = vpop.f32.mrf.mxu0
    %697 = vdwg.mxu0
    %698 = vrot.lane.b32.xlu0 %v150, 64
    %v699 = vpop.permute.xlu0 %698
    %700 = vrot.lane.b32.xlu0 %v152, 64
    %v701 = vpop.permute.xlu0 %700
    %v705 = vsel %vm522, %v605, 0
    %v708 = vsel %vm522, %v606, 0
    %710 = vmatprep.subr.mxu0 0.0
    %711 = vmatpush1.msra.mxu0 0.0
    %712 = vmatprep.subr.mxu0 0.0
    %713 = vmatpush1.msra.mxu0 0.0
    %714 = vmatprep.subr.mxu0 0.0
    %715 = vmatpush1.msra.mxu0 0.0
    %716 = vmatprep.subr.mxu0 0.0
    %717 = vmatpush1.msra.mxu0 0.0
    %718 = vmatprep.subr.mxu0 0.0
    %719 = vmatpush1.msra.mxu0 0.0
    %720 = vmatprep.subr.mxu0 0.0
    %721 = vmatpush1.msra.mxu0 0.0
    %722 = vmatprep.subr.mxu0 0.0
    %723 = vmatpush1.msra.mxu0 0.0
    %724 = vmatprep.subr.mxu0 0.0
    %725 = vmatpush1.msra.mxu0 0.0
    %726 = vmatprep.subr.mxu0 0.0
    %727 = vmatpush1.msra.mxu0 0.0
    %728 = vmatprep.subr.mxu0 0.0
    %729 = vmatpush1.msra.mxu0 0.0
    %730 = vmatprep.subr.mxu0 0.0
    %731 = vmatpush1.msra.mxu0 0.0
    %732 = vmatprep.subr.mxu0 0.0
    %733 = vmatpush1.msra.mxu0 0.0
    %734 = vmatprep.subr.mxu0 0.0
    %735 = vmatpush1.msra.mxu0 0.0
    %736 = vmatprep.subr.mxu0 0.0
    %737 = vmatpush1.msra.mxu0 0.0
    %738 = vmatprep.subr.mxu0 0.0
    %739 = vmatpush1.msra.mxu0 %v701
    %740 = vmatprep.subr.mxu0 0.0
    %741 = vmatpush1.msra.mxu0 %v699
    %742 = vmatprep.subr.mxu0 0.0
    %743 = vmatpush2.msra.mxu0 0.0
    %744 = vmatprep.subr.mxu0 0.0
    %745 = vmatpush2.msra.mxu0 0.0
    %746 = vmatprep.subr.mxu0 0.0
    %747 = vmatpush2.msra.mxu0 0.0
    %748 = vmatprep.subr.mxu0 0.0
    %749 = vmatpush2.msra.mxu0 0.0
    %750 = vmatprep.subr.mxu0 0.0
    %751 = vmatpush2.msra.mxu0 0.0
    %752 = vmatprep.subr.mxu0 0.0
    %753 = vmatpush2.msra.mxu0 0.0
    %754 = vmatprep.subr.mxu0 0.0
    %755 = vmatpush2.msra.mxu0 0.0
    %756 = vmatprep.subr.mxu0 0.0
    %757 = vmatpush2.msra.mxu0 0.0
    %758 = vmatprep.subr.mxu0 0.0
    %759 = vmatpush2.msra.mxu0 0.0
    %760 = vmatprep.subr.mxu0 0.0
    %761 = vmatpush2.msra.mxu0 0.0
    %762 = vmatprep.subr.mxu0 0.0
    %763 = vmatpush2.msra.mxu0 0.0
    %764 = vmatprep.subr.mxu0 0.0
    %765 = vmatpush2.msra.mxu0 0.0
    %766 = vmatprep.subr.mxu0 0.0
    %767 = vmatpush2.msra.mxu0 0.0
    %768 = vmatprep.subr.mxu0 0.0
    %769 = vmatpush2.msra.mxu0 0.0
    %770 = vmatprep.subr.mxu0 0.0
    %771 = vmatpush2.msra.mxu0 0.0
    %772 = vmatprep.subr.mxu0 0.0
    %773 = vmatpush2.msra.mxu0 0.0
    %774 = vmatprep.mubr.f32.mxu0 0.0
    %775 = vmatmul.mubr.f32.gmra.mxu0 %v705
    %v776 = vpop.f32.mrf.mxu0
    %v777 = vadd.f32 0.0, %v776
    %v778 = vpop.f32.mrf.mxu0
    %779 = vmatprep.mubr.f32.mxu0 0.0
    %780 = vmatmul.mubr.f32.gmra.mxu0 %v708
    %v781 = vpop.f32.mrf.mxu0
    %v782 = vadd.f32 0.0, %v781
    %v783 = vpop.f32.mrf.mxu0
    %784 = vdwg.mxu0
    %785 = vrot.lane.b32.xlu0 %v154, 64
    %v786 = vpop.permute.xlu0 %785
    %787 = vrot.lane.b32.xlu0 %v156, 64
    %v788 = vpop.permute.xlu0 %787
    %v792 = vsel %vm522, %v607, 0
    %v795 = vsel %vm522, %v608, 0
    %797 = vmatprep.subr.mxu0 0.0
    %798 = vmatpush1.msra.mxu0 0.0
    %799 = vmatprep.subr.mxu0 0.0
    %800 = vmatpush1.msra.mxu0 0.0
    %801 = vmatprep.subr.mxu0 0.0
    %802 = vmatpush1.msra.mxu0 0.0
    %803 = vmatprep.subr.mxu0 0.0
    %804 = vmatpush1.msra.mxu0 0.0
    %805 = vmatprep.subr.mxu0 0.0
    %806 = vmatpush1.msra.mxu0 0.0
    %807 = vmatprep.subr.mxu0 0.0
    %808 = vmatpush1.msra.mxu0 0.0
    %809 = vmatprep.subr.mxu0 0.0
    %810 = vmatpush1.msra.mxu0 0.0
    %811 = vmatprep.subr.mxu0 0.0
    %812 = vmatpush1.msra.mxu0 0.0
    %813 = vmatprep.subr.mxu0 0.0
    %814 = vmatpush1.msra.mxu0 0.0
    %815 = vmatprep.subr.mxu0 0.0
    %816 = vmatpush1.msra.mxu0 0.0
    %817 = vmatprep.subr.mxu0 0.0
    %818 = vmatpush1.msra.mxu0 0.0
    %819 = vmatprep.subr.mxu0 0.0
    %820 = vmatpush1.msra.mxu0 0.0
    %821 = vmatprep.subr.mxu0 0.0
    %822 = vmatpush1.msra.mxu0 0.0
    %823 = vmatprep.subr.mxu0 0.0
    %824 = vmatpush1.msra.mxu0 0.0
    %825 = vmatprep.subr.mxu0 0.0
    %826 = vmatpush1.msra.mxu0 %v788
    %827 = vmatprep.subr.mxu0 0.0
    %828 = vmatpush1.msra.mxu0 %v786
    %829 = vmatprep.subr.mxu0 0.0
    %830 = vmatpush2.msra.mxu0 0.0
    %831 = vmatprep.subr.mxu0 0.0
    %832 = vmatpush2.msra.mxu0 0.0
    %833 = vmatprep.subr.mxu0 0.0
    %834 = vmatpush2.msra.mxu0 0.0
    %835 = vmatprep.subr.mxu0 0.0
    %836 = vmatpush2.msra.mxu0 0.0
    %837 = vmatprep.subr.mxu0 0.0
    %838 = vmatpush2.msra.mxu0 0.0
    %839 = vmatprep.subr.mxu0 0.0
    %840 = vmatpush2.msra.mxu0 0.0
    %841 = vmatprep.subr.mxu0 0.0
    %842 = vmatpush2.msra.mxu0 0.0
    %843 = vmatprep.subr.mxu0 0.0
    %844 = vmatpush2.msra.mxu0 0.0
    %845 = vmatprep.subr.mxu0 0.0
    %846 = vmatpush2.msra.mxu0 0.0
    %847 = vmatprep.subr.mxu0 0.0
    %848 = vmatpush2.msra.mxu0 0.0
    %849 = vmatprep.subr.mxu0 0.0
    %850 = vmatpush2.msra.mxu0 0.0
    %851 = vmatprep.subr.mxu0 0.0
    %852 = vmatpush2.msra.mxu0 0.0
    %853 = vmatprep.subr.mxu0 0.0
    %854 = vmatpush2.msra.mxu0 0.0
    %855 = vmatprep.subr.mxu0 0.0
    %856 = vmatpush2.msra.mxu0 0.0
    %857 = vmatprep.subr.mxu0 0.0
    %858 = vmatpush2.msra.mxu0 0.0
    %859 = vmatprep.subr.mxu0 0.0
    %860 = vmatpush2.msra.mxu0 0.0
    %861 = vmatprep.mubr.f32.mxu0 0.0
    %862 = vmatmul.mubr.f32.gmra.mxu0 %v792
    %v863 = vpop.f32.mrf.mxu0
    %v864 = vadd.f32 0.0, %v863
    %v865 = vpop.f32.mrf.mxu0
    %866 = vmatprep.mubr.f32.mxu0 0.0
    %867 = vmatmul.mubr.f32.gmra.mxu0 %v795
    %v868 = vpop.f32.mrf.mxu0
    %v869 = vadd.f32 0.0, %v868
    %v870 = vpop.f32.mrf.mxu0
    %871 = vdwg.mxu0
    %872 = vrot.lane.b32.xlu0 %v158, 64
    %v873 = vpop.permute.xlu0 %872
    %874 = vrot.lane.b32.xlu0 %v160, 64
    %v875 = vpop.permute.xlu0 %874
    %v879 = vsel %vm522, %v609, 0
    %v882 = vsel %vm522, %v610, 0
    %884 = vmatprep.subr.mxu0 0.0
    %885 = vmatpush1.msra.mxu0 0.0
    %886 = vmatprep.subr.mxu0 0.0
    %887 = vmatpush1.msra.mxu0 0.0
    %888 = vmatprep.subr.mxu0 0.0
    %889 = vmatpush1.msra.mxu0 0.0
    %890 = vmatprep.subr.mxu0 0.0
    %891 = vmatpush1.msra.mxu0 0.0
    %892 = vmatprep.subr.mxu0 0.0
    %893 = vmatpush1.msra.mxu0 0.0
    %894 = vmatprep.subr.mxu0 0.0
    %895 = vmatpush1.msra.mxu0 0.0
    %896 = vmatprep.subr.mxu0 0.0
    %897 = vmatpush1.msra.mxu0 0.0
    %898 = vmatprep.subr.mxu0 0.0
    %899 = vmatpush1.msra.mxu0 0.0
    %900 = vmatprep.subr.mxu0 0.0
    %901 = vmatpush1.msra.mxu0 0.0
    %902 = vmatprep.subr.mxu0 0.0
    %903 = vmatpush1.msra.mxu0 0.0
    %904 = vmatprep.subr.mxu0 0.0
    %905 = vmatpush1.msra.mxu0 0.0
    %906 = vmatprep.subr.mxu0 0.0
    %907 = vmatpush1.msra.mxu0 0.0
    %908 = vmatprep.subr.mxu0 0.0
    %909 = vmatpush1.msra.mxu0 0.0
    %910 = vmatprep.subr.mxu0 0.0
    %911 = vmatpush1.msra.mxu0 0.0
    %912 = vmatprep.subr.mxu0 0.0
    %913 = vmatpush1.msra.mxu0 %v875
    %914 = vmatprep.subr.mxu0 0.0
    %915 = vmatpush1.msra.mxu0 %v873
    %916 = vmatprep.subr.mxu0 0.0
    %917 = vmatpush2.msra.mxu0 0.0
    %918 = vmatprep.subr.mxu0 0.0
    %919 = vmatpush2.msra.mxu0 0.0
    %920 = vmatprep.subr.mxu0 0.0
    %921 = vmatpush2.msra.mxu0 0.0
    %922 = vmatprep.subr.mxu0 0.0
    %923 = vmatpush2.msra.mxu0 0.0
    %924 = vmatprep.subr.mxu0 0.0
    %925 = vmatpush2.msra.mxu0 0.0
    %926 = vmatprep.subr.mxu0 0.0
    %927 = vmatpush2.msra.mxu0 0.0
    %928 = vmatprep.subr.mxu0 0.0
    %929 = vmatpush2.msra.mxu0 0.0
    %930 = vmatprep.subr.mxu0 0.0
    %931 = vmatpush2.msra.mxu0 0.0
    %932 = vmatprep.subr.mxu0 0.0
    %933 = vmatpush2.msra.mxu0 0.0
    %934 = vmatprep.subr.mxu0 0.0
    %935 = vmatpush2.msra.mxu0 0.0
    %936 = vmatprep.subr.mxu0 0.0
    %937 = vmatpush2.msra.mxu0 0.0
    %938 = vmatprep.subr.mxu0 0.0
    %939 = vmatpush2.msra.mxu0 0.0
    %940 = vmatprep.subr.mxu0 0.0
    %941 = vmatpush2.msra.mxu0 0.0
    %942 = vmatprep.subr.mxu0 0.0
    %943 = vmatpush2.msra.mxu0 0.0
    %944 = vmatprep.subr.mxu0 0.0
    %945 = vmatpush2.msra.mxu0 0.0
    %946 = vmatprep.subr.mxu0 0.0
    %947 = vmatpush2.msra.mxu0 0.0
    %948 = vmatprep.mubr.f32.mxu0 0.0
    %949 = vmatmul.mubr.f32.gmra.mxu0 %v879
    %v950 = vpop.f32.mrf.mxu0
    %v951 = vadd.f32 0.0, %v950
    %v952 = vpop.f32.mrf.mxu0
    %953 = vmatprep.mubr.f32.mxu0 0.0
    %954 = vmatmul.mubr.f32.gmra.mxu0 %v882
    %v955 = vpop.f32.mrf.mxu0
    %v956 = vadd.f32 0.0, %v955
    %v957 = vpop.f32.mrf.mxu0
    %958 = vdwg.mxu0
    %v960 = vsel %vm165, %v777, 0
    %v963 = vsel %vm165, %v782, 0
    %965 = vmatprep.subr.mxu0 0.0
    %966 = vmatpush1.msra.mxu0 0.0
    %967 = vmatprep.subr.mxu0 0.0
    %968 = vmatpush1.msra.mxu0 0.0
    %969 = vmatprep.subr.mxu0 0.0
    %970 = vmatpush1.msra.mxu0 0.0
    %971 = vmatprep.subr.mxu0 0.0
    %972 = vmatpush1.msra.mxu0 0.0
    %973 = vmatprep.subr.mxu0 0.0
    %974 = vmatpush1.msra.mxu0 0.0
    %975 = vmatprep.subr.mxu0 0.0
    %976 = vmatpush1.msra.mxu0 0.0
    %977 = vmatprep.subr.mxu0 0.0
    %978 = vmatpush1.msra.mxu0 0.0
    %979 = vmatprep.subr.mxu0 0.0
    %980 = vmatpush1.msra.mxu0 0.0
    %981 = vmatprep.subr.mxu0 0.0
    %982 = vmatpush1.msra.mxu0 0.0
    %983 = vmatprep.subr.mxu0 0.0
    %984 = vmatpush1.msra.mxu0 0.0
    %985 = vmatprep.subr.mxu0 0.0
    %986 = vmatpush1.msra.mxu0 0.0
    %987 = vmatprep.subr.mxu0 0.0
    %988 = vmatpush1.msra.mxu0 0.0
    %989 = vmatprep.subr.mxu0 0.0
    %990 = vmatpush1.msra.mxu0 0.0
    %991 = vmatprep.subr.mxu0 0.0
    %992 = vmatpush1.msra.mxu0 0.0
    %993 = vmatprep.subr.mxu0 0.0
    %994 = vmatpush1.msra.mxu0 0.0
    %995 = vmatprep.subr.mxu0 0.0
    %996 = vmatpush1.msra.mxu0 %v38
    %997 = vmatprep.subr.mxu0 0.0
    %998 = vmatpush2.msra.mxu0 0.0
    %999 = vmatprep.subr.mxu0 0.0
    %1000 = vmatpush2.msra.mxu0 0.0
    %1001 = vmatprep.subr.mxu0 0.0
    %1002 = vmatpush2.msra.mxu0 0.0
    %1003 = vmatprep.subr.mxu0 0.0
    %1004 = vmatpush2.msra.mxu0 0.0
    %1005 = vmatprep.subr.mxu0 0.0
    %1006 = vmatpush2.msra.mxu0 0.0
    %1007 = vmatprep.subr.mxu0 0.0
    %1008 = vmatpush2.msra.mxu0 0.0
    %1009 = vmatprep.subr.mxu0 0.0
    %1010 = vmatpush2.msra.mxu0 0.0
    %1011 = vmatprep.subr.mxu0 0.0
    %1012 = vmatpush2.msra.mxu0 0.0
    %1013 = vmatprep.subr.mxu0 0.0
    %1014 = vmatpush2.msra.mxu0 0.0
    %1015 = vmatprep.subr.mxu0 0.0
    %1016 = vmatpush2.msra.mxu0 0.0
    %1017 = vmatprep.subr.mxu0 0.0
    %1018 = vmatpush2.msra.mxu0 0.0
    %1019 = vmatprep.subr.mxu0 0.0
    %1020 = vmatpush2.msra.mxu0 0.0
    %1021 = vmatprep.subr.mxu0 0.0
    %1022 = vmatpush2.msra.mxu0 0.0
    %1023 = vmatprep.subr.mxu0 0.0
    %1024 = vmatpush2.msra.mxu0 0.0
    %1025 = vmatprep.subr.mxu0 0.0
    %1026 = vmatpush2.msra.mxu0 0.0
    %1027 = vmatprep.subr.mxu0 0.0
    %1028 = vmatpush2.msra.mxu0 0.0
    %1029 = vmatprep.mubr.f32.mxu0 0.0
    %1030 = vmatmul.mubr.f32.gmra.mxu0 %v960
    %v1031 = vpop.f32.mrf.mxu0
    %v1032 = vadd.f32 0.0, %v1031
    %v1033 = vpop.f32.mrf.mxu0
    %1034 = vmatprep.mubr.f32.mxu0 0.0
    %1035 = vmatmul.mubr.f32.gmra.mxu0 %v963
    %v1036 = vpop.f32.mrf.mxu0
    %v1037 = vadd.f32 0.0, %v1036
    %v1038 = vpop.f32.mrf.mxu0
    %1039 = vdwg.mxu0
    %v1041 = vsel %vm165, %v690, 0
    %v1044 = vsel %vm165, %v695, 0
    %1046 = vmatprep.subr.mxu0 0.0
    %1047 = vmatpush1.msra.mxu0 0.0
    %1048 = vmatprep.subr.mxu0 0.0
    %1049 = vmatpush1.msra.mxu0 0.0
    %1050 = vmatprep.subr.mxu0 0.0
    %1051 = vmatpush1.msra.mxu0 0.0
    %1052 = vmatprep.subr.mxu0 0.0
    %1053 = vmatpush1.msra.mxu0 0.0
    %1054 = vmatprep.subr.mxu0 0.0
    %1055 = vmatpush1.msra.mxu0 0.0
    %1056 = vmatprep.subr.mxu0 0.0
    %1057 = vmatpush1.msra.mxu0 0.0
    %1058 = vmatprep.subr.mxu0 0.0
    %1059 = vmatpush1.msra.mxu0 0.0
    %1060 = vmatprep.subr.mxu0 0.0
    %1061 = vmatpush1.msra.mxu0 0.0
    %1062 = vmatprep.subr.mxu0 0.0
    %1063 = vmatpush1.msra.mxu0 0.0
    %1064 = vmatprep.subr.mxu0 0.0
    %1065 = vmatpush1.msra.mxu0 0.0
    %1066 = vmatprep.subr.mxu0 0.0
    %1067 = vmatpush1.msra.mxu0 0.0
    %1068 = vmatprep.subr.mxu0 0.0
    %1069 = vmatpush1.msra.mxu0 0.0
    %1070 = vmatprep.subr.mxu0 0.0
    %1071 = vmatpush1.msra.mxu0 0.0
    %1072 = vmatprep.subr.mxu0 0.0
    %1073 = vmatpush1.msra.mxu0 0.0
    %1074 = vmatprep.subr.mxu0 0.0
    %1075 = vmatpush1.msra.mxu0 0.0
    %1076 = vmatprep.subr.mxu0 0.0
    %1077 = vmatpush1.msra.mxu0 %v37
    %1078 = vmatprep.subr.mxu0 0.0
    %1079 = vmatpush2.msra.mxu0 0.0
    %1080 = vmatprep.subr.mxu0 0.0
    %1081 = vmatpush2.msra.mxu0 0.0
    %1082 = vmatprep.subr.mxu0 0.0
    %1083 = vmatpush2.msra.mxu0 0.0
    %1084 = vmatprep.subr.mxu0 0.0
    %1085 = vmatpush2.msra.mxu0 0.0
    %1086 = vmatprep.subr.mxu0 0.0
    %1087 = vmatpush2.msra.mxu0 0.0
    %1088 = vmatprep.subr.mxu0 0.0
    %1089 = vmatpush2.msra.mxu0 0.0
    %1090 = vmatprep.subr.mxu0 0.0
    %1091 = vmatpush2.msra.mxu0 0.0
    %1092 = vmatprep.subr.mxu0 0.0
    %1093 = vmatpush2.msra.mxu0 0.0
    %1094 = vmatprep.subr.mxu0 0.0
    %1095 = vmatpush2.msra.mxu0 0.0
    %1096 = vmatprep.subr.mxu0 0.0
    %1097 = vmatpush2.msra.mxu0 0.0
    %1098 = vmatprep.subr.mxu0 0.0
    %1099 = vmatpush2.msra.mxu0 0.0
    %1100 = vmatprep.subr.mxu0 0.0
    %1101 = vmatpush2.msra.mxu0 0.0
    %1102 = vmatprep.subr.mxu0 0.0
    %1103 = vmatpush2.msra.mxu0 0.0
    %1104 = vmatprep.subr.mxu0 0.0
    %1105 = vmatpush2.msra.mxu0 0.0
    %1106 = vmatprep.subr.mxu0 0.0
    %1107 = vmatpush2.msra.mxu0 0.0
    %1108 = vmatprep.subr.mxu0 0.0
    %1109 = vmatpush2.msra.mxu0 0.0
    %1110 = vmatprep.mubr.f32.mxu0 0.0
    %1111 = vmatmul.mubr.f32.gmra.mxu0 %v1041
    %v1112 = vpop.f32.mrf.mxu0
    %v1113 = vadd.f32 %v1032, %v1112
    %v1114 = vpop.f32.mrf.mxu0
    %1115 = vmatprep.mubr.f32.mxu0 0.0
    %1116 = vmatmul.mubr.f32.gmra.mxu0 %v1044
    %v1117 = vpop.f32.mrf.mxu0
    %v1118 = vadd.f32 %v1037, %v1117
    %v1119 = vpop.f32.mrf.mxu0
    %1120 = vdwg.mxu0
    %v1122 = vsel %vm165, %v864, 0
    %v1125 = vsel %vm165, %v869, 0
    %1127 = vmatprep.subr.mxu0 0.0
    %1128 = vmatpush1.msra.mxu0 0.0
    %1129 = vmatprep.subr.mxu0 0.0
    %1130 = vmatpush1.msra.mxu0 0.0
    %1131 = vmatprep.subr.mxu0 0.0
    %1132 = vmatpush1.msra.mxu0 0.0
    %1133 = vmatprep.subr.mxu0 0.0
    %1134 = vmatpush1.msra.mxu0 0.0
    %1135 = vmatprep.subr.mxu0 0.0
    %1136 = vmatpush1.msra.mxu0 0.0
    %1137 = vmatprep.subr.mxu0 0.0
    %1138 = vmatpush1.msra.mxu0 0.0
    %1139 = vmatprep.subr.mxu0 0.0
    %1140 = vmatpush1.msra.mxu0 0.0
    %1141 = vmatprep.subr.mxu0 0.0
    %1142 = vmatpush1.msra.mxu0 0.0
    %1143 = vmatprep.subr.mxu0 0.0
    %1144 = vmatpush1.msra.mxu0 0.0
    %1145 = vmatprep.subr.mxu0 0.0
    %1146 = vmatpush1.msra.mxu0 0.0
    %1147 = vmatprep.subr.mxu0 0.0
    %1148 = vmatpush1.msra.mxu0 0.0
    %1149 = vmatprep.subr.mxu0 0.0
    %1150 = vmatpush1.msra.mxu0 0.0
    %1151 = vmatprep.subr.mxu0 0.0
    %1152 = vmatpush1.msra.mxu0 0.0
    %1153 = vmatprep.subr.mxu0 0.0
    %1154 = vmatpush1.msra.mxu0 0.0
    %1155 = vmatprep.subr.mxu0 0.0
    %1156 = vmatpush1.msra.mxu0 0.0
    %1157 = vmatprep.subr.mxu0 0.0
    %1158 = vmatpush1.msra.mxu0 %v39
    %1159 = vmatprep.subr.mxu0 0.0
    %1160 = vmatpush2.msra.mxu0 0.0
    %1161 = vmatprep.subr.mxu0 0.0
    %1162 = vmatpush2.msra.mxu0 0.0
    %1163 = vmatprep.subr.mxu0 0.0
    %1164 = vmatpush2.msra.mxu0 0.0
    %1165 = vmatprep.subr.mxu0 0.0
    %1166 = vmatpush2.msra.mxu0 0.0
    %1167 = vmatprep.subr.mxu0 0.0
    %1168 = vmatpush2.msra.mxu0 0.0
    %1169 = vmatprep.subr.mxu0 0.0
    %1170 = vmatpush2.msra.mxu0 0.0
    %1171 = vmatprep.subr.mxu0 0.0
    %1172 = vmatpush2.msra.mxu0 0.0
    %1173 = vmatprep.subr.mxu0 0.0
    %1174 = vmatpush2.msra.mxu0 0.0
    %1175 = vmatprep.subr.mxu0 0.0
    %1176 = vmatpush2.msra.mxu0 0.0
    %1177 = vmatprep.subr.mxu0 0.0
    %1178 = vmatpush2.msra.mxu0 0.0
    %1179 = vmatprep.subr.mxu0 0.0
    %1180 = vmatpush2.msra.mxu0 0.0
    %1181 = vmatprep.subr.mxu0 0.0
    %1182 = vmatpush2.msra.mxu0 0.0
    %1183 = vmatprep.subr.mxu0 0.0
    %1184 = vmatpush2.msra.mxu0 0.0
    %1185 = vmatprep.subr.mxu0 0.0
    %1186 = vmatpush2.msra.mxu0 0.0
    %1187 = vmatprep.subr.mxu0 0.0
    %1188 = vmatpush2.msra.mxu0 0.0
    %1189 = vmatprep.subr.mxu0 0.0
    %1190 = vmatpush2.msra.mxu0 0.0
    %1191 = vmatprep.mubr.f32.mxu0 0.0
    %1192 = vmatmul.mubr.f32.gmra.mxu0 %v1122
    %v1193 = vpop.f32.mrf.mxu0
    %v1194 = vadd.f32 0.0, %v1193
    %v1195 = vpop.f32.mrf.mxu0
    %1196 = vmatprep.mubr.f32.mxu0 0.0
    %1197 = vmatmul.mubr.f32.gmra.mxu0 %v1125
    %v1198 = vpop.f32.mrf.mxu0
    %v1199 = vadd.f32 0.0, %v1198
    %v1200 = vpop.f32.mrf.mxu0
    %1201 = vdwg.mxu0
    %v1202 = vadd.f32 %v1113, %v1194
    %v1203 = vadd.f32 %v1118, %v1199
    %v1205 = vsel %vm165, %v951, 0
    %v1208 = vsel %vm165, %v956, 0
    %1210 = vmatprep.subr.mxu0 0.0
    %1211 = vmatpush1.msra.mxu0 0.0
    %1212 = vmatprep.subr.mxu0 0.0
    %1213 = vmatpush1.msra.mxu0 0.0
    %1214 = vmatprep.subr.mxu0 0.0
    %1215 = vmatpush1.msra.mxu0 0.0
    %1216 = vmatprep.subr.mxu0 0.0
    %1217 = vmatpush1.msra.mxu0 0.0
    %1218 = vmatprep.subr.mxu0 0.0
    %1219 = vmatpush1.msra.mxu0 0.0
    %1220 = vmatprep.subr.mxu0 0.0
    %1221 = vmatpush1.msra.mxu0 0.0
    %1222 = vmatprep.subr.mxu0 0.0
    %1223 = vmatpush1.msra.mxu0 0.0
    %1224 = vmatprep.subr.mxu0 0.0
    %1225 = vmatpush1.msra.mxu0 0.0
    %1226 = vmatprep.subr.mxu0 0.0
    %1227 = vmatpush1.msra.mxu0 0.0
    %1228 = vmatprep.subr.mxu0 0.0
    %1229 = vmatpush1.msra.mxu0 0.0
    %1230 = vmatprep.subr.mxu0 0.0
    %1231 = vmatpush1.msra.mxu0 0.0
    %1232 = vmatprep.subr.mxu0 0.0
    %1233 = vmatpush1.msra.mxu0 0.0
    %1234 = vmatprep.subr.mxu0 0.0
    %1235 = vmatpush1.msra.mxu0 0.0
    %1236 = vmatprep.subr.mxu0 0.0
    %1237 = vmatpush1.msra.mxu0 0.0
    %1238 = vmatprep.subr.mxu0 0.0
    %1239 = vmatpush1.msra.mxu0 0.0
    %1240 = vmatprep.subr.mxu0 0.0
    %1241 = vmatpush1.msra.mxu0 %v40
    %1242 = vmatprep.subr.mxu0 0.0
    %1243 = vmatpush2.msra.mxu0 0.0
    %1244 = vmatprep.subr.mxu0 0.0
    %1245 = vmatpush2.msra.mxu0 0.0
    %1246 = vmatprep.subr.mxu0 0.0
    %1247 = vmatpush2.msra.mxu0 0.0
    %1248 = vmatprep.subr.mxu0 0.0
    %1249 = vmatpush2.msra.mxu0 0.0
    %1250 = vmatprep.subr.mxu0 0.0
    %1251 = vmatpush2.msra.mxu0 0.0
    %1252 = vmatprep.subr.mxu0 0.0
    %1253 = vmatpush2.msra.mxu0 0.0
    %1254 = vmatprep.subr.mxu0 0.0
    %1255 = vmatpush2.msra.mxu0 0.0
    %1256 = vmatprep.subr.mxu0 0.0
    %1257 = vmatpush2.msra.mxu0 0.0
    %1258 = vmatprep.subr.mxu0 0.0
    %1259 = vmatpush2.msra.mxu0 0.0
    %1260 = vmatprep.subr.mxu0 0.0
    %1261 = vmatpush2.msra.mxu0 0.0
    %1262 = vmatprep.subr.mxu0 0.0
    %1263 = vmatpush2.msra.mxu0 0.0
    %1264 = vmatprep.subr.mxu0 0.0
    %1265 = vmatpush2.msra.mxu0 0.0
    %1266 = vmatprep.subr.mxu0 0.0
    %1267 = vmatpush2.msra.mxu0 0.0
    %1268 = vmatprep.subr.mxu0 0.0
    %1269 = vmatpush2.msra.mxu0 0.0
    %1270 = vmatprep.subr.mxu0 0.0
    %1271 = vmatpush2.msra.mxu0 0.0
    %1272 = vmatprep.subr.mxu0 0.0
    %1273 = vmatpush2.msra.mxu0 0.0
    %1274 = vmatprep.mubr.f32.mxu0 0.0
    %1275 = vmatmul.mubr.f32.gmra.mxu0 %v1205
    %v1276 = vpop.f32.mrf.mxu0
    %v1277 = vadd.f32 0.0, %v1276
    %v1278 = vpop.f32.mrf.mxu0
    %1279 = vmatprep.mubr.f32.mxu0 0.0
    %1280 = vmatmul.mubr.f32.gmra.mxu0 %v1208
    %v1281 = vpop.f32.mrf.mxu0
    %v1282 = vadd.f32 0.0, %v1281
    %v1283 = vpop.f32.mrf.mxu0
    %1284 = vdwg.mxu0
    %v1285 = vadd.f32 %v1202, %v1277
    %v1286 = vadd.f32 %v1203, %v1282
    %v1287 = vlaneseq
    %v1288 = vshrl.u32 %v1287, 7
    %v1289 = vsub.s32 0, %v1288
    %v1290 = vrot.slane %v54, %v1289
    %v1291 = vadd.f32 %v1285, %v1290
    %v1292 = vadd.f32 %v1286, %v1290
    %v1293 = vadd.f32 %v31, %v1291
    %v1294 = vadd.f32 %v32, %v1292
    %v1295 = vsel %vm65, %v1293, 0.0
    %1296 = vadd.xlane.f32.xlu0 %v1295
    %v1297 = vpop.xlane.xlu0 %1296
    %v1298 = vsel %vm65, %v1294, 0.0
    %1299 = vadd.xlane.f32.xlu0 %v1298
    %v1300 = vpop.xlane.xlu0 %1299
    %v1301 = vrcp.pop 32.0
    %v1302 = vmul.f32 %v1297, %v1301
    %v1303 = vmul.f32 %v1300, %v1301
    %v1304 = vsub.f32 %v1293, %v1302
    %v1305 = vsub.f32 %v1294, %v1303
    %v1306 = vmul.f32 %v1304, %v1304
    %v1307 = vmul.f32 %v1305, %v1305
    %v1308 = vsel %vm65, %v1306, 0.0
    %1309 = vadd.xlane.f32.xlu0 %v1308
    %v1310 = vpop.xlane.xlu0 %1309
    %v1311 = vsel %vm65, %v1307, 0.0
    %1312 = vadd.xlane.f32.xlu0 %v1311
    %v1313 = vpop.xlane.xlu0 %1312
    %v1314 = vmul.f32 %v1310, %v1301
    %v1315 = vmul.f32 %v1313, %v1301
    %v1316 = vadd.f32 %v1314, 1e-05
    %v1317 = vadd.f32 %v1315, 1e-05
    %v1318 = vrsqrt.pop %v1316
    %v1319 = vrsqrt.pop %v1317
    %v1320 = vmul.f32 %v1304, %v1318
    %v1321 = vmul.f32 %v1305, %v1319
    %v1322 = vlaneseq
    %v1323 = vshrl.u32 %v1322, 7
    %v1324 = vsub.s32 0, %v1323
    %v1325 = vrot.slane %v55, %v1324
    %v1326 = vmul.f32 %v1320, %v1325
    %v1327 = vmul.f32 %v1321, %v1325
    %v1328 = vlaneseq
    %v1329 = vshrl.u32 %v1328, 7
    %v1330 = vsub.s32 0, %v1329
    %v1331 = vrot.slane %v56, %v1330
    %v1332 = vadd.f32 %v1326, %v1331
    %v1333 = vadd.f32 %v1327, %v1331
    %v1334 = vlaneseq
    %v1335 = vshrl.u32 %v1334, 7
    %v1336 = vsub.s32 0, %v1335
    %v1337 = vrot.slane %v57, %v1336
    %v1339 = vsel %vm65, %v1332, 0
    %v1342 = vsel %vm65, %v1333, 0
    %1344 = vmatprep.subr.mxu0 0.0
    %1345 = vmatpush1.msra.mxu0 0.0
    %1346 = vmatprep.subr.mxu0 0.0
    %1347 = vmatpush1.msra.mxu0 0.0
    %1348 = vmatprep.subr.mxu0 0.0
    %1349 = vmatpush1.msra.mxu0 0.0
    %1350 = vmatprep.subr.mxu0 0.0
    %1351 = vmatpush1.msra.mxu0 0.0
    %1352 = vmatprep.subr.mxu0 0.0
    %1353 = vmatpush1.msra.mxu0 0.0
    %1354 = vmatprep.subr.mxu0 0.0
    %1355 = vmatpush1.msra.mxu0 0.0
    %1356 = vmatprep.subr.mxu0 0.0
    %1357 = vmatpush1.msra.mxu0 0.0
    %1358 = vmatprep.subr.mxu0 0.0
    %1359 = vmatpush1.msra.mxu0 0.0
    %1360 = vmatprep.subr.mxu0 0.0
    %1361 = vmatpush1.msra.mxu0 0.0
    %1362 = vmatprep.subr.mxu0 0.0
    %1363 = vmatpush1.msra.mxu0 0.0
    %1364 = vmatprep.subr.mxu0 0.0
    %1365 = vmatpush1.msra.mxu0 0.0
    %1366 = vmatprep.subr.mxu0 0.0
    %1367 = vmatpush1.msra.mxu0 0.0
    %1368 = vmatprep.subr.mxu0 0.0
    %1369 = vmatpush1.msra.mxu0 %v44
    %1370 = vmatprep.subr.mxu0 0.0
    %1371 = vmatpush1.msra.mxu0 %v43
    %1372 = vmatprep.subr.mxu0 0.0
    %1373 = vmatpush1.msra.mxu0 %v42
    %1374 = vmatprep.subr.mxu0 0.0
    %1375 = vmatpush1.msra.mxu0 %v41
    %1376 = vmatprep.subr.mxu0 0.0
    %1377 = vmatpush2.msra.mxu0 0.0
    %1378 = vmatprep.subr.mxu0 0.0
    %1379 = vmatpush2.msra.mxu0 0.0
    %1380 = vmatprep.subr.mxu0 0.0
    %1381 = vmatpush2.msra.mxu0 0.0
    %1382 = vmatprep.subr.mxu0 0.0
    %1383 = vmatpush2.msra.mxu0 0.0
    %1384 = vmatprep.subr.mxu0 0.0
    %1385 = vmatpush2.msra.mxu0 0.0
    %1386 = vmatprep.subr.mxu0 0.0
    %1387 = vmatpush2.msra.mxu0 0.0
    %1388 = vmatprep.subr.mxu0 0.0
    %1389 = vmatpush2.msra.mxu0 0.0
    %1390 = vmatprep.subr.mxu0 0.0
    %1391 = vmatpush2.msra.mxu0 0.0
    %1392 = vmatprep.subr.mxu0 0.0
    %1393 = vmatpush2.msra.mxu0 0.0
    %1394 = vmatprep.subr.mxu0 0.0
    %1395 = vmatpush2.msra.mxu0 0.0
    %1396 = vmatprep.subr.mxu0 0.0
    %1397 = vmatpush2.msra.mxu0 0.0
    %1398 = vmatprep.subr.mxu0 0.0
    %1399 = vmatpush2.msra.mxu0 0.0
    %1400 = vmatprep.subr.mxu0 0.0
    %1401 = vmatpush2.msra.mxu0 0.0
    %1402 = vmatprep.subr.mxu0 0.0
    %1403 = vmatpush2.msra.mxu0 0.0
    %1404 = vmatprep.subr.mxu0 0.0
    %1405 = vmatpush2.msra.mxu0 0.0
    %1406 = vmatprep.subr.mxu0 0.0
    %1407 = vmatpush2.msra.mxu0 0.0
    %1408 = vmatprep.mubr.f32.mxu0 0.0
    %1409 = vmatmul.mubr.f32.gmra.mxu0 %v1339
    %v1410 = vpop.f32.mrf.mxu0
    %v1411 = vadd.f32 %v1337, %v1410
    %v1412 = vpop.f32.mrf.mxu0
    %1413 = vmatprep.mubr.f32.mxu0 0.0
    %1414 = vmatmul.mubr.f32.gmra.mxu0 %v1342
    %v1415 = vpop.f32.mrf.mxu0
    %v1416 = vadd.f32 %v1337, %v1415
    %v1417 = vpop.f32.mrf.mxu0
    %1418 = vdwg.mxu0
    %v1419 = vmax.f32 %v1411, 0.0
    %v1420 = vmax.f32 %v1416, 0.0
    %v1421 = vlaneseq
    %v1422 = vshrl.u32 %v1421, 7
    %v1423 = vsub.s32 0, %v1422
    %v1424 = vrot.slane %v58, %v1423
    %vm1425 = vcmask 523264
    %v1427 = vsel %vm1425, %v1419, 0
    %v1430 = vsel %vm1425, %v1420, 0
    %1432 = vmatprep.subr.mxu0 0.0
    %1433 = vmatpush1.msra.mxu0 0.0
    %1434 = vmatprep.subr.mxu0 0.0
    %1435 = vmatpush1.msra.mxu0 0.0
    %1436 = vmatprep.subr.mxu0 0.0
    %1437 = vmatpush1.msra.mxu0 0.0
    %1438 = vmatprep.subr.mxu0 0.0
    %1439 = vmatpush1.msra.mxu0 0.0
    %1440 = vmatprep.subr.mxu0 0.0
    %1441 = vmatpush1.msra.mxu0 0.0
    %1442 = vmatprep.subr.mxu0 0.0
    %1443 = vmatpush1.msra.mxu0 0.0
    %1444 = vmatprep.subr.mxu0 0.0
    %1445 = vmatpush1.msra.mxu0 0.0
    %1446 = vmatprep.subr.mxu0 0.0
    %1447 = vmatpush1.msra.mxu0 0.0
    %1448 = vmatprep.subr.mxu0 0.0
    %1449 = vmatpush1.msra.mxu0 %v52
    %1450 = vmatprep.subr.mxu0 0.0
    %1451 = vmatpush1.msra.mxu0 %v51
    %1452 = vmatprep.subr.mxu0 0.0
    %1453 = vmatpush1.msra.mxu0 %v50
    %1454 = vmatprep.subr.mxu0 0.0
    %1455 = vmatpush1.msra.mxu0 %v49
    %1456 = vmatprep.subr.mxu0 0.0
    %1457 = vmatpush1.msra.mxu0 %v48
    %1458 = vmatprep.subr.mxu0 0.0
    %1459 = vmatpush1.msra.mxu0 %v47
    %1460 = vmatprep.subr.mxu0 0.0
    %1461 = vmatpush1.msra.mxu0 %v46
    %1462 = vmatprep.subr.mxu0 0.0
    %1463 = vmatpush1.msra.mxu0 %v45
    %1464 = vmatprep.subr.mxu0 0.0
    %1465 = vmatpush2.msra.mxu0 0.0
    %1466 = vmatprep.subr.mxu0 0.0
    %1467 = vmatpush2.msra.mxu0 0.0
    %1468 = vmatprep.subr.mxu0 0.0
    %1469 = vmatpush2.msra.mxu0 0.0
    %1470 = vmatprep.subr.mxu0 0.0
    %1471 = vmatpush2.msra.mxu0 0.0
    %1472 = vmatprep.subr.mxu0 0.0
    %1473 = vmatpush2.msra.mxu0 0.0
    %1474 = vmatprep.subr.mxu0 0.0
    %1475 = vmatpush2.msra.mxu0 0.0
    %1476 = vmatprep.subr.mxu0 0.0
    %1477 = vmatpush2.msra.mxu0 0.0
    %1478 = vmatprep.subr.mxu0 0.0
    %1479 = vmatpush2.msra.mxu0 0.0
    %1480 = vmatprep.subr.mxu0 0.0
    %1481 = vmatpush2.msra.mxu0 0.0
    %1482 = vmatprep.subr.mxu0 0.0
    %1483 = vmatpush2.msra.mxu0 0.0
    %1484 = vmatprep.subr.mxu0 0.0
    %1485 = vmatpush2.msra.mxu0 0.0
    %1486 = vmatprep.subr.mxu0 0.0
    %1487 = vmatpush2.msra.mxu0 0.0
    %1488 = vmatprep.subr.mxu0 0.0
    %1489 = vmatpush2.msra.mxu0 0.0
    %1490 = vmatprep.subr.mxu0 0.0
    %1491 = vmatpush2.msra.mxu0 0.0
    %1492 = vmatprep.subr.mxu0 0.0
    %1493 = vmatpush2.msra.mxu0 0.0
    %1494 = vmatprep.subr.mxu0 0.0
    %1495 = vmatpush2.msra.mxu0 0.0
    %1496 = vmatprep.mubr.f32.mxu0 0.0
    %1497 = vmatmul.mubr.f32.gmra.mxu0 %v1427
    %v1498 = vpop.f32.mrf.mxu0
    %v1499 = vadd.f32 %v1424, %v1498
    %v1500 = vpop.f32.mrf.mxu0
    %1501 = vmatprep.mubr.f32.mxu0 0.0
    %1502 = vmatmul.mubr.f32.gmra.mxu0 %v1430
    %v1503 = vpop.f32.mrf.mxu0
    %v1504 = vadd.f32 %v1424, %v1503
    %v1505 = vpop.f32.mrf.mxu0
    %1506 = vdwg.mxu0
    %v1507 = vadd.f32 %v1332, %v1499
    %v1508 = vadd.f32 %v1333, %v1504
    %v1509 = vsel %vm65, %v1507, 0.0
    %1510 = vadd.xlane.f32.xlu0 %v1509
    %v1511 = vpop.xlane.xlu0 %1510
    %v1512 = vsel %vm65, %v1508, 0.0
    %1513 = vadd.xlane.f32.xlu0 %v1512
    %v1514 = vpop.xlane.xlu0 %1513
    %v1515 = vmul.f32 %v1511, %v1301
    %v1516 = vmul.f32 %v1514, %v1301
    %v1517 = vsub.f32 %v1507, %v1515
    %v1518 = vsub.f32 %v1508, %v1516
    %v1519 = vmul.f32 %v1517, %v1517
    %v1520 = vmul.f32 %v1518, %v1518
    %v1521 = vsel %vm65, %v1519, 0.0
    %1522 = vadd.xlane.f32.xlu0 %v1521
    %v1523 = vpop.xlane.xlu0 %1522
    %v1524 = vsel %vm65, %v1520, 0.0
    %1525 = vadd.xlane.f32.xlu0 %v1524
    %v1526 = vpop.xlane.xlu0 %1525
    %v1527 = vmul.f32 %v1523, %v1301
    %v1528 = vmul.f32 %v1526, %v1301
    %v1529 = vadd.f32 %v1527, 1e-05
    %v1530 = vadd.f32 %v1528, 1e-05
    %v1531 = vrsqrt.pop %v1529
    %v1532 = vrsqrt.pop %v1530
    %v1533 = vmul.f32 %v1517, %v1531
    %v1534 = vmul.f32 %v1518, %v1532
    %v1535 = vlaneseq
    %v1536 = vshrl.u32 %v1535, 7
    %v1537 = vsub.s32 0, %v1536
    %v1538 = vrot.slane %v59, %v1537
    %v1539 = vmul.f32 %v1533, %v1538
    %v1540 = vmul.f32 %v1534, %v1538
    %v1541 = vlaneseq
    %v1542 = vshrl.u32 %v1541, 7
    %v1543 = vsub.s32 0, %v1542
    %v1544 = vrot.slane %v60, %v1543
    %v1545 = vadd.f32 %v1539, %v1544
    %v1546 = vadd.f32 %v1540, %v1544
    %s1547 = scalar_lea.vmem %s2, 32
    %v1548 = vld [vmem:[%s1547] sm:$0xff]
    %v1549 = vld [vmem:[%s1547 + $0x8] sm:$0xff]
    %v1550 = vld [vmem:[%s1547 + $0x10] sm:$0xff]
    %v1551 = vld [vmem:[%s1547 + $0x18] sm:$0xff]
    %s1552 = scalar_lea.vmem %s3, 32
    %v1553 = vld [vmem:[%s1552] sm:$0xff]
    %v1554 = vld [vmem:[%s1552 + $0x8] sm:$0xff]
    %v1555 = vld [vmem:[%s1552 + $0x10] sm:$0xff]
    %v1556 = vld [vmem:[%s1552 + $0x18] sm:$0xff]
    %s1557 = scalar_lea.vmem %s4, 32
    %v1558 = vld [vmem:[%s1557] sm:$0xff]
    %v1559 = vld [vmem:[%s1557 + $0x8] sm:$0xff]
    %v1560 = vld [vmem:[%s1557 + $0x10] sm:$0xff]
    %v1561 = vld [vmem:[%s1557 + $0x18] sm:$0xff]
    %s1562 = scalar_lea.vmem %s5, 64
    %v1563 = vld [vmem:[%s1562] sm:$0xff]
    %v1564 = vld [vmem:[%s1562 + $0x8] sm:$0xff]
    %v1565 = vld [vmem:[%s1562 + $0x10] sm:$0xff]
    %v1566 = vld [vmem:[%s1562 + $0x18] sm:$0xff]
    %v1567 = vld [vmem:[%s1562 + $0x20] sm:$0xff]
    %v1568 = vld [vmem:[%s1562 + $0x28] sm:$0xff]
    %v1569 = vld [vmem:[%s1562 + $0x30] sm:$0xff]
    %v1570 = vld [vmem:[%s1562 + $0x38] sm:$0xff]
    %s1571 = scalar_lea.vmem %s6, 8
    %v1572 = vld [vmem:[%s1571] sm:$0x1]
    %v1573 = vld [vmem:[%s1571 + $0x1] sm:$0x1]
    %v1574 = vld [vmem:[%s1571 + $0x2] sm:$0x1]
    %v1575 = vld [vmem:[%s1571 + $0x3] sm:$0x1]
    %v1576 = vld [vmem:[%s1571 + $0x4] sm:$0x1]
    %v1577 = vld [vmem:[%s1571 + $0x5] sm:$0x1]
    %v1578 = vld [vmem:[%s1571 + $0x6] sm:$0x1]
    %v1579 = vld [vmem:[%s1571 + $0x7] sm:$0x1]
    %v1580 = vlaneseq
    %v1581 = vshrl.u32 %v1580, 7
    %v1582 = vsub.s32 0, %v1581
    %v1583 = vrot.slane %v1572, %v1582
    %v1585 = vsel %vm65, %v1545, 0
    %v1588 = vsel %vm65, %v1546, 0
    %1590 = vmatprep.subr.mxu0 0.0
    %1591 = vmatpush1.msra.mxu0 0.0
    %1592 = vmatprep.subr.mxu0 0.0
    %1593 = vmatpush1.msra.mxu0 0.0
    %1594 = vmatprep.subr.mxu0 0.0
    %1595 = vmatpush1.msra.mxu0 0.0
    %1596 = vmatprep.subr.mxu0 0.0
    %1597 = vmatpush1.msra.mxu0 0.0
    %1598 = vmatprep.subr.mxu0 0.0
    %1599 = vmatpush1.msra.mxu0 0.0
    %1600 = vmatprep.subr.mxu0 0.0
    %1601 = vmatpush1.msra.mxu0 0.0
    %1602 = vmatprep.subr.mxu0 0.0
    %1603 = vmatpush1.msra.mxu0 0.0
    %1604 = vmatprep.subr.mxu0 0.0
    %1605 = vmatpush1.msra.mxu0 0.0
    %1606 = vmatprep.subr.mxu0 0.0
    %1607 = vmatpush1.msra.mxu0 0.0
    %1608 = vmatprep.subr.mxu0 0.0
    %1609 = vmatpush1.msra.mxu0 0.0
    %1610 = vmatprep.subr.mxu0 0.0
    %1611 = vmatpush1.msra.mxu0 0.0
    %1612 = vmatprep.subr.mxu0 0.0
    %1613 = vmatpush1.msra.mxu0 0.0
    %1614 = vmatprep.subr.mxu0 0.0
    %1615 = vmatpush1.msra.mxu0 %v1551
    %1616 = vmatprep.subr.mxu0 0.0
    %1617 = vmatpush1.msra.mxu0 %v1550
    %1618 = vmatprep.subr.mxu0 0.0
    %1619 = vmatpush1.msra.mxu0 %v1549
    %1620 = vmatprep.subr.mxu0 0.0
    %1621 = vmatpush1.msra.mxu0 %v1548
    %1622 = vmatprep.subr.mxu0 0.0
    %1623 = vmatpush2.msra.mxu0 0.0
    %1624 = vmatprep.subr.mxu0 0.0
    %1625 = vmatpush2.msra.mxu0 0.0
    %1626 = vmatprep.subr.mxu0 0.0
    %1627 = vmatpush2.msra.mxu0 0.0
    %1628 = vmatprep.subr.mxu0 0.0
    %1629 = vmatpush2.msra.mxu0 0.0
    %1630 = vmatprep.subr.mxu0 0.0
    %1631 = vmatpush2.msra.mxu0 0.0
    %1632 = vmatprep.subr.mxu0 0.0
    %1633 = vmatpush2.msra.mxu0 0.0
    %1634 = vmatprep.subr.mxu0 0.0
    %1635 = vmatpush2.msra.mxu0 0.0
    %1636 = vmatprep.subr.mxu0 0.0
    %1637 = vmatpush2.msra.mxu0 0.0
    %1638 = vmatprep.subr.mxu0 0.0
    %1639 = vmatpush2.msra.mxu0 0.0
    %1640 = vmatprep.subr.mxu0 0.0
    %1641 = vmatpush2.msra.mxu0 0.0
    %1642 = vmatprep.subr.mxu0 0.0
    %1643 = vmatpush2.msra.mxu0 0.0
    %1644 = vmatprep.subr.mxu0 0.0
    %1645 = vmatpush2.msra.mxu0 0.0
    %1646 = vmatprep.subr.mxu0 0.0
    %1647 = vmatpush2.msra.mxu0 0.0
    %1648 = vmatprep.subr.mxu0 0.0
    %1649 = vmatpush2.msra.mxu0 0.0
    %1650 = vmatprep.subr.mxu0 0.0
    %1651 = vmatpush2.msra.mxu0 0.0
    %1652 = vmatprep.subr.mxu0 0.0
    %1653 = vmatpush2.msra.mxu0 0.0
    %1654 = vmatprep.mubr.f32.mxu0 0.0
    %1655 = vmatmul.mubr.f32.gmra.mxu0 %v1585
    %v1656 = vpop.f32.mrf.mxu0
    %v1657 = vadd.f32 %v1583, %v1656
    %v1658 = vpop.f32.mrf.mxu0
    %1659 = vmatprep.mubr.f32.mxu0 0.0
    %1660 = vmatmul.mubr.f32.gmra.mxu0 %v1588
    %v1661 = vpop.f32.mrf.mxu0
    %v1662 = vadd.f32 %v1583, %v1661
    %v1663 = vpop.f32.mrf.mxu0
    %1664 = vdwg.mxu0
    %1667 = vrot.lane.b32.xlu0 %v1657, 120
    %v1668 = vpop.permute.xlu0 %1667
    %1669 = vrot.lane.b32.xlu0 %v1662, 120
    %v1670 = vpop.permute.xlu0 %1669
    %1671 = vrot.lane.b32.xlu0 %v1657, 112
    %v1672 = vpop.permute.xlu0 %1671
    %1673 = vrot.lane.b32.xlu0 %v1662, 112
    %v1674 = vpop.permute.xlu0 %1673
    %1675 = vrot.lane.b32.xlu0 %v1657, 104
    %v1676 = vpop.permute.xlu0 %1675
    %1677 = vrot.lane.b32.xlu0 %v1662, 104
    %v1678 = vpop.permute.xlu0 %1677
    %1679 = vrot.lane.b32.xlu0 %v1657, 96
    %v1680 = vpop.permute.xlu0 %1679
    %1681 = vrot.lane.b32.xlu0 %v1662, 96
    %v1682 = vpop.permute.xlu0 %1681
    %v1683 = vsel %vm165, %v1657, 0
    %v1685 = vsel %vm165, %v1662, 0
    %v1687 = vsel %vm165, %v1680, 0
    %v1689 = vsel %vm165, %v1682, 0
    %1691 = vmatprep.subr.mxu0 0.0
    %1692 = vmatpush1.xpose.msra.mxu0 0.0
    %1693 = vmatprep.subr.mxu0 0.0
    %1694 = vmatpush1.xpose.msra.mxu0 0.0
    %1695 = vmatprep.subr.mxu0 0.0
    %1696 = vmatpush1.xpose.msra.mxu0 0.0
    %1697 = vmatprep.subr.mxu0 0.0
    %1698 = vmatpush1.xpose.msra.mxu0 0.0
    %1699 = vmatprep.subr.mxu0 0.0
    %1700 = vmatpush1.xpose.msra.mxu0 0.0
    %1701 = vmatprep.subr.mxu0 0.0
    %1702 = vmatpush1.xpose.msra.mxu0 0.0
    %1703 = vmatprep.subr.mxu0 0.0
    %1704 = vmatpush1.xpose.msra.mxu0 0.0
    %1705 = vmatprep.subr.mxu0 0.0
    %1706 = vmatpush1.xpose.msra.mxu0 0.0
    %1707 = vmatprep.subr.mxu0 0.0
    %1708 = vmatpush1.xpose.msra.mxu0 0.0
    %1709 = vmatprep.subr.mxu0 0.0
    %1710 = vmatpush1.xpose.msra.mxu0 0.0
    %1711 = vmatprep.subr.mxu0 0.0
    %1712 = vmatpush1.xpose.msra.mxu0 0.0
    %1713 = vmatprep.subr.mxu0 0.0
    %1714 = vmatpush1.xpose.msra.mxu0 0.0
    %1715 = vmatprep.subr.mxu0 0.0
    %1716 = vmatpush1.xpose.msra.mxu0 0.0
    %1717 = vmatprep.subr.mxu0 0.0
    %1718 = vmatpush1.xpose.msra.mxu0 0.0
    %1719 = vmatprep.subr.mxu0 0.0
    %1720 = vmatpush1.xpose.msra.mxu0 %v1689
    %1721 = vmatprep.subr.mxu0 0.0
    %1722 = vmatpush1.xpose.msra.mxu0 %v1687
    %1723 = vmatprep.subr.mxu0 0.0
    %1724 = vmatpush2.xpose.msra.mxu0 0.0
    %1725 = vmatprep.subr.mxu0 0.0
    %1726 = vmatpush2.xpose.msra.mxu0 0.0
    %1727 = vmatprep.subr.mxu0 0.0
    %1728 = vmatpush2.xpose.msra.mxu0 0.0
    %1729 = vmatprep.subr.mxu0 0.0
    %1730 = vmatpush2.xpose.msra.mxu0 0.0
    %1731 = vmatprep.subr.mxu0 0.0
    %1732 = vmatpush2.xpose.msra.mxu0 0.0
    %1733 = vmatprep.subr.mxu0 0.0
    %1734 = vmatpush2.xpose.msra.mxu0 0.0
    %1735 = vmatprep.subr.mxu0 0.0
    %1736 = vmatpush2.xpose.msra.mxu0 0.0
    %1737 = vmatprep.subr.mxu0 0.0
    %1738 = vmatpush2.xpose.msra.mxu0 0.0
    %1739 = vmatprep.subr.mxu0 0.0
    %1740 = vmatpush2.xpose.msra.mxu0 0.0
    %1741 = vmatprep.subr.mxu0 0.0
    %1742 = vmatpush2.xpose.msra.mxu0 0.0
    %1743 = vmatprep.subr.mxu0 0.0
    %1744 = vmatpush2.xpose.msra.mxu0 0.0
    %1745 = vmatprep.subr.mxu0 0.0
    %1746 = vmatpush2.xpose.msra.mxu0 0.0
    %1747 = vmatprep.subr.mxu0 0.0
    %1748 = vmatpush2.xpose.msra.mxu0 0.0
    %1749 = vmatprep.subr.mxu0 0.0
    %1750 = vmatpush2.xpose.msra.mxu0 0.0
    %1751 = vmatprep.subr.mxu0 0.0
    %1752 = vmatpush2.xpose.msra.mxu0 0.0
    %1753 = vmatprep.subr.mxu0 0.0
    %1754 = vmatpush2.xpose.msra.mxu0 0.0
    %1755 = vmatprep.mubr.f32.mxu0 0.0
    %1756 = vmatmul.mubr.f32.gmra.mxu0 %v1683
    %v1757 = vpop.f32.mrf.mxu0
    %v1758 = vadd.f32 0.0, %v1757
    %v1759 = vpop.f32.mrf.mxu0
    %1760 = vmatprep.mubr.f32.mxu0 0.0
    %1761 = vmatmul.mubr.f32.gmra.mxu0 %v1685
    %v1762 = vpop.f32.mrf.mxu0
    %v1763 = vadd.f32 0.0, %v1762
    %v1764 = vpop.f32.mrf.mxu0
    %1765 = vdwg.mxu0
    %1766 = vrot.lane.b32.xlu0 %v1668, 96
    %v1767 = vpop.permute.xlu0 %1766
    %1768 = vrot.lane.b32.xlu0 %v1670, 96
    %v1769 = vpop.permute.xlu0 %1768
    %v1770 = vsel %vm165, %v1668, 0
    %v1772 = vsel %vm165, %v1670, 0
    %v1774 = vsel %vm165, %v1767, 0
    %v1776 = vsel %vm165, %v1769, 0
    %1778 = vmatprep.subr.mxu0 0.0
    %1779 = vmatpush1.xpose.msra.mxu0 0.0
    %1780 = vmatprep.subr.mxu0 0.0
    %1781 = vmatpush1.xpose.msra.mxu0 0.0
    %1782 = vmatprep.subr.mxu0 0.0
    %1783 = vmatpush1.xpose.msra.mxu0 0.0
    %1784 = vmatprep.subr.mxu0 0.0
    %1785 = vmatpush1.xpose.msra.mxu0 0.0
    %1786 = vmatprep.subr.mxu0 0.0
    %1787 = vmatpush1.xpose.msra.mxu0 0.0
    %1788 = vmatprep.subr.mxu0 0.0
    %1789 = vmatpush1.xpose.msra.mxu0 0.0
    %1790 = vmatprep.subr.mxu0 0.0
    %1791 = vmatpush1.xpose.msra.mxu0 0.0
    %1792 = vmatprep.subr.mxu0 0.0
    %1793 = vmatpush1.xpose.msra.mxu0 0.0
    %1794 = vmatprep.subr.mxu0 0.0
    %1795 = vmatpush1.xpose.msra.mxu0 0.0
    %1796 = vmatprep.subr.mxu0 0.0
    %1797 = vmatpush1.xpose.msra.mxu0 0.0
    %1798 = vmatprep.subr.mxu0 0.0
    %1799 = vmatpush1.xpose.msra.mxu0 0.0
    %1800 = vmatprep.subr.mxu0 0.0
    %1801 = vmatpush1.xpose.msra.mxu0 0.0
    %1802 = vmatprep.subr.mxu0 0.0
    %1803 = vmatpush1.xpose.msra.mxu0 0.0
    %1804 = vmatprep.subr.mxu0 0.0
    %1805 = vmatpush1.xpose.msra.mxu0 0.0
    %1806 = vmatprep.subr.mxu0 0.0
    %1807 = vmatpush1.xpose.msra.mxu0 %v1776
    %1808 = vmatprep.subr.mxu0 0.0
    %1809 = vmatpush1.xpose.msra.mxu0 %v1774
    %1810 = vmatprep.subr.mxu0 0.0
    %1811 = vmatpush2.xpose.msra.mxu0 0.0
    %1812 = vmatprep.subr.mxu0 0.0
    %1813 = vmatpush2.xpose.msra.mxu0 0.0
    %1814 = vmatprep.subr.mxu0 0.0
    %1815 = vmatpush2.xpose.msra.mxu0 0.0
    %1816 = vmatprep.subr.mxu0 0.0
    %1817 = vmatpush2.xpose.msra.mxu0 0.0
    %1818 = vmatprep.subr.mxu0 0.0
    %1819 = vmatpush2.xpose.msra.mxu0 0.0
    %1820 = vmatprep.subr.mxu0 0.0
    %1821 = vmatpush2.xpose.msra.mxu0 0.0
    %1822 = vmatprep.subr.mxu0 0.0
    %1823 = vmatpush2.xpose.msra.mxu0 0.0
    %1824 = vmatprep.subr.mxu0 0.0
    %1825 = vmatpush2.xpose.msra.mxu0 0.0
    %1826 = vmatprep.subr.mxu0 0.0
    %1827 = vmatpush2.xpose.msra.mxu0 0.0
    %1828 = vmatprep.subr.mxu0 0.0
    %1829 = vmatpush2.xpose.msra.mxu0 0.0
    %1830 = vmatprep.subr.mxu0 0.0
    %1831 = vmatpush2.xpose.msra.mxu0 0.0
    %1832 = vmatprep.subr.mxu0 0.0
    %1833 = vmatpush2.xpose.msra.mxu0 0.0
    %1834 = vmatprep.subr.mxu0 0.0
    %1835 = vmatpush2.xpose.msra.mxu0 0.0
    %1836 = vmatprep.subr.mxu0 0.0
    %1837 = vmatpush2.xpose.msra.mxu0 0.0
    %1838 = vmatprep.subr.mxu0 0.0
    %1839 = vmatpush2.xpose.msra.mxu0 0.0
    %1840 = vmatprep.subr.mxu0 0.0
    %1841 = vmatpush2.xpose.msra.mxu0 0.0
    %1842 = vmatprep.mubr.f32.mxu0 0.0
    %1843 = vmatmul.mubr.f32.gmra.mxu0 %v1770
    %v1844 = vpop.f32.mrf.mxu0
    %v1845 = vadd.f32 0.0, %v1844
    %v1846 = vpop.f32.mrf.mxu0
    %1847 = vmatprep.mubr.f32.mxu0 0.0
    %1848 = vmatmul.mubr.f32.gmra.mxu0 %v1772
    %v1849 = vpop.f32.mrf.mxu0
    %v1850 = vadd.f32 0.0, %v1849
    %v1851 = vpop.f32.mrf.mxu0
    %1852 = vdwg.mxu0
    %1853 = vrot.lane.b32.xlu0 %v1672, 96
    %v1854 = vpop.permute.xlu0 %1853
    %1855 = vrot.lane.b32.xlu0 %v1674, 96
    %v1856 = vpop.permute.xlu0 %1855
    %v1857 = vsel %vm165, %v1672, 0
    %v1859 = vsel %vm165, %v1674, 0
    %v1861 = vsel %vm165, %v1854, 0
    %v1863 = vsel %vm165, %v1856, 0
    %1865 = vmatprep.subr.mxu0 0.0
    %1866 = vmatpush1.xpose.msra.mxu0 0.0
    %1867 = vmatprep.subr.mxu0 0.0
    %1868 = vmatpush1.xpose.msra.mxu0 0.0
    %1869 = vmatprep.subr.mxu0 0.0
    %1870 = vmatpush1.xpose.msra.mxu0 0.0
    %1871 = vmatprep.subr.mxu0 0.0
    %1872 = vmatpush1.xpose.msra.mxu0 0.0
    %1873 = vmatprep.subr.mxu0 0.0
    %1874 = vmatpush1.xpose.msra.mxu0 0.0
    %1875 = vmatprep.subr.mxu0 0.0
    %1876 = vmatpush1.xpose.msra.mxu0 0.0
    %1877 = vmatprep.subr.mxu0 0.0
    %1878 = vmatpush1.xpose.msra.mxu0 0.0
    %1879 = vmatprep.subr.mxu0 0.0
    %1880 = vmatpush1.xpose.msra.mxu0 0.0
    %1881 = vmatprep.subr.mxu0 0.0
    %1882 = vmatpush1.xpose.msra.mxu0 0.0
    %1883 = vmatprep.subr.mxu0 0.0
    %1884 = vmatpush1.xpose.msra.mxu0 0.0
    %1885 = vmatprep.subr.mxu0 0.0
    %1886 = vmatpush1.xpose.msra.mxu0 0.0
    %1887 = vmatprep.subr.mxu0 0.0
    %1888 = vmatpush1.xpose.msra.mxu0 0.0
    %1889 = vmatprep.subr.mxu0 0.0
    %1890 = vmatpush1.xpose.msra.mxu0 0.0
    %1891 = vmatprep.subr.mxu0 0.0
    %1892 = vmatpush1.xpose.msra.mxu0 0.0
    %1893 = vmatprep.subr.mxu0 0.0
    %1894 = vmatpush1.xpose.msra.mxu0 %v1863
    %1895 = vmatprep.subr.mxu0 0.0
    %1896 = vmatpush1.xpose.msra.mxu0 %v1861
    %1897 = vmatprep.subr.mxu0 0.0
    %1898 = vmatpush2.xpose.msra.mxu0 0.0
    %1899 = vmatprep.subr.mxu0 0.0
    %1900 = vmatpush2.xpose.msra.mxu0 0.0
    %1901 = vmatprep.subr.mxu0 0.0
    %1902 = vmatpush2.xpose.msra.mxu0 0.0
    %1903 = vmatprep.subr.mxu0 0.0
    %1904 = vmatpush2.xpose.msra.mxu0 0.0
    %1905 = vmatprep.subr.mxu0 0.0
    %1906 = vmatpush2.xpose.msra.mxu0 0.0
    %1907 = vmatprep.subr.mxu0 0.0
    %1908 = vmatpush2.xpose.msra.mxu0 0.0
    %1909 = vmatprep.subr.mxu0 0.0
    %1910 = vmatpush2.xpose.msra.mxu0 0.0
    %1911 = vmatprep.subr.mxu0 0.0
    %1912 = vmatpush2.xpose.msra.mxu0 0.0
    %1913 = vmatprep.subr.mxu0 0.0
    %1914 = vmatpush2.xpose.msra.mxu0 0.0
    %1915 = vmatprep.subr.mxu0 0.0
    %1916 = vmatpush2.xpose.msra.mxu0 0.0
    %1917 = vmatprep.subr.mxu0 0.0
    %1918 = vmatpush2.xpose.msra.mxu0 0.0
    %1919 = vmatprep.subr.mxu0 0.0
    %1920 = vmatpush2.xpose.msra.mxu0 0.0
    %1921 = vmatprep.subr.mxu0 0.0
    %1922 = vmatpush2.xpose.msra.mxu0 0.0
    %1923 = vmatprep.subr.mxu0 0.0
    %1924 = vmatpush2.xpose.msra.mxu0 0.0
    %1925 = vmatprep.subr.mxu0 0.0
    %1926 = vmatpush2.xpose.msra.mxu0 0.0
    %1927 = vmatprep.subr.mxu0 0.0
    %1928 = vmatpush2.xpose.msra.mxu0 0.0
    %1929 = vmatprep.mubr.f32.mxu0 0.0
    %1930 = vmatmul.mubr.f32.gmra.mxu0 %v1857
    %v1931 = vpop.f32.mrf.mxu0
    %v1932 = vadd.f32 0.0, %v1931
    %v1933 = vpop.f32.mrf.mxu0
    %1934 = vmatprep.mubr.f32.mxu0 0.0
    %1935 = vmatmul.mubr.f32.gmra.mxu0 %v1859
    %v1936 = vpop.f32.mrf.mxu0
    %v1937 = vadd.f32 0.0, %v1936
    %v1938 = vpop.f32.mrf.mxu0
    %1939 = vdwg.mxu0
    %1940 = vrot.lane.b32.xlu0 %v1676, 96
    %v1941 = vpop.permute.xlu0 %1940
    %1942 = vrot.lane.b32.xlu0 %v1678, 96
    %v1943 = vpop.permute.xlu0 %1942
    %v1944 = vsel %vm165, %v1676, 0
    %v1946 = vsel %vm165, %v1678, 0
    %v1948 = vsel %vm165, %v1941, 0
    %v1950 = vsel %vm165, %v1943, 0
    %1952 = vmatprep.subr.mxu0 0.0
    %1953 = vmatpush1.xpose.msra.mxu0 0.0
    %1954 = vmatprep.subr.mxu0 0.0
    %1955 = vmatpush1.xpose.msra.mxu0 0.0
    %1956 = vmatprep.subr.mxu0 0.0
    %1957 = vmatpush1.xpose.msra.mxu0 0.0
    %1958 = vmatprep.subr.mxu0 0.0
    %1959 = vmatpush1.xpose.msra.mxu0 0.0
    %1960 = vmatprep.subr.mxu0 0.0
    %1961 = vmatpush1.xpose.msra.mxu0 0.0
    %1962 = vmatprep.subr.mxu0 0.0
    %1963 = vmatpush1.xpose.msra.mxu0 0.0
    %1964 = vmatprep.subr.mxu0 0.0
    %1965 = vmatpush1.xpose.msra.mxu0 0.0
    %1966 = vmatprep.subr.mxu0 0.0
    %1967 = vmatpush1.xpose.msra.mxu0 0.0
    %1968 = vmatprep.subr.mxu0 0.0
    %1969 = vmatpush1.xpose.msra.mxu0 0.0
    %1970 = vmatprep.subr.mxu0 0.0
    %1971 = vmatpush1.xpose.msra.mxu0 0.0
    %1972 = vmatprep.subr.mxu0 0.0
    %1973 = vmatpush1.xpose.msra.mxu0 0.0
    %1974 = vmatprep.subr.mxu0 0.0
    %1975 = vmatpush1.xpose.msra.mxu0 0.0
    %1976 = vmatprep.subr.mxu0 0.0
    %1977 = vmatpush1.xpose.msra.mxu0 0.0
    %1978 = vmatprep.subr.mxu0 0.0
    %1979 = vmatpush1.xpose.msra.mxu0 0.0
    %1980 = vmatprep.subr.mxu0 0.0
    %1981 = vmatpush1.xpose.msra.mxu0 %v1950
    %1982 = vmatprep.subr.mxu0 0.0
    %1983 = vmatpush1.xpose.msra.mxu0 %v1948
    %1984 = vmatprep.subr.mxu0 0.0
    %1985 = vmatpush2.xpose.msra.mxu0 0.0
    %1986 = vmatprep.subr.mxu0 0.0
    %1987 = vmatpush2.xpose.msra.mxu0 0.0
    %1988 = vmatprep.subr.mxu0 0.0
    %1989 = vmatpush2.xpose.msra.mxu0 0.0
    %1990 = vmatprep.subr.mxu0 0.0
    %1991 = vmatpush2.xpose.msra.mxu0 0.0
    %1992 = vmatprep.subr.mxu0 0.0
    %1993 = vmatpush2.xpose.msra.mxu0 0.0
    %1994 = vmatprep.subr.mxu0 0.0
    %1995 = vmatpush2.xpose.msra.mxu0 0.0
    %1996 = vmatprep.subr.mxu0 0.0
    %1997 = vmatpush2.xpose.msra.mxu0 0.0
    %1998 = vmatprep.subr.mxu0 0.0
    %1999 = vmatpush2.xpose.msra.mxu0 0.0
    %2000 = vmatprep.subr.mxu0 0.0
    %2001 = vmatpush2.xpose.msra.mxu0 0.0
    %2002 = vmatprep.subr.mxu0 0.0
    %2003 = vmatpush2.xpose.msra.mxu0 0.0
    %2004 = vmatprep.subr.mxu0 0.0
    %2005 = vmatpush2.xpose.msra.mxu0 0.0
    %2006 = vmatprep.subr.mxu0 0.0
    %2007 = vmatpush2.xpose.msra.mxu0 0.0
    %2008 = vmatprep.subr.mxu0 0.0
    %2009 = vmatpush2.xpose.msra.mxu0 0.0
    %2010 = vmatprep.subr.mxu0 0.0
    %2011 = vmatpush2.xpose.msra.mxu0 0.0
    %2012 = vmatprep.subr.mxu0 0.0
    %2013 = vmatpush2.xpose.msra.mxu0 0.0
    %2014 = vmatprep.subr.mxu0 0.0
    %2015 = vmatpush2.xpose.msra.mxu0 0.0
    %2016 = vmatprep.mubr.f32.mxu0 0.0
    %2017 = vmatmul.mubr.f32.gmra.mxu0 %v1944
    %v2018 = vpop.f32.mrf.mxu0
    %v2019 = vadd.f32 0.0, %v2018
    %v2020 = vpop.f32.mrf.mxu0
    %2021 = vmatprep.mubr.f32.mxu0 0.0
    %2022 = vmatmul.mubr.f32.gmra.mxu0 %v1946
    %v2023 = vpop.f32.mrf.mxu0
    %v2024 = vadd.f32 0.0, %v2023
    %v2025 = vpop.f32.mrf.mxu0
    %2026 = vdwg.mxu0
    %v2027 = vsel %vm512, %v1758, -1e+10
    %v2028 = vsel %vm513, %v1763, -1e+10
    %v2029 = vsel %vm512, %v1845, -1e+10
    %v2030 = vsel %vm513, %v1850, -1e+10
    %v2031 = vsel %vm512, %v1932, -1e+10
    %v2032 = vsel %vm513, %v1937, -1e+10
    %v2033 = vsel %vm512, %v2019, -1e+10
    %v2034 = vsel %vm513, %v2024, -1e+10
    %v2035 = vsel %vm522, %v2027, -inf
    %2036 = vmax.xlane.f32.xlu0 %v2035
    %v2037 = vpop.xlane.xlu0 %2036
    %v2038 = vsel %vm522, %v2028, -inf
    %2039 = vmax.xlane.f32.xlu0 %v2038
    %v2040 = vpop.xlane.xlu0 %2039
    %v2041 = vsel %vm522, %v2029, -inf
    %2042 = vmax.xlane.f32.xlu0 %v2041
    %v2043 = vpop.xlane.xlu0 %2042
    %v2044 = vsel %vm522, %v2030, -inf
    %2045 = vmax.xlane.f32.xlu0 %v2044
    %v2046 = vpop.xlane.xlu0 %2045
    %v2047 = vsel %vm522, %v2031, -inf
    %2048 = vmax.xlane.f32.xlu0 %v2047
    %v2049 = vpop.xlane.xlu0 %2048
    %v2050 = vsel %vm522, %v2032, -inf
    %2051 = vmax.xlane.f32.xlu0 %v2050
    %v2052 = vpop.xlane.xlu0 %2051
    %v2053 = vsel %vm522, %v2033, -inf
    %2054 = vmax.xlane.f32.xlu0 %v2053
    %v2055 = vpop.xlane.xlu0 %2054
    %v2056 = vsel %vm522, %v2034, -inf
    %2057 = vmax.xlane.f32.xlu0 %v2056
    %v2058 = vpop.xlane.xlu0 %2057
    %v2059 = vsub.f32 %v2027, %v2037
    %v2060 = vsub.f32 %v2028, %v2040
    %v2061 = vsub.f32 %v2029, %v2043
    %v2062 = vsub.f32 %v2030, %v2046
    %v2063 = vsub.f32 %v2031, %v2049
    %v2064 = vsub.f32 %v2032, %v2052
    %v2065 = vsub.f32 %v2033, %v2055
    %v2066 = vsub.f32 %v2034, %v2058
    %v2067 = vmul.f32 %v2059, 1.442695
    %v2068 = vpow.pop %v2067
    %v2069 = vmul.f32 %v2060, 1.442695
    %v2070 = vpow.pop %v2069
    %v2071 = vmul.f32 %v2061, 1.442695
    %v2072 = vpow.pop %v2071
    %v2073 = vmul.f32 %v2062, 1.442695
    %v2074 = vpow.pop %v2073
    %v2075 = vmul.f32 %v2063, 1.442695
    %v2076 = vpow.pop %v2075
    %v2077 = vmul.f32 %v2064, 1.442695
    %v2078 = vpow.pop %v2077
    %v2079 = vmul.f32 %v2065, 1.442695
    %v2080 = vpow.pop %v2079
    %v2081 = vmul.f32 %v2066, 1.442695
    %v2082 = vpow.pop %v2081
    %v2083 = vsel %vm522, %v2068, 0.0
    %2084 = vadd.xlane.f32.xlu0 %v2083
    %v2085 = vpop.xlane.xlu0 %2084
    %v2086 = vsel %vm522, %v2070, 0.0
    %2087 = vadd.xlane.f32.xlu0 %v2086
    %v2088 = vpop.xlane.xlu0 %2087
    %v2089 = vsel %vm522, %v2072, 0.0
    %2090 = vadd.xlane.f32.xlu0 %v2089
    %v2091 = vpop.xlane.xlu0 %2090
    %v2092 = vsel %vm522, %v2074, 0.0
    %2093 = vadd.xlane.f32.xlu0 %v2092
    %v2094 = vpop.xlane.xlu0 %2093
    %v2095 = vsel %vm522, %v2076, 0.0
    %2096 = vadd.xlane.f32.xlu0 %v2095
    %v2097 = vpop.xlane.xlu0 %2096
    %v2098 = vsel %vm522, %v2078, 0.0
    %2099 = vadd.xlane.f32.xlu0 %v2098
    %v2100 = vpop.xlane.xlu0 %2099
    %v2101 = vsel %vm522, %v2080, 0.0
    %2102 = vadd.xlane.f32.xlu0 %v2101
    %v2103 = vpop.xlane.xlu0 %2102
    %v2104 = vsel %vm522, %v2082, 0.0
    %2105 = vadd.xlane.f32.xlu0 %v2104
    %v2106 = vpop.xlane.xlu0 %2105
    %v2107 = vrcp.pop %v2085
    %v2108 = vrcp.pop %v2088
    %v2109 = vrcp.pop %v2091
    %v2110 = vrcp.pop %v2094
    %v2111 = vrcp.pop %v2097
    %v2112 = vrcp.pop %v2100
    %v2113 = vrcp.pop %v2103
    %v2114 = vrcp.pop %v2106
    %v2115 = vmul.f32 %v2068, %v2107
    %v2116 = vmul.f32 %v2070, %v2108
    %v2117 = vmul.f32 %v2072, %v2109
    %v2118 = vmul.f32 %v2074, %v2110
    %v2119 = vmul.f32 %v2076, %v2111
    %v2120 = vmul.f32 %v2078, %v2112
    %v2121 = vmul.f32 %v2080, %v2113
    %v2122 = vmul.f32 %v2082, %v2114
    %2123 = vrot.lane.b32.xlu0 %v1657, 64
    %v2124 = vpop.permute.xlu0 %2123
    %2125 = vrot.lane.b32.xlu0 %v1662, 64
    %v2126 = vpop.permute.xlu0 %2125
    %v2130 = vsel %vm522, %v2115, 0
    %v2133 = vsel %vm522, %v2116, 0
    %2135 = vmatprep.subr.mxu0 0.0
    %2136 = vmatpush1.msra.mxu0 0.0
    %2137 = vmatprep.subr.mxu0 0.0
    %2138 = vmatpush1.msra.mxu0 0.0
    %2139 = vmatprep.subr.mxu0 0.0
    %2140 = vmatpush1.msra.mxu0 0.0
    %2141 = vmatprep.subr.mxu0 0.0
    %2142 = vmatpush1.msra.mxu0 0.0
    %2143 = vmatprep.subr.mxu0 0.0
    %2144 = vmatpush1.msra.mxu0 0.0
    %2145 = vmatprep.subr.mxu0 0.0
    %2146 = vmatpush1.msra.mxu0 0.0
    %2147 = vmatprep.subr.mxu0 0.0
    %2148 = vmatpush1.msra.mxu0 0.0
    %2149 = vmatprep.subr.mxu0 0.0
    %2150 = vmatpush1.msra.mxu0 0.0
    %2151 = vmatprep.subr.mxu0 0.0
    %2152 = vmatpush1.msra.mxu0 0.0
    %2153 = vmatprep.subr.mxu0 0.0
    %2154 = vmatpush1.msra.mxu0 0.0
    %2155 = vmatprep.subr.mxu0 0.0
    %2156 = vmatpush1.msra.mxu0 0.0
    %2157 = vmatprep.subr.mxu0 0.0
    %2158 = vmatpush1.msra.mxu0 0.0
    %2159 = vmatprep.subr.mxu0 0.0
    %2160 = vmatpush1.msra.mxu0 0.0
    %2161 = vmatprep.subr.mxu0 0.0
    %2162 = vmatpush1.msra.mxu0 0.0
    %2163 = vmatprep.subr.mxu0 0.0
    %2164 = vmatpush1.msra.mxu0 %v2126
    %2165 = vmatprep.subr.mxu0 0.0
    %2166 = vmatpush1.msra.mxu0 %v2124
    %2167 = vmatprep.subr.mxu0 0.0
    %2168 = vmatpush2.msra.mxu0 0.0
    %2169 = vmatprep.subr.mxu0 0.0
    %2170 = vmatpush2.msra.mxu0 0.0
    %2171 = vmatprep.subr.mxu0 0.0
    %2172 = vmatpush2.msra.mxu0 0.0
    %2173 = vmatprep.subr.mxu0 0.0
    %2174 = vmatpush2.msra.mxu0 0.0
    %2175 = vmatprep.subr.mxu0 0.0
    %2176 = vmatpush2.msra.mxu0 0.0
    %2177 = vmatprep.subr.mxu0 0.0
    %2178 = vmatpush2.msra.mxu0 0.0
    %2179 = vmatprep.subr.mxu0 0.0
    %2180 = vmatpush2.msra.mxu0 0.0
    %2181 = vmatprep.subr.mxu0 0.0
    %2182 = vmatpush2.msra.mxu0 0.0
    %2183 = vmatprep.subr.mxu0 0.0
    %2184 = vmatpush2.msra.mxu0 0.0
    %2185 = vmatprep.subr.mxu0 0.0
    %2186 = vmatpush2.msra.mxu0 0.0
    %2187 = vmatprep.subr.mxu0 0.0
    %2188 = vmatpush2.msra.mxu0 0.0
    %2189 = vmatprep.subr.mxu0 0.0
    %2190 = vmatpush2.msra.mxu0 0.0
    %2191 = vmatprep.subr.mxu0 0.0
    %2192 = vmatpush2.msra.mxu0 0.0
    %2193 = vmatprep.subr.mxu0 0.0
    %2194 = vmatpush2.msra.mxu0 0.0
    %2195 = vmatprep.subr.mxu0 0.0
    %2196 = vmatpush2.msra.mxu0 0.0
    %2197 = vmatprep.subr.mxu0 0.0
    %2198 = vmatpush2.msra.mxu0 0.0
    %2199 = vmatprep.mubr.f32.mxu0 0.0
    %2200 = vmatmul.mubr.f32.gmra.mxu0 %v2130
    %v2201 = vpop.f32.mrf.mxu0
    %v2202 = vadd.f32 0.0, %v2201
    %v2203 = vpop.f32.mrf.mxu0
    %2204 = vmatprep.mubr.f32.mxu0 0.0
    %2205 = vmatmul.mubr.f32.gmra.mxu0 %v2133
    %v2206 = vpop.f32.mrf.mxu0
    %v2207 = vadd.f32 0.0, %v2206
    %v2208 = vpop.f32.mrf.mxu0
    %2209 = vdwg.mxu0
    %2210 = vrot.lane.b32.xlu0 %v1668, 64
    %v2211 = vpop.permute.xlu0 %2210
    %2212 = vrot.lane.b32.xlu0 %v1670, 64
    %v2213 = vpop.permute.xlu0 %2212
    %v2217 = vsel %vm522, %v2117, 0
    %v2220 = vsel %vm522, %v2118, 0
    %2222 = vmatprep.subr.mxu0 0.0
    %2223 = vmatpush1.msra.mxu0 0.0
    %2224 = vmatprep.subr.mxu0 0.0
    %2225 = vmatpush1.msra.mxu0 0.0
    %2226 = vmatprep.subr.mxu0 0.0
    %2227 = vmatpush1.msra.mxu0 0.0
    %2228 = vmatprep.subr.mxu0 0.0
    %2229 = vmatpush1.msra.mxu0 0.0
    %2230 = vmatprep.subr.mxu0 0.0
    %2231 = vmatpush1.msra.mxu0 0.0
    %2232 = vmatprep.subr.mxu0 0.0
    %2233 = vmatpush1.msra.mxu0 0.0
    %2234 = vmatprep.subr.mxu0 0.0
    %2235 = vmatpush1.msra.mxu0 0.0
    %2236 = vmatprep.subr.mxu0 0.0
    %2237 = vmatpush1.msra.mxu0 0.0
    %2238 = vmatprep.subr.mxu0 0.0
    %2239 = vmatpush1.msra.mxu0 0.0
    %2240 = vmatprep.subr.mxu0 0.0
    %2241 = vmatpush1.msra.mxu0 0.0
    %2242 = vmatprep.subr.mxu0 0.0
    %2243 = vmatpush1.msra.mxu0 0.0
    %2244 = vmatprep.subr.mxu0 0.0
    %2245 = vmatpush1.msra.mxu0 0.0
    %2246 = vmatprep.subr.mxu0 0.0
    %2247 = vmatpush1.msra.mxu0 0.0
    %2248 = vmatprep.subr.mxu0 0.0
    %2249 = vmatpush1.msra.mxu0 0.0
    %2250 = vmatprep.subr.mxu0 0.0
    %2251 = vmatpush1.msra.mxu0 %v2213
    %2252 = vmatprep.subr.mxu0 0.0
    %2253 = vmatpush1.msra.mxu0 %v2211
    %2254 = vmatprep.subr.mxu0 0.0
    %2255 = vmatpush2.msra.mxu0 0.0
    %2256 = vmatprep.subr.mxu0 0.0
    %2257 = vmatpush2.msra.mxu0 0.0
    %2258 = vmatprep.subr.mxu0 0.0
    %2259 = vmatpush2.msra.mxu0 0.0
    %2260 = vmatprep.subr.mxu0 0.0
    %2261 = vmatpush2.msra.mxu0 0.0
    %2262 = vmatprep.subr.mxu0 0.0
    %2263 = vmatpush2.msra.mxu0 0.0
    %2264 = vmatprep.subr.mxu0 0.0
    %2265 = vmatpush2.msra.mxu0 0.0
    %2266 = vmatprep.subr.mxu0 0.0
    %2267 = vmatpush2.msra.mxu0 0.0
    %2268 = vmatprep.subr.mxu0 0.0
    %2269 = vmatpush2.msra.mxu0 0.0
    %2270 = vmatprep.subr.mxu0 0.0
    %2271 = vmatpush2.msra.mxu0 0.0
    %2272 = vmatprep.subr.mxu0 0.0
    %2273 = vmatpush2.msra.mxu0 0.0
    %2274 = vmatprep.subr.mxu0 0.0
    %2275 = vmatpush2.msra.mxu0 0.0
    %2276 = vmatprep.subr.mxu0 0.0
    %2277 = vmatpush2.msra.mxu0 0.0
    %2278 = vmatprep.subr.mxu0 0.0
    %2279 = vmatpush2.msra.mxu0 0.0
    %2280 = vmatprep.subr.mxu0 0.0
    %2281 = vmatpush2.msra.mxu0 0.0
    %2282 = vmatprep.subr.mxu0 0.0
    %2283 = vmatpush2.msra.mxu0 0.0
    %2284 = vmatprep.subr.mxu0 0.0
    %2285 = vmatpush2.msra.mxu0 0.0
    %2286 = vmatprep.mubr.f32.mxu0 0.0
    %2287 = vmatmul.mubr.f32.gmra.mxu0 %v2217
    %v2288 = vpop.f32.mrf.mxu0
    %v2289 = vadd.f32 0.0, %v2288
    %v2290 = vpop.f32.mrf.mxu0
    %2291 = vmatprep.mubr.f32.mxu0 0.0
    %2292 = vmatmul.mubr.f32.gmra.mxu0 %v2220
    %v2293 = vpop.f32.mrf.mxu0
    %v2294 = vadd.f32 0.0, %v2293
    %v2295 = vpop.f32.mrf.mxu0
    %2296 = vdwg.mxu0
    %2297 = vrot.lane.b32.xlu0 %v1672, 64
    %v2298 = vpop.permute.xlu0 %2297
    %2299 = vrot.lane.b32.xlu0 %v1674, 64
    %v2300 = vpop.permute.xlu0 %2299
    %v2304 = vsel %vm522, %v2119, 0
    %v2307 = vsel %vm522, %v2120, 0
    %2309 = vmatprep.subr.mxu0 0.0
    %2310 = vmatpush1.msra.mxu0 0.0
    %2311 = vmatprep.subr.mxu0 0.0
    %2312 = vmatpush1.msra.mxu0 0.0
    %2313 = vmatprep.subr.mxu0 0.0
    %2314 = vmatpush1.msra.mxu0 0.0
    %2315 = vmatprep.subr.mxu0 0.0
    %2316 = vmatpush1.msra.mxu0 0.0
    %2317 = vmatprep.subr.mxu0 0.0
    %2318 = vmatpush1.msra.mxu0 0.0
    %2319 = vmatprep.subr.mxu0 0.0
    %2320 = vmatpush1.msra.mxu0 0.0
    %2321 = vmatprep.subr.mxu0 0.0
    %2322 = vmatpush1.msra.mxu0 0.0
    %2323 = vmatprep.subr.mxu0 0.0
    %2324 = vmatpush1.msra.mxu0 0.0
    %2325 = vmatprep.subr.mxu0 0.0
    %2326 = vmatpush1.msra.mxu0 0.0
    %2327 = vmatprep.subr.mxu0 0.0
    %2328 = vmatpush1.msra.mxu0 0.0
    %2329 = vmatprep.subr.mxu0 0.0
    %2330 = vmatpush1.msra.mxu0 0.0
    %2331 = vmatprep.subr.mxu0 0.0
    %2332 = vmatpush1.msra.mxu0 0.0
    %2333 = vmatprep.subr.mxu0 0.0
    %2334 = vmatpush1.msra.mxu0 0.0
    %2335 = vmatprep.subr.mxu0 0.0
    %2336 = vmatpush1.msra.mxu0 0.0
    %2337 = vmatprep.subr.mxu0 0.0
    %2338 = vmatpush1.msra.mxu0 %v2300
    %2339 = vmatprep.subr.mxu0 0.0
    %2340 = vmatpush1.msra.mxu0 %v2298
    %2341 = vmatprep.subr.mxu0 0.0
    %2342 = vmatpush2.msra.mxu0 0.0
    %2343 = vmatprep.subr.mxu0 0.0
    %2344 = vmatpush2.msra.mxu0 0.0
    %2345 = vmatprep.subr.mxu0 0.0
    %2346 = vmatpush2.msra.mxu0 0.0
    %2347 = vmatprep.subr.mxu0 0.0
    %2348 = vmatpush2.msra.mxu0 0.0
    %2349 = vmatprep.subr.mxu0 0.0
    %2350 = vmatpush2.msra.mxu0 0.0
    %2351 = vmatprep.subr.mxu0 0.0
    %2352 = vmatpush2.msra.mxu0 0.0
    %2353 = vmatprep.subr.mxu0 0.0
    %2354 = vmatpush2.msra.mxu0 0.0
    %2355 = vmatprep.subr.mxu0 0.0
    %2356 = vmatpush2.msra.mxu0 0.0
    %2357 = vmatprep.subr.mxu0 0.0
    %2358 = vmatpush2.msra.mxu0 0.0
    %2359 = vmatprep.subr.mxu0 0.0
    %2360 = vmatpush2.msra.mxu0 0.0
    %2361 = vmatprep.subr.mxu0 0.0
    %2362 = vmatpush2.msra.mxu0 0.0
    %2363 = vmatprep.subr.mxu0 0.0
    %2364 = vmatpush2.msra.mxu0 0.0
    %2365 = vmatprep.subr.mxu0 0.0
    %2366 = vmatpush2.msra.mxu0 0.0
    %2367 = vmatprep.subr.mxu0 0.0
    %2368 = vmatpush2.msra.mxu0 0.0
    %2369 = vmatprep.subr.mxu0 0.0
    %2370 = vmatpush2.msra.mxu0 0.0
    %2371 = vmatprep.subr.mxu0 0.0
    %2372 = vmatpush2.msra.mxu0 0.0
    %2373 = vmatprep.mubr.f32.mxu0 0.0
    %2374 = vmatmul.mubr.f32.gmra.mxu0 %v2304
    %v2375 = vpop.f32.mrf.mxu0
    %v2376 = vadd.f32 0.0, %v2375
    %v2377 = vpop.f32.mrf.mxu0
    %2378 = vmatprep.mubr.f32.mxu0 0.0
    %2379 = vmatmul.mubr.f32.gmra.mxu0 %v2307
    %v2380 = vpop.f32.mrf.mxu0
    %v2381 = vadd.f32 0.0, %v2380
    %v2382 = vpop.f32.mrf.mxu0
    %2383 = vdwg.mxu0
    %2384 = vrot.lane.b32.xlu0 %v1676, 64
    %v2385 = vpop.permute.xlu0 %2384
    %2386 = vrot.lane.b32.xlu0 %v1678, 64
    %v2387 = vpop.permute.xlu0 %2386
    %v2391 = vsel %vm522, %v2121, 0
    %v2394 = vsel %vm522, %v2122, 0
    %2396 = vmatprep.subr.mxu0 0.0
    %2397 = vmatpush1.msra.mxu0 0.0
    %2398 = vmatprep.subr.mxu0 0.0
    %2399 = vmatpush1.msra.mxu0 0.0
    %2400 = vmatprep.subr.mxu0 0.0
    %2401 = vmatpush1.msra.mxu0 0.0
    %2402 = vmatprep.subr.mxu0 0.0
    %2403 = vmatpush1.msra.mxu0 0.0
    %2404 = vmatprep.subr.mxu0 0.0
    %2405 = vmatpush1.msra.mxu0 0.0
    %2406 = vmatprep.subr.mxu0 0.0
    %2407 = vmatpush1.msra.mxu0 0.0
    %2408 = vmatprep.subr.mxu0 0.0
    %2409 = vmatpush1.msra.mxu0 0.0
    %2410 = vmatprep.subr.mxu0 0.0
    %2411 = vmatpush1.msra.mxu0 0.0
    %2412 = vmatprep.subr.mxu0 0.0
    %2413 = vmatpush1.msra.mxu0 0.0
    %2414 = vmatprep.subr.mxu0 0.0
    %2415 = vmatpush1.msra.mxu0 0.0
    %2416 = vmatprep.subr.mxu0 0.0
    %2417 = vmatpush1.msra.mxu0 0.0
    %2418 = vmatprep.subr.mxu0 0.0
    %2419 = vmatpush1.msra.mxu0 0.0
    %2420 = vmatprep.subr.mxu0 0.0
    %2421 = vmatpush1.msra.mxu0 0.0
    %2422 = vmatprep.subr.mxu0 0.0
    %2423 = vmatpush1.msra.mxu0 0.0
    %2424 = vmatprep.subr.mxu0 0.0
    %2425 = vmatpush1.msra.mxu0 %v2387
    %2426 = vmatprep.subr.mxu0 0.0
    %2427 = vmatpush1.msra.mxu0 %v2385
    %2428 = vmatprep.subr.mxu0 0.0
    %2429 = vmatpush2.msra.mxu0 0.0
    %2430 = vmatprep.subr.mxu0 0.0
    %2431 = vmatpush2.msra.mxu0 0.0
    %2432 = vmatprep.subr.mxu0 0.0
    %2433 = vmatpush2.msra.mxu0 0.0
    %2434 = vmatprep.subr.mxu0 0.0
    %2435 = vmatpush2.msra.mxu0 0.0
    %2436 = vmatprep.subr.mxu0 0.0
    %2437 = vmatpush2.msra.mxu0 0.0
    %2438 = vmatprep.subr.mxu0 0.0
    %2439 = vmatpush2.msra.mxu0 0.0
    %2440 = vmatprep.subr.mxu0 0.0
    %2441 = vmatpush2.msra.mxu0 0.0
    %2442 = vmatprep.subr.mxu0 0.0
    %2443 = vmatpush2.msra.mxu0 0.0
    %2444 = vmatprep.subr.mxu0 0.0
    %2445 = vmatpush2.msra.mxu0 0.0
    %2446 = vmatprep.subr.mxu0 0.0
    %2447 = vmatpush2.msra.mxu0 0.0
    %2448 = vmatprep.subr.mxu0 0.0
    %2449 = vmatpush2.msra.mxu0 0.0
    %2450 = vmatprep.subr.mxu0 0.0
    %2451 = vmatpush2.msra.mxu0 0.0
    %2452 = vmatprep.subr.mxu0 0.0
    %2453 = vmatpush2.msra.mxu0 0.0
    %2454 = vmatprep.subr.mxu0 0.0
    %2455 = vmatpush2.msra.mxu0 0.0
    %2456 = vmatprep.subr.mxu0 0.0
    %2457 = vmatpush2.msra.mxu0 0.0
    %2458 = vmatprep.subr.mxu0 0.0
    %2459 = vmatpush2.msra.mxu0 0.0
    %2460 = vmatprep.mubr.f32.mxu0 0.0
    %2461 = vmatmul.mubr.f32.gmra.mxu0 %v2391
    %v2462 = vpop.f32.mrf.mxu0
    %v2463 = vadd.f32 0.0, %v2462
    %v2464 = vpop.f32.mrf.mxu0
    %2465 = vmatprep.mubr.f32.mxu0 0.0
    %2466 = vmatmul.mubr.f32.gmra.mxu0 %v2394
    %v2467 = vpop.f32.mrf.mxu0
    %v2468 = vadd.f32 0.0, %v2467
    %v2469 = vpop.f32.mrf.mxu0
    %2470 = vdwg.mxu0
    %v2472 = vsel %vm165, %v2289, 0
    %v2475 = vsel %vm165, %v2294, 0
    %2477 = vmatprep.subr.mxu0 0.0
    %2478 = vmatpush1.msra.mxu0 0.0
    %2479 = vmatprep.subr.mxu0 0.0
    %2480 = vmatpush1.msra.mxu0 0.0
    %2481 = vmatprep.subr.mxu0 0.0
    %2482 = vmatpush1.msra.mxu0 0.0
    %2483 = vmatprep.subr.mxu0 0.0
    %2484 = vmatpush1.msra.mxu0 0.0
    %2485 = vmatprep.subr.mxu0 0.0
    %2486 = vmatpush1.msra.mxu0 0.0
    %2487 = vmatprep.subr.mxu0 0.0
    %2488 = vmatpush1.msra.mxu0 0.0
    %2489 = vmatprep.subr.mxu0 0.0
    %2490 = vmatpush1.msra.mxu0 0.0
    %2491 = vmatprep.subr.mxu0 0.0
    %2492 = vmatpush1.msra.mxu0 0.0
    %2493 = vmatprep.subr.mxu0 0.0
    %2494 = vmatpush1.msra.mxu0 0.0
    %2495 = vmatprep.subr.mxu0 0.0
    %2496 = vmatpush1.msra.mxu0 0.0
    %2497 = vmatprep.subr.mxu0 0.0
    %2498 = vmatpush1.msra.mxu0 0.0
    %2499 = vmatprep.subr.mxu0 0.0
    %2500 = vmatpush1.msra.mxu0 0.0
    %2501 = vmatprep.subr.mxu0 0.0
    %2502 = vmatpush1.msra.mxu0 0.0
    %2503 = vmatprep.subr.mxu0 0.0
    %2504 = vmatpush1.msra.mxu0 0.0
    %2505 = vmatprep.subr.mxu0 0.0
    %2506 = vmatpush1.msra.mxu0 0.0
    %2507 = vmatprep.subr.mxu0 0.0
    %2508 = vmatpush1.msra.mxu0 %v1554
    %2509 = vmatprep.subr.mxu0 0.0
    %2510 = vmatpush2.msra.mxu0 0.0
    %2511 = vmatprep.subr.mxu0 0.0
    %2512 = vmatpush2.msra.mxu0 0.0
    %2513 = vmatprep.subr.mxu0 0.0
    %2514 = vmatpush2.msra.mxu0 0.0
    %2515 = vmatprep.subr.mxu0 0.0
    %2516 = vmatpush2.msra.mxu0 0.0
    %2517 = vmatprep.subr.mxu0 0.0
    %2518 = vmatpush2.msra.mxu0 0.0
    %2519 = vmatprep.subr.mxu0 0.0
    %2520 = vmatpush2.msra.mxu0 0.0
    %2521 = vmatprep.subr.mxu0 0.0
    %2522 = vmatpush2.msra.mxu0 0.0
    %2523 = vmatprep.subr.mxu0 0.0
    %2524 = vmatpush2.msra.mxu0 0.0
    %2525 = vmatprep.subr.mxu0 0.0
    %2526 = vmatpush2.msra.mxu0 0.0
    %2527 = vmatprep.subr.mxu0 0.0
    %2528 = vmatpush2.msra.mxu0 0.0
    %2529 = vmatprep.subr.mxu0 0.0
    %2530 = vmatpush2.msra.mxu0 0.0
    %2531 = vmatprep.subr.mxu0 0.0
    %2532 = vmatpush2.msra.mxu0 0.0
    %2533 = vmatprep.subr.mxu0 0.0
    %2534 = vmatpush2.msra.mxu0 0.0
    %2535 = vmatprep.subr.mxu0 0.0
    %2536 = vmatpush2.msra.mxu0 0.0
    %2537 = vmatprep.subr.mxu0 0.0
    %2538 = vmatpush2.msra.mxu0 0.0
    %2539 = vmatprep.subr.mxu0 0.0
    %2540 = vmatpush2.msra.mxu0 0.0
    %2541 = vmatprep.mubr.f32.mxu0 0.0
    %2542 = vmatmul.mubr.f32.gmra.mxu0 %v2472
    %v2543 = vpop.f32.mrf.mxu0
    %v2544 = vadd.f32 0.0, %v2543
    %v2545 = vpop.f32.mrf.mxu0
    %2546 = vmatprep.mubr.f32.mxu0 0.0
    %2547 = vmatmul.mubr.f32.gmra.mxu0 %v2475
    %v2548 = vpop.f32.mrf.mxu0
    %v2549 = vadd.f32 0.0, %v2548
    %v2550 = vpop.f32.mrf.mxu0
    %2551 = vdwg.mxu0
    %v2553 = vsel %vm165, %v2202, 0
    %v2556 = vsel %vm165, %v2207, 0
    %2558 = vmatprep.subr.mxu0 0.0
    %2559 = vmatpush1.msra.mxu0 0.0
    %2560 = vmatprep.subr.mxu0 0.0
    %2561 = vmatpush1.msra.mxu0 0.0
    %2562 = vmatprep.subr.mxu0 0.0
    %2563 = vmatpush1.msra.mxu0 0.0
    %2564 = vmatprep.subr.mxu0 0.0
    %2565 = vmatpush1.msra.mxu0 0.0
    %2566 = vmatprep.subr.mxu0 0.0
    %2567 = vmatpush1.msra.mxu0 0.0
    %2568 = vmatprep.subr.mxu0 0.0
    %2569 = vmatpush1.msra.mxu0 0.0
    %2570 = vmatprep.subr.mxu0 0.0
    %2571 = vmatpush1.msra.mxu0 0.0
    %2572 = vmatprep.subr.mxu0 0.0
    %2573 = vmatpush1.msra.mxu0 0.0
    %2574 = vmatprep.subr.mxu0 0.0
    %2575 = vmatpush1.msra.mxu0 0.0
    %2576 = vmatprep.subr.mxu0 0.0
    %2577 = vmatpush1.msra.mxu0 0.0
    %2578 = vmatprep.subr.mxu0 0.0
    %2579 = vmatpush1.msra.mxu0 0.0
    %2580 = vmatprep.subr.mxu0 0.0
    %2581 = vmatpush1.msra.mxu0 0.0
    %2582 = vmatprep.subr.mxu0 0.0
    %2583 = vmatpush1.msra.mxu0 0.0
    %2584 = vmatprep.subr.mxu0 0.0
    %2585 = vmatpush1.msra.mxu0 0.0
    %2586 = vmatprep.subr.mxu0 0.0
    %2587 = vmatpush1.msra.mxu0 0.0
    %2588 = vmatprep.subr.mxu0 0.0
    %2589 = vmatpush1.msra.mxu0 %v1553
    %2590 = vmatprep.subr.mxu0 0.0
    %2591 = vmatpush2.msra.mxu0 0.0
    %2592 = vmatprep.subr.mxu0 0.0
    %2593 = vmatpush2.msra.mxu0 0.0
    %2594 = vmatprep.subr.mxu0 0.0
    %2595 = vmatpush2.msra.mxu0 0.0
    %2596 = vmatprep.subr.mxu0 0.0
    %2597 = vmatpush2.msra.mxu0 0.0
    %2598 = vmatprep.subr.mxu0 0.0
    %2599 = vmatpush2.msra.mxu0 0.0
    %2600 = vmatprep.subr.mxu0 0.0
    %2601 = vmatpush2.msra.mxu0 0.0
    %2602 = vmatprep.subr.mxu0 0.0
    %2603 = vmatpush2.msra.mxu0 0.0
    %2604 = vmatprep.subr.mxu0 0.0
    %2605 = vmatpush2.msra.mxu0 0.0
    %2606 = vmatprep.subr.mxu0 0.0
    %2607 = vmatpush2.msra.mxu0 0.0
    %2608 = vmatprep.subr.mxu0 0.0
    %2609 = vmatpush2.msra.mxu0 0.0
    %2610 = vmatprep.subr.mxu0 0.0
    %2611 = vmatpush2.msra.mxu0 0.0
    %2612 = vmatprep.subr.mxu0 0.0
    %2613 = vmatpush2.msra.mxu0 0.0
    %2614 = vmatprep.subr.mxu0 0.0
    %2615 = vmatpush2.msra.mxu0 0.0
    %2616 = vmatprep.subr.mxu0 0.0
    %2617 = vmatpush2.msra.mxu0 0.0
    %2618 = vmatprep.subr.mxu0 0.0
    %2619 = vmatpush2.msra.mxu0 0.0
    %2620 = vmatprep.subr.mxu0 0.0
    %2621 = vmatpush2.msra.mxu0 0.0
    %2622 = vmatprep.mubr.f32.mxu0 0.0
    %2623 = vmatmul.mubr.f32.gmra.mxu0 %v2553
    %v2624 = vpop.f32.mrf.mxu0
    %v2625 = vadd.f32 %v2544, %v2624
    %v2626 = vpop.f32.mrf.mxu0
    %2627 = vmatprep.mubr.f32.mxu0 0.0
    %2628 = vmatmul.mubr.f32.gmra.mxu0 %v2556
    %v2629 = vpop.f32.mrf.mxu0
    %v2630 = vadd.f32 %v2549, %v2629
    %v2631 = vpop.f32.mrf.mxu0
    %2632 = vdwg.mxu0
    %v2634 = vsel %vm165, %v2376, 0
    %v2637 = vsel %vm165, %v2381, 0
    %2639 = vmatprep.subr.mxu0 0.0
    %2640 = vmatpush1.msra.mxu0 0.0
    %2641 = vmatprep.subr.mxu0 0.0
    %2642 = vmatpush1.msra.mxu0 0.0
    %2643 = vmatprep.subr.mxu0 0.0
    %2644 = vmatpush1.msra.mxu0 0.0
    %2645 = vmatprep.subr.mxu0 0.0
    %2646 = vmatpush1.msra.mxu0 0.0
    %2647 = vmatprep.subr.mxu0 0.0
    %2648 = vmatpush1.msra.mxu0 0.0
    %2649 = vmatprep.subr.mxu0 0.0
    %2650 = vmatpush1.msra.mxu0 0.0
    %2651 = vmatprep.subr.mxu0 0.0
    %2652 = vmatpush1.msra.mxu0 0.0
    %2653 = vmatprep.subr.mxu0 0.0
    %2654 = vmatpush1.msra.mxu0 0.0
    %2655 = vmatprep.subr.mxu0 0.0
    %2656 = vmatpush1.msra.mxu0 0.0
    %2657 = vmatprep.subr.mxu0 0.0
    %2658 = vmatpush1.msra.mxu0 0.0
    %2659 = vmatprep.subr.mxu0 0.0
    %2660 = vmatpush1.msra.mxu0 0.0
    %2661 = vmatprep.subr.mxu0 0.0
    %2662 = vmatpush1.msra.mxu0 0.0
    %2663 = vmatprep.subr.mxu0 0.0
    %2664 = vmatpush1.msra.mxu0 0.0
    %2665 = vmatprep.subr.mxu0 0.0
    %2666 = vmatpush1.msra.mxu0 0.0
    %2667 = vmatprep.subr.mxu0 0.0
    %2668 = vmatpush1.msra.mxu0 0.0
    %2669 = vmatprep.subr.mxu0 0.0
    %2670 = vmatpush1.msra.mxu0 %v1555
    %2671 = vmatprep.subr.mxu0 0.0
    %2672 = vmatpush2.msra.mxu0 0.0
    %2673 = vmatprep.subr.mxu0 0.0
    %2674 = vmatpush2.msra.mxu0 0.0
    %2675 = vmatprep.subr.mxu0 0.0
    %2676 = vmatpush2.msra.mxu0 0.0
    %2677 = vmatprep.subr.mxu0 0.0
    %2678 = vmatpush2.msra.mxu0 0.0
    %2679 = vmatprep.subr.mxu0 0.0
    %2680 = vmatpush2.msra.mxu0 0.0
    %2681 = vmatprep.subr.mxu0 0.0
    %2682 = vmatpush2.msra.mxu0 0.0
    %2683 = vmatprep.subr.mxu0 0.0
    %2684 = vmatpush2.msra.mxu0 0.0
    %2685 = vmatprep.subr.mxu0 0.0
    %2686 = vmatpush2.msra.mxu0 0.0
    %2687 = vmatprep.subr.mxu0 0.0
    %2688 = vmatpush2.msra.mxu0 0.0
    %2689 = vmatprep.subr.mxu0 0.0
    %2690 = vmatpush2.msra.mxu0 0.0
    %2691 = vmatprep.subr.mxu0 0.0
    %2692 = vmatpush2.msra.mxu0 0.0
    %2693 = vmatprep.subr.mxu0 0.0
    %2694 = vmatpush2.msra.mxu0 0.0
    %2695 = vmatprep.subr.mxu0 0.0
    %2696 = vmatpush2.msra.mxu0 0.0
    %2697 = vmatprep.subr.mxu0 0.0
    %2698 = vmatpush2.msra.mxu0 0.0
    %2699 = vmatprep.subr.mxu0 0.0
    %2700 = vmatpush2.msra.mxu0 0.0
    %2701 = vmatprep.subr.mxu0 0.0
    %2702 = vmatpush2.msra.mxu0 0.0
    %2703 = vmatprep.mubr.f32.mxu0 0.0
    %2704 = vmatmul.mubr.f32.gmra.mxu0 %v2634
    %v2705 = vpop.f32.mrf.mxu0
    %v2706 = vadd.f32 0.0, %v2705
    %v2707 = vpop.f32.mrf.mxu0
    %2708 = vmatprep.mubr.f32.mxu0 0.0
    %2709 = vmatmul.mubr.f32.gmra.mxu0 %v2637
    %v2710 = vpop.f32.mrf.mxu0
    %v2711 = vadd.f32 0.0, %v2710
    %v2712 = vpop.f32.mrf.mxu0
    %2713 = vdwg.mxu0
    %v2714 = vadd.f32 %v2625, %v2706
    %v2715 = vadd.f32 %v2630, %v2711
    %v2717 = vsel %vm165, %v2463, 0
    %v2720 = vsel %vm165, %v2468, 0
    %2722 = vmatprep.subr.mxu0 0.0
    %2723 = vmatpush1.msra.mxu0 0.0
    %2724 = vmatprep.subr.mxu0 0.0
    %2725 = vmatpush1.msra.mxu0 0.0
    %2726 = vmatprep.subr.mxu0 0.0
    %2727 = vmatpush1.msra.mxu0 0.0
    %2728 = vmatprep.subr.mxu0 0.0
    %2729 = vmatpush1.msra.mxu0 0.0
    %2730 = vmatprep.subr.mxu0 0.0
    %2731 = vmatpush1.msra.mxu0 0.0
    %2732 = vmatprep.subr.mxu0 0.0
    %2733 = vmatpush1.msra.mxu0 0.0
    %2734 = vmatprep.subr.mxu0 0.0
    %2735 = vmatpush1.msra.mxu0 0.0
    %2736 = vmatprep.subr.mxu0 0.0
    %2737 = vmatpush1.msra.mxu0 0.0
    %2738 = vmatprep.subr.mxu0 0.0
    %2739 = vmatpush1.msra.mxu0 0.0
    %2740 = vmatprep.subr.mxu0 0.0
    %2741 = vmatpush1.msra.mxu0 0.0
    %2742 = vmatprep.subr.mxu0 0.0
    %2743 = vmatpush1.msra.mxu0 0.0
    %2744 = vmatprep.subr.mxu0 0.0
    %2745 = vmatpush1.msra.mxu0 0.0
    %2746 = vmatprep.subr.mxu0 0.0
    %2747 = vmatpush1.msra.mxu0 0.0
    %2748 = vmatprep.subr.mxu0 0.0
    %2749 = vmatpush1.msra.mxu0 0.0
    %2750 = vmatprep.subr.mxu0 0.0
    %2751 = vmatpush1.msra.mxu0 0.0
    %2752 = vmatprep.subr.mxu0 0.0
    %2753 = vmatpush1.msra.mxu0 %v1556
    %2754 = vmatprep.subr.mxu0 0.0
    %2755 = vmatpush2.msra.mxu0 0.0
    %2756 = vmatprep.subr.mxu0 0.0
    %2757 = vmatpush2.msra.mxu0 0.0
    %2758 = vmatprep.subr.mxu0 0.0
    %2759 = vmatpush2.msra.mxu0 0.0
    %2760 = vmatprep.subr.mxu0 0.0
    %2761 = vmatpush2.msra.mxu0 0.0
    %2762 = vmatprep.subr.mxu0 0.0
    %2763 = vmatpush2.msra.mxu0 0.0
    %2764 = vmatprep.subr.mxu0 0.0
    %2765 = vmatpush2.msra.mxu0 0.0
    %2766 = vmatprep.subr.mxu0 0.0
    %2767 = vmatpush2.msra.mxu0 0.0
    %2768 = vmatprep.subr.mxu0 0.0
    %2769 = vmatpush2.msra.mxu0 0.0
    %2770 = vmatprep.subr.mxu0 0.0
    %2771 = vmatpush2.msra.mxu0 0.0
    %2772 = vmatprep.subr.mxu0 0.0
    %2773 = vmatpush2.msra.mxu0 0.0
    %2774 = vmatprep.subr.mxu0 0.0
    %2775 = vmatpush2.msra.mxu0 0.0
    %2776 = vmatprep.subr.mxu0 0.0
    %2777 = vmatpush2.msra.mxu0 0.0
    %2778 = vmatprep.subr.mxu0 0.0
    %2779 = vmatpush2.msra.mxu0 0.0
    %2780 = vmatprep.subr.mxu0 0.0
    %2781 = vmatpush2.msra.mxu0 0.0
    %2782 = vmatprep.subr.mxu0 0.0
    %2783 = vmatpush2.msra.mxu0 0.0
    %2784 = vmatprep.subr.mxu0 0.0
    %2785 = vmatpush2.msra.mxu0 0.0
    %2786 = vmatprep.mubr.f32.mxu0 0.0
    %2787 = vmatmul.mubr.f32.gmra.mxu0 %v2717
    %v2788 = vpop.f32.mrf.mxu0
    %v2789 = vadd.f32 0.0, %v2788
    %v2790 = vpop.f32.mrf.mxu0
    %2791 = vmatprep.mubr.f32.mxu0 0.0
    %2792 = vmatmul.mubr.f32.gmra.mxu0 %v2720
    %v2793 = vpop.f32.mrf.mxu0
    %v2794 = vadd.f32 0.0, %v2793
    %v2795 = vpop.f32.mrf.mxu0
    %2796 = vdwg.mxu0
    %v2797 = vadd.f32 %v2714, %v2789
    %v2798 = vadd.f32 %v2715, %v2794
    %v2799 = vlaneseq
    %v2800 = vshrl.u32 %v2799, 7
    %v2801 = vsub.s32 0, %v2800
    %v2802 = vrot.slane %v1573, %v2801
    %v2803 = vadd.f32 %v2797, %v2802
    %v2804 = vadd.f32 %v2798, %v2802
    %v2805 = vadd.f32 %v1545, %v2803
    %v2806 = vadd.f32 %v1546, %v2804
    %v2807 = vsel %vm65, %v2805, 0.0
    %2808 = vadd.xlane.f32.xlu0 %v2807
    %v2809 = vpop.xlane.xlu0 %2808
    %v2810 = vsel %vm65, %v2806, 0.0
    %2811 = vadd.xlane.f32.xlu0 %v2810
    %v2812 = vpop.xlane.xlu0 %2811
    %v2813 = vmul.f32 %v2809, %v1301
    %v2814 = vmul.f32 %v2812, %v1301
    %v2815 = vsub.f32 %v2805, %v2813
    %v2816 = vsub.f32 %v2806, %v2814
    %v2817 = vmul.f32 %v2815, %v2815
    %v2818 = vmul.f32 %v2816, %v2816
    %v2819 = vsel %vm65, %v2817, 0.0
    %2820 = vadd.xlane.f32.xlu0 %v2819
    %v2821 = vpop.xlane.xlu0 %2820
    %v2822 = vsel %vm65, %v2818, 0.0
    %2823 = vadd.xlane.f32.xlu0 %v2822
    %v2824 = vpop.xlane.xlu0 %2823
    %v2825 = vmul.f32 %v2821, %v1301
    %v2826 = vmul.f32 %v2824, %v1301
    %v2827 = vadd.f32 %v2825, 1e-05
    %v2828 = vadd.f32 %v2826, 1e-05
    %v2829 = vrsqrt.pop %v2827
    %v2830 = vrsqrt.pop %v2828
    %v2831 = vmul.f32 %v2815, %v2829
    %v2832 = vmul.f32 %v2816, %v2830
    %v2833 = vlaneseq
    %v2834 = vshrl.u32 %v2833, 7
    %v2835 = vsub.s32 0, %v2834
    %v2836 = vrot.slane %v1574, %v2835
    %v2837 = vmul.f32 %v2831, %v2836
    %v2838 = vmul.f32 %v2832, %v2836
    %v2839 = vlaneseq
    %v2840 = vshrl.u32 %v2839, 7
    %v2841 = vsub.s32 0, %v2840
    %v2842 = vrot.slane %v1575, %v2841
    %v2843 = vadd.f32 %v2837, %v2842
    %v2844 = vadd.f32 %v2838, %v2842
    %v2845 = vlaneseq
    %v2846 = vshrl.u32 %v2845, 7
    %v2847 = vsub.s32 0, %v2846
    %v2848 = vrot.slane %v1576, %v2847
    %v2850 = vsel %vm65, %v2843, 0
    %v2853 = vsel %vm65, %v2844, 0
    %2855 = vmatprep.subr.mxu0 0.0
    %2856 = vmatpush1.msra.mxu0 0.0
    %2857 = vmatprep.subr.mxu0 0.0
    %2858 = vmatpush1.msra.mxu0 0.0
    %2859 = vmatprep.subr.mxu0 0.0
    %2860 = vmatpush1.msra.mxu0 0.0
    %2861 = vmatprep.subr.mxu0 0.0
    %2862 = vmatpush1.msra.mxu0 0.0
    %2863 = vmatprep.subr.mxu0 0.0
    %2864 = vmatpush1.msra.mxu0 0.0
    %2865 = vmatprep.subr.mxu0 0.0
    %2866 = vmatpush1.msra.mxu0 0.0
    %2867 = vmatprep.subr.mxu0 0.0
    %2868 = vmatpush1.msra.mxu0 0.0
    %2869 = vmatprep.subr.mxu0 0.0
    %2870 = vmatpush1.msra.mxu0 0.0
    %2871 = vmatprep.subr.mxu0 0.0
    %2872 = vmatpush1.msra.mxu0 0.0
    %2873 = vmatprep.subr.mxu0 0.0
    %2874 = vmatpush1.msra.mxu0 0.0
    %2875 = vmatprep.subr.mxu0 0.0
    %2876 = vmatpush1.msra.mxu0 0.0
    %2877 = vmatprep.subr.mxu0 0.0
    %2878 = vmatpush1.msra.mxu0 0.0
    %2879 = vmatprep.subr.mxu0 0.0
    %2880 = vmatpush1.msra.mxu0 %v1561
    %2881 = vmatprep.subr.mxu0 0.0
    %2882 = vmatpush1.msra.mxu0 %v1560
    %2883 = vmatprep.subr.mxu0 0.0
    %2884 = vmatpush1.msra.mxu0 %v1559
    %2885 = vmatprep.subr.mxu0 0.0
    %2886 = vmatpush1.msra.mxu0 %v1558
    %2887 = vmatprep.subr.mxu0 0.0
    %2888 = vmatpush2.msra.mxu0 0.0
    %2889 = vmatprep.subr.mxu0 0.0
    %2890 = vmatpush2.msra.mxu0 0.0
    %2891 = vmatprep.subr.mxu0 0.0
    %2892 = vmatpush2.msra.mxu0 0.0
    %2893 = vmatprep.subr.mxu0 0.0
    %2894 = vmatpush2.msra.mxu0 0.0
    %2895 = vmatprep.subr.mxu0 0.0
    %2896 = vmatpush2.msra.mxu0 0.0
    %2897 = vmatprep.subr.mxu0 0.0
    %2898 = vmatpush2.msra.mxu0 0.0
    %2899 = vmatprep.subr.mxu0 0.0
    %2900 = vmatpush2.msra.mxu0 0.0
    %2901 = vmatprep.subr.mxu0 0.0
    %2902 = vmatpush2.msra.mxu0 0.0
    %2903 = vmatprep.subr.mxu0 0.0
    %2904 = vmatpush2.msra.mxu0 0.0
    %2905 = vmatprep.subr.mxu0 0.0
    %2906 = vmatpush2.msra.mxu0 0.0
    %2907 = vmatprep.subr.mxu0 0.0
    %2908 = vmatpush2.msra.mxu0 0.0
    %2909 = vmatprep.subr.mxu0 0.0
    %2910 = vmatpush2.msra.mxu0 0.0
    %2911 = vmatprep.subr.mxu0 0.0
    %2912 = vmatpush2.msra.mxu0 0.0
    %2913 = vmatprep.subr.mxu0 0.0
    %2914 = vmatpush2.msra.mxu0 0.0
    %2915 = vmatprep.subr.mxu0 0.0
    %2916 = vmatpush2.msra.mxu0 0.0
    %2917 = vmatprep.subr.mxu0 0.0
    %2918 = vmatpush2.msra.mxu0 0.0
    %2919 = vmatprep.mubr.f32.mxu0 0.0
    %2920 = vmatmul.mubr.f32.gmra.mxu0 %v2850
    %v2921 = vpop.f32.mrf.mxu0
    %v2922 = vadd.f32 %v2848, %v2921
    %v2923 = vpop.f32.mrf.mxu0
    %2924 = vmatprep.mubr.f32.mxu0 0.0
    %2925 = vmatmul.mubr.f32.gmra.mxu0 %v2853
    %v2926 = vpop.f32.mrf.mxu0
    %v2927 = vadd.f32 %v2848, %v2926
    %v2928 = vpop.f32.mrf.mxu0
    %2929 = vdwg.mxu0
    %v2930 = vmax.f32 %v2922, 0.0
    %v2931 = vmax.f32 %v2927, 0.0
    %v2932 = vlaneseq
    %v2933 = vshrl.u32 %v2932, 7
    %v2934 = vsub.s32 0, %v2933
    %v2935 = vrot.slane %v1577, %v2934
    %v2937 = vsel %vm1425, %v2930, 0
    %v2940 = vsel %vm1425, %v2931, 0
    %2942 = vmatprep.subr.mxu0 0.0
    %2943 = vmatpush1.msra.mxu0 0.0
    %2944 = vmatprep.subr.mxu0 0.0
    %2945 = vmatpush1.msra.mxu0 0.0
    %2946 = vmatprep.subr.mxu0 0.0
    %2947 = vmatpush1.msra.mxu0 0.0
    %2948 = vmatprep.subr.mxu0 0.0
    %2949 = vmatpush1.msra.mxu0 0.0
    %2950 = vmatprep.subr.mxu0 0.0
    %2951 = vmatpush1.msra.mxu0 0.0
    %2952 = vmatprep.subr.mxu0 0.0
    %2953 = vmatpush1.msra.mxu0 0.0
    %2954 = vmatprep.subr.mxu0 0.0
    %2955 = vmatpush1.msra.mxu0 0.0
    %2956 = vmatprep.subr.mxu0 0.0
    %2957 = vmatpush1.msra.mxu0 0.0
    %2958 = vmatprep.subr.mxu0 0.0
    %2959 = vmatpush1.msra.mxu0 %v1570
    %2960 = vmatprep.subr.mxu0 0.0
    %2961 = vmatpush1.msra.mxu0 %v1569
    %2962 = vmatprep.subr.mxu0 0.0
    %2963 = vmatpush1.msra.mxu0 %v1568
    %2964 = vmatprep.subr.mxu0 0.0
    %2965 = vmatpush1.msra.mxu0 %v1567
    %2966 = vmatprep.subr.mxu0 0.0
    %2967 = vmatpush1.msra.mxu0 %v1566
    %2968 = vmatprep.subr.mxu0 0.0
    %2969 = vmatpush1.msra.mxu0 %v1565
    %2970 = vmatprep.subr.mxu0 0.0
    %2971 = vmatpush1.msra.mxu0 %v1564
    %2972 = vmatprep.subr.mxu0 0.0
    %2973 = vmatpush1.msra.mxu0 %v1563
    %2974 = vmatprep.subr.mxu0 0.0
    %2975 = vmatpush2.msra.mxu0 0.0
    %2976 = vmatprep.subr.mxu0 0.0
    %2977 = vmatpush2.msra.mxu0 0.0
    %2978 = vmatprep.subr.mxu0 0.0
    %2979 = vmatpush2.msra.mxu0 0.0
    %2980 = vmatprep.subr.mxu0 0.0
    %2981 = vmatpush2.msra.mxu0 0.0
    %2982 = vmatprep.subr.mxu0 0.0
    %2983 = vmatpush2.msra.mxu0 0.0
    %2984 = vmatprep.subr.mxu0 0.0
    %2985 = vmatpush2.msra.mxu0 0.0
    %2986 = vmatprep.subr.mxu0 0.0
    %2987 = vmatpush2.msra.mxu0 0.0
    %2988 = vmatprep.subr.mxu0 0.0
    %2989 = vmatpush2.msra.mxu0 0.0
    %2990 = vmatprep.subr.mxu0 0.0
    %2991 = vmatpush2.msra.mxu0 0.0
    %2992 = vmatprep.subr.mxu0 0.0
    %2993 = vmatpush2.msra.mxu0 0.0
    %2994 = vmatprep.subr.mxu0 0.0
    %2995 = vmatpush2.msra.mxu0 0.0
    %2996 = vmatprep.subr.mxu0 0.0
    %2997 = vmatpush2.msra.mxu0 0.0
    %2998 = vmatprep.subr.mxu0 0.0
    %2999 = vmatpush2.msra.mxu0 0.0
    %3000 = vmatprep.subr.mxu0 0.0
    %3001 = vmatpush2.msra.mxu0 0.0
    %3002 = vmatprep.subr.mxu0 0.0
    %3003 = vmatpush2.msra.mxu0 0.0
    %3004 = vmatprep.subr.mxu0 0.0
    %3005 = vmatpush2.msra.mxu0 0.0
    %3006 = vmatprep.mubr.f32.mxu0 0.0
    %3007 = vmatmul.mubr.f32.gmra.mxu0 %v2937
    %v3008 = vpop.f32.mrf.mxu0
    %v3009 = vadd.f32 %v2935, %v3008
    %v3010 = vpop.f32.mrf.mxu0
    %3011 = vmatprep.mubr.f32.mxu0 0.0
    %3012 = vmatmul.mubr.f32.gmra.mxu0 %v2940
    %v3013 = vpop.f32.mrf.mxu0
    %v3014 = vadd.f32 %v2935, %v3013
    %v3015 = vpop.f32.mrf.mxu0
    %3016 = vdwg.mxu0
    %v3017 = vadd.f32 %v2843, %v3009
    %v3018 = vadd.f32 %v2844, %v3014
    %v3019 = vsel %vm65, %v3017, 0.0
    %3020 = vadd.xlane.f32.xlu0 %v3019
    %v3021 = vpop.xlane.xlu0 %3020
    %v3022 = vsel %vm65, %v3018, 0.0
    %3023 = vadd.xlane.f32.xlu0 %v3022
    %v3024 = vpop.xlane.xlu0 %3023
    %v3025 = vmul.f32 %v3021, %v1301
    %v3026 = vmul.f32 %v3024, %v1301
    %v3027 = vsub.f32 %v3017, %v3025
    %v3028 = vsub.f32 %v3018, %v3026
    %v3029 = vmul.f32 %v3027, %v3027
    %v3030 = vmul.f32 %v3028, %v3028
    %v3031 = vsel %vm65, %v3029, 0.0
    %3032 = vadd.xlane.f32.xlu0 %v3031
    %v3033 = vpop.xlane.xlu0 %3032
    %v3034 = vsel %vm65, %v3030, 0.0
    %3035 = vadd.xlane.f32.xlu0 %v3034
    %v3036 = vpop.xlane.xlu0 %3035
    %v3037 = vmul.f32 %v3033, %v1301
    %v3038 = vmul.f32 %v3036, %v1301
    %v3039 = vadd.f32 %v3037, 1e-05
    %v3040 = vadd.f32 %v3038, 1e-05
    %v3041 = vrsqrt.pop %v3039
    %v3042 = vrsqrt.pop %v3040
    %v3043 = vmul.f32 %v3027, %v3041
    %v3044 = vmul.f32 %v3028, %v3042
    %v3045 = vlaneseq
    %v3046 = vshrl.u32 %v3045, 7
    %v3047 = vsub.s32 0, %v3046
    %v3048 = vrot.slane %v1578, %v3047
    %v3049 = vmul.f32 %v3043, %v3048
    %v3050 = vmul.f32 %v3044, %v3048
    %v3051 = vlaneseq
    %v3052 = vshrl.u32 %v3051, 7
    %v3053 = vsub.s32 0, %v3052
    %v3054 = vrot.slane %v1579, %v3053
    %v3055 = vadd.f32 %v3049, %v3054
    %v3056 = vadd.f32 %v3050, %v3054
    %3057 = vst.msk [vmem:[#allocation2] sm:$0xff] %vm65, %v3055
    %3058 = vst.msk [vmem:[#allocation2 + $0x8] sm:$0xff] %vm65, %v3056
    // Predicated region
    $region30: #{encoder_forward.1} parent=1 // pred_check
      _
    $region31: #{encoder_forward.1} parent=1 // pred_check_branch
      %3060 = sbr.rel (0) target = $region33
    $region32: #{encoder_forward.1} parent=1 // pred_region
      %s3062 = ssub.s32 256, 256
      %3063 = vsyncadd [#allocation3], %s3062
      %s3064 = sshll.u32 [#allocation2], 4
      %s3065 = int_to_ptr.vmem [resolvable:$true] %s3064
      %3070 = dma.vmem_to_hbm [thread:$0]  %s3065, 256, %s7, [#allocation3], 128, 128, 8
    $region33: #{encoder_forward.1} parent=1 // pred_fallthru
      _
    // Predicated region
    $region34: #{encoder_forward.1} parent=1 // pred_check
      _
    $region35: #{encoder_forward.1} parent=1 // pred_check_branch
      %3072 = sbr.rel (0) target = $region37
    $region36: #{encoder_forward.1} parent=1 // pred_region
      %3073 = dma.done [#allocation3], 256
    $region37: #{encoder_forward.1} parent=1 // pred_fallthru
      _
    %3074 = vsyncpa [#allocation3], 1

</llo_original>
